<compile_context>
chip_gen: v5e
topology: v5e:2x2
jax: 0.10.0
libtpu: 0.0.40
codegen_flags: <defaults>
</compile_context>

<pallas_src>
import functools
import math

import jax
import jax.numpy as jnp
from jax.experimental import pallas as pl
from jax.experimental.pallas import tpu as pltpu

GRID_SIZE = 5
SPLINE_ORDER = 3
GRID_RANGE = (-1.0, 1.0)
LANES = 128


# ---------------------------------------------------------------------------
# Helpers
# ---------------------------------------------------------------------------
def _vmem_capacity_bytes():
    """Physical VMEM capacity of the local chip (fallback: v7x's 64 MiB)."""
    try:
        info = pltpu.get_tpu_info()
        cap = getattr(info, "vmem_capacity_bytes", None)
        if cap:
            return int(cap)
    except Exception:
        pass
    return 64 << 20


def auto_weight_dtype():
    """f32 MXU operands on v5e (no bf16 VPU payoff), bf16 on v6e/v7x."""
    try:
        kind = jax.devices()[0].device_kind.lower()
        if "v5" in kind:
            return jnp.float32
    except Exception:
        pass
    return jnp.bfloat16


# ---------------------------------------------------------------------------
# Kernel
#
# Per-layer params (pre-packed in prep_kan_params), lane-packed column = j*In+i:
#   k0     : (2, (G-1)*In)          row0 = grid[i, j], row1 = grid[i, j+1]
#   rec    : (4*S, (G-2)*In)        per level k: [g_left, g_right, 1/spanL, 1/spanR]
#   w_comb : ((C+1)*In, Out)        rows [0, C*In) = scaler-folded spline weight
#                                   (row c*In+i), rows [C*In, (C+1)*In) = base_w.T
# ---------------------------------------------------------------------------
def _kan_linear_layer(x, k0, rec, w_comb, *, in_features, num_knots, spline_order):
    """One KANLinear layer. x: (B_tile, In) float32."""
    In, G = in_features, num_knots

    # x replicated across the packed knot axis: column j*In + i -> x[:, i].
    x_rep = jnp.concatenate([x] * (G - 1), axis=-1)            # (Bt, (G-1)*In)

    # Degree-0 bases: ONE compare pair on the whole lane-dense slab.
    bases = jnp.logical_and(x_rep >= k0[0:1, :],
                            x_rep < k0[1:2, :]).astype(jnp.float32)

    # Cox-de Boor recursion; every level is a single lane-dense slab update.
    for k in range(1, spline_order + 1):
        nj = G - k - 1
        w = nj * In
        r = 4 * (k - 1)
        gl = rec[r:r + 1, :w]
        gr = rec[r + 1:r + 2, :w]
        rl = rec[r + 2:r + 3, :w]       # precomputed 1/(left knot span)
        rr = rec[r + 3:r + 4, :w]       # precomputed 1/(right knot span)
        xk = x_rep[:, :w]
        # bases[j+1] is just bases shifted left by In lanes (static slice).
        bases = ((xk - gl) * rl * bases[:, :w]
                 + (gr - xk) * rr * bases[:, In:In + w])
    # bases: (Bt, C*In), column c*In + i — matches w_comb row ordering.

    # Fuse base path into the same contraction: acts = [bases | SiLU(x)].
    silu = x * jax.nn.sigmoid(x)
    acts = jnp.concatenate([bases, silu], axis=-1)             # (Bt, (C+1)*In)

    # ONE MXU contraction per layer; weights are already in the operand dtype.
    return jnp.dot(acts.astype(w_comb.dtype), w_comb,
                   preferred_element_type=jnp.float32)


def kan_fused_kernel(*refs, layer_meta, spline_order):
    x_ref = refs[0]
    o_ref = refs[-1]
    params = refs[1:-1]
    h = x_ref[...].astype(jnp.float32)      # recursion always in f32
    for l, (In, G, _) in enumerate(layer_meta):
        k0 = params[3 * l][...]
        rec = params[3 * l + 1][...]
        w_comb = params[3 * l + 2][...]
        h = _kan_linear_layer(h, k0, rec, w_comb, in_features=In,
                              num_knots=G, spline_order=spline_order)
    o_ref[...] = h.astype(o_ref.dtype)


# ---------------------------------------------------------------------------
# Parameter preparation (one-time, outside the kernel)
# ---------------------------------------------------------------------------
def prep_kan_params(raw_params, *, spline_order=SPLINE_ORDER,
                    pad_out_lanes=LANES, weight_dtype=jnp.float32):
    """raw_params: list of (grid (In,G), base_w (Out,In), spline_w (Out,In,C),
    scaler (Out,In)) in torch layout.  Returns (layer_arrays, layer_meta, out_true)."""
    layer_arrays, layer_meta = [], []
    n = len(raw_params)
    out_true = int(raw_params[-1][1].shape[0])
    for idx, (grid, base_w, spline_w, scaler) in enumerate(raw_params):
        Out, In = base_w.shape
        G = grid.shape[1]
        C = G - spline_order - 1

        # Level-0 comparison constants, lane-packed: column j*In + i.
        gl0 = grid[:, :G - 1].T.reshape(-1)
        gr0 = grid[:, 1:G].T.reshape(-1)
        k0 = jnp.stack([gl0, gr0], axis=0).astype(jnp.float32)     # (2, (G-1)*In)

        # Recursion constants per level, lane-packed, padded to the widest level.
        # Reciprocal knot spans are precomputed: no divides in the kernel.
        Wmax = (G - 2) * In
        rows = []
        for k in range(1, spline_order + 1):
            nj = G - k - 1
            gl = grid[:, :nj].T.reshape(-1)
            gr = grid[:, k + 1:k + 1 + nj].T.reshape(-1)
            rl = (1.0 / (grid[:, k:k + nj] - grid[:, :nj])).T.reshape(-1)
            rr = (1.0 / (grid[:, k + 1:k + 1 + nj] - grid[:, 1:1 + nj])).T.reshape(-1)
            for v in (gl, gr, rl, rr):
                rows.append(jnp.pad(v, (0, Wmax - v.shape[0])))
        rec = jnp.stack(rows, axis=0).astype(jnp.float32)          # (4*S, Wmax)

        # Fused weight: spline rows (c*In+i, scaler folded) then base rows (i).
        base_wT = base_w.T.astype(jnp.float32)                     # (In, Out)
        spline_wf = jnp.transpose(spline_w * scaler[:, :, None],
                                  (2, 1, 0)).reshape(C * In, Out).astype(jnp.float32)
        w_comb = jnp.concatenate([spline_wf, base_wT], axis=0)     # ((C+1)*In, Out)

        # Pad the FINAL layer's output dim to a lane-dense multiple of 128.
        out_p = Out
        if idx == n - 1 and pad_out_lanes and Out % pad_out_lanes:
            out_p = pl.cdiv(Out, pad_out_lanes) * pad_out_lanes
            w_comb = jnp.pad(w_comb, ((0, 0), (0, out_p - Out)))

        # Prep-time cast to the MXU operand dtype (no in-kernel weight casts).
        w_comb = w_comb.astype(weight_dtype)

        layer_arrays.append((k0, rec, w_comb))
        layer_meta.append((int(In), int(G), int(out_p)))
    return layer_arrays, tuple(layer_meta), out_true


# ---------------------------------------------------------------------------
# Wrapper: fused KAN forward
# ---------------------------------------------------------------------------
def kan_forward(x, prepped, *, b_tile=None):
    layer_arrays, layer_meta, out_true = prepped
    B, In0 = x.shape
    assert In0 == layer_meta[0][0]
    out_pad = layer_meta[-1][2]
    S = SPLINE_ORDER

    flat_params = [a for lp in layer_arrays for a in lp]
    param_bytes = int(sum(int(a.size) * a.dtype.itemsize for a in flat_params))

    # ---- per-row live-intermediate estimate (f32): x_rep + bases + acts + out ----
    per_row_floats = 0
    for (In, G, Outp) in layer_meta:
        C = G - S - 1
        per_row_floats = max(per_row_floats, (2 * (G - 1) + (C + 1)) * In + Outp)
    # ~2x live factor for temporaries/spill slabs + double-buffered x/out tiles.
    per_row_bytes = 2 * 4 * per_row_floats + 2 * 4 * (In0 + out_pad)

    cap = _vmem_capacity_bytes()                 # 64 MiB on v7x, 128 MiB on v5e/v6e
    budget = int(cap * 0.6)                      # leave headroom for compiler scratch
    avail = max(1 << 20, budget - param_bytes - (1 << 20))

    if b_tile is None:
        b_tile = min(512, avail // per_row_bytes)
        if B >= 16:
            # keep >= 2 grid steps so both v7x TensorCores get a batch block
            b_tile = min(b_tile, max(8, (B // 2 // 8) * 8))
    b_tile = int(max(8, min(int(b_tile), max(B, 8))))
    b_tile = max(8, (b_tile // 8) * 8)

    nb = pl.cdiv(B, b_tile)
    B_pad = nb * b_tile
    if B_pad != B:
        x = jnp.pad(x, ((0, B_pad - B), (0, 0)))

    kernel = functools.partial(kan_fused_kernel, layer_meta=layer_meta,
                               spline_order=S)

    in_specs = [pl.BlockSpec((b_tile, In0), lambda i: (i, 0))]
    # Constants never change across grid steps -> single-buffer them in VMEM.
    in_specs += [pl.BlockSpec(a.shape, lambda i: (0, 0),
                              pipeline_mode=pl.Buffered(1))
                 for a in flat_params]
    out_specs = pl.BlockSpec((b_tile, out_pad), lambda i: (i, 0))

    # ---- cost estimate + VMEM limit ----------------------------------------
    flops, trans = 0, 0
    for (In, G, Outp) in layer_meta:
        C = G - S - 1
        K = (C + 1) * In
        rec_w = sum((G - k - 1) * In for k in range(1, S + 1))
        flops += 2 * B_pad * K * Outp + 8 * B_pad * rec_w + 4 * B_pad * (G - 1) * In
        trans += B_pad * In                      # sigmoid per element
    bytes_acc = int(x.size * x.dtype.itemsize + param_bytes
                    + B_pad * out_pad * x.dtype.itemsize)

    vmem_est = param_bytes + per_row_bytes * b_tile + (4 << 20)
    vmem_limit = int(min(max(vmem_est, 32 << 20), int(cap * 0.9)))

    out = pl.pallas_call(
        kernel,
        out_shape=jax.ShapeDtypeStruct((B_pad, out_pad), x.dtype),
        grid=(nb,),
        in_specs=in_specs,
        out_specs=out_specs,
        compiler_params=pltpu.CompilerParams(
            dimension_semantics=("parallel",),
            vmem_limit_bytes=vmem_limit),
        cost_estimate=pl.CostEstimate(flops=int(flops), transcendentals=int(trans),
                                      bytes_accessed=bytes_acc),
    )(x, *flat_params)
    return out[:B, :out_true]


# ---------------------------------------------------------------------------
# Pure-JAX reference (mirrors KANLinear.forward / KAN.forward)
# ---------------------------------------------------------------------------
def kan_forward_ref(x, raw_params, spline_order=SPLINE_ORDER):
    for grid, base_w, spline_w, scaler in raw_params:
        silu = x * jax.nn.sigmoid(x)
        base_out = silu @ base_w.T
        xe = x[:, :, None]
        gb = grid[None, :, :]
        bases = jnp.logical_and(xe >= gb[:, :, :-1],
                                xe < gb[:, :, 1:]).astype(x.dtype)
        for k in range(1, spline_order + 1):
            bases = ((xe - gb[:, :, :-(k + 1)])
                     / (gb[:, :, k:-1] - gb[:, :, :-(k + 1)]) * bases[:, :, :-1]
                     + (gb[:, :, k + 1:] - xe)
                     / (gb[:, :, k + 1:] - gb[:, :, 1:-k]) * bases[:, :, 1:])
        scaled = spline_w * scaler[:, :, None]
        spline_out = jnp.einsum('bic,oic->bo', bases, scaled)
        x = base_out + spline_out
    return x


# ---------------------------------------------------------------------------
# Deterministic parameter initialization (torch-layout shapes)
# ---------------------------------------------------------------------------
def init_kan_params(key, layers_hidden, *, grid_size=GRID_SIZE,
                    spline_order=SPLINE_ORDER, grid_range=GRID_RANGE):
    # TODO(synk): the torch init uses curve2coeff (lstsq over noise) for
    # spline_weight; here parameters are synthetic deterministic values with
    # the same shapes (forward-pass semantics are unaffected).
    h = (grid_range[1] - grid_range[0]) / grid_size
    G = grid_size + 2 * spline_order + 1
    C = grid_size + spline_order
    grid_1d = (jnp.arange(-spline_order, grid_size + spline_order + 1,
                          dtype=jnp.float32) * h + grid_range[0])
    params = []
    for in_f, out_f in zip(layers_hidden[:-1], layers_hidden[1:]):
        key, k1, k2, k3 = jax.random.split(key, 4)
        grid = jnp.broadcast_to(grid_1d, (in_f, G)).astype(jnp.float32)
        a = math.sqrt(5.0)
        bound = math.sqrt(6.0 / ((1.0 + a * a) * in_f))  # kaiming-uniform bound
        base_w = jax.random.uniform(k1, (out_f, in_f), jnp.float32, -bound, bound)
        spline_w = jax.random.uniform(k2, (out_f, in_f, C), jnp.float32,
                                      -0.1, 0.1) / grid_size
        scaler = jax.random.uniform(k3, (out_f, in_f), jnp.float32, -bound, bound)
        params.append((grid, base_w, spline_w, scaler))
    return params


if __name__ == "__main__":
    layers_hidden = [16, 32, 8]     # KAN([16, 32, 8])
    batch = 256                     # auto-tiled: 2 batch blocks of 128 rows

    key = jax.random.PRNGKey(0)
    kparams, kx = jax.random.split(key)
    raw = init_kan_params(kparams, layers_hidden)
    x = jax.random.uniform(kx, (batch, layers_hidden[0]), jnp.float32, -1.0, 1.0)

    y_ref = kan_forward_ref(x, raw)

    # f32 MXU operands (v5e-preferred path): should match the reference tightly.
    prepped_f32 = prep_kan_params(raw, weight_dtype=jnp.float32)
    y = jax.block_until_ready(kan_forward(x, prepped_f32))
    assert y.shape == (batch, layers_hidden[-1])
    assert jnp.allclose(y, y_ref, atol=1e-4, rtol=1e-4), "f32 Pallas mismatch"

    # bf16 weights/operands, f32 accumulation (v6e/v7x fast path): loose tolerance.
    prepped_bf16 = prep_kan_params(raw, weight_dtype=jnp.bfloat16)
    y_bf16 = jax.block_until_ready(kan_forward(x, prepped_bf16))
    assert jnp.allclose(y_bf16, y_ref, atol=1e-1, rtol=1e-1), "bf16 Pallas mismatch"

    print("KERNEL_OK")
</pallas_src>

<mosaic_0001>
module attributes {stable_mosaic.version = 11 : i64} {
  func.func @kan_fused_kernel(%arg0: i32, %arg1: memref<128x16xf32, #tpu.memory_space<vmem>>, %arg2: memref<2x176xf32, #tpu.memory_space<vmem>>, %arg3: memref<12x160xf32, #tpu.memory_space<vmem>>, %arg4: memref<144x32xf32, #tpu.memory_space<vmem>>, %arg5: memref<2x352xf32, #tpu.memory_space<vmem>>, %arg6: memref<12x320xf32, #tpu.memory_space<vmem>>, %arg7: memref<288x128xf32, #tpu.memory_space<vmem>>, %arg8: memref<128x128xf32, #tpu.memory_space<vmem>>) attributes {dimension_semantics = [#tpu.dimension_semantics<parallel>], iteration_bounds = array<i64: 2>, scalar_prefetch = 0 : i64, scratch_operands = 0 : i64, tpu.core_type = #tpu.core_type<tc>, window_params = [{transform_indices = @transform_0, window_bounds = array<i64: 128, 16>}, {pipeline_mode = #tpu.pipeline_mode<synchronous>, transform_indices = @transform_1, window_bounds = array<i64: 2, 176>}, {pipeline_mode = #tpu.pipeline_mode<synchronous>, transform_indices = @transform_2, window_bounds = array<i64: 12, 160>}, {pipeline_mode = #tpu.pipeline_mode<synchronous>, transform_indices = @transform_3, window_bounds = array<i64: 144, 32>}, {pipeline_mode = #tpu.pipeline_mode<synchronous>, transform_indices = @transform_4, window_bounds = array<i64: 2, 352>}, {pipeline_mode = #tpu.pipeline_mode<synchronous>, transform_indices = @transform_5, window_bounds = array<i64: 12, 320>}, {pipeline_mode = #tpu.pipeline_mode<synchronous>, transform_indices = @transform_6, window_bounds = array<i64: 288, 128>}, {transform_indices = @transform_7, window_bounds = array<i64: 128, 128>}]} {
    %c0 = arith.constant 0 : index
    %c0_0 = arith.constant 0 : index
    %0 = vector.load %arg1[%c0, %c0_0] : memref<128x16xf32, #tpu.memory_space<vmem>>, vector<128x16xf32>
    %c0_1 = arith.constant 0 : index
    %c0_2 = arith.constant 0 : index
    %1 = vector.load %arg2[%c0_1, %c0_2] : memref<2x176xf32, #tpu.memory_space<vmem>>, vector<2x176xf32>
    %c0_3 = arith.constant 0 : index
    %c0_4 = arith.constant 0 : index
    %2 = vector.load %arg3[%c0_3, %c0_4] : memref<12x160xf32, #tpu.memory_space<vmem>>, vector<12x160xf32>
    %c0_5 = arith.constant 0 : index
    %c0_6 = arith.constant 0 : index
    %3 = vector.load %arg4[%c0_5, %c0_6] : memref<144x32xf32, #tpu.memory_space<vmem>>, vector<144x32xf32>
    %4 = tpu.concatenate %0, %0, %0, %0, %0, %0, %0, %0, %0, %0, %0 in 1 : vector<128x16xf32>, vector<128x16xf32>, vector<128x16xf32>, vector<128x16xf32>, vector<128x16xf32>, vector<128x16xf32>, vector<128x16xf32>, vector<128x16xf32>, vector<128x16xf32>, vector<128x16xf32>, vector<128x16xf32> -> vector<128x176xf32>
    %5 = vector.extract_strided_slice %1 {offsets = [0, 0], sizes = [1, 176], strides = [1, 1]} : vector<2x176xf32> to vector<1x176xf32>
    %6 = vector.broadcast %5 : vector<1x176xf32> to vector<128x176xf32>
    %7 = arith.cmpf oge, %4, %6 : vector<128x176xf32>
    %8 = vector.extract_strided_slice %1 {offsets = [1, 0], sizes = [1, 176], strides = [1, 1]} : vector<2x176xf32> to vector<1x176xf32>
    %9 = vector.broadcast %8 : vector<1x176xf32> to vector<128x176xf32>
    %10 = arith.cmpf olt, %4, %9 : vector<128x176xf32>
    %11 = arith.andi %7, %10 : vector<128x176xi1>
    %12 = arith.extui %11 : vector<128x176xi1> to vector<128x176xi32>
    %13 = arith.sitofp %12 : vector<128x176xi32> to vector<128x176xf32>
    %14 = vector.extract_strided_slice %2 {offsets = [0, 0], sizes = [1, 160], strides = [1, 1]} : vector<12x160xf32> to vector<1x160xf32>
    %15 = vector.extract_strided_slice %2 {offsets = [1, 0], sizes = [1, 160], strides = [1, 1]} : vector<12x160xf32> to vector<1x160xf32>
    %16 = vector.extract_strided_slice %2 {offsets = [2, 0], sizes = [1, 160], strides = [1, 1]} : vector<12x160xf32> to vector<1x160xf32>
    %17 = vector.extract_strided_slice %2 {offsets = [3, 0], sizes = [1, 160], strides = [1, 1]} : vector<12x160xf32> to vector<1x160xf32>
    %18 = vector.extract_strided_slice %4 {offsets = [0, 0], sizes = [128, 160], strides = [1, 1]} : vector<128x176xf32> to vector<128x160xf32>
    %19 = vector.broadcast %14 : vector<1x160xf32> to vector<128x160xf32>
    %20 = arith.subf %18, %19 : vector<128x160xf32>
    %21 = vector.broadcast %16 : vector<1x160xf32> to vector<128x160xf32>
    %22 = arith.mulf %20, %21 : vector<128x160xf32>
    %23 = vector.extract_strided_slice %13 {offsets = [0, 0], sizes = [128, 160], strides = [1, 1]} : vector<128x176xf32> to vector<128x160xf32>
    %24 = arith.mulf %22, %23 : vector<128x160xf32>
    %25 = vector.broadcast %15 : vector<1x160xf32> to vector<128x160xf32>
    %26 = arith.subf %25, %18 : vector<128x160xf32>
    %27 = vector.broadcast %17 : vector<1x160xf32> to vector<128x160xf32>
    %28 = arith.mulf %26, %27 : vector<128x160xf32>
    %29 = vector.extract_strided_slice %13 {offsets = [0, 16], sizes = [128, 160], strides = [1, 1]} : vector<128x176xf32> to vector<128x160xf32>
    %30 = arith.mulf %28, %29 : vector<128x160xf32>
    %31 = arith.addf %24, %30 : vector<128x160xf32>
    %32 = vector.extract_strided_slice %2 {offsets = [4, 0], sizes = [1, 144], strides = [1, 1]} : vector<12x160xf32> to vector<1x144xf32>
    %33 = vector.extract_strided_slice %2 {offsets = [5, 0], sizes = [1, 144], strides = [1, 1]} : vector<12x160xf32> to vector<1x144xf32>
    %34 = vector.extract_strided_slice %2 {offsets = [6, 0], sizes = [1, 144], strides = [1, 1]} : vector<12x160xf32> to vector<1x144xf32>
    %35 = vector.extract_strided_slice %2 {offsets = [7, 0], sizes = [1, 144], strides = [1, 1]} : vector<12x160xf32> to vector<1x144xf32>
    %36 = vector.extract_strided_slice %4 {offsets = [0, 0], sizes = [128, 144], strides = [1, 1]} : vector<128x176xf32> to vector<128x144xf32>
    %37 = vector.broadcast %32 : vector<1x144xf32> to vector<128x144xf32>
    %38 = arith.subf %36, %37 : vector<128x144xf32>
    %39 = vector.broadcast %34 : vector<1x144xf32> to vector<128x144xf32>
    %40 = arith.mulf %38, %39 : vector<128x144xf32>
    %41 = vector.extract_strided_slice %31 {offsets = [0, 0], sizes = [128, 144], strides = [1, 1]} : vector<128x160xf32> to vector<128x144xf32>
    %42 = arith.mulf %40, %41 : vector<128x144xf32>
    %43 = vector.broadcast %33 : vector<1x144xf32> to vector<128x144xf32>
    %44 = arith.subf %43, %36 : vector<128x144xf32>
    %45 = vector.broadcast %35 : vector<1x144xf32> to vector<128x144xf32>
    %46 = arith.mulf %44, %45 : vector<128x144xf32>
    %47 = vector.extract_strided_slice %31 {offsets = [0, 16], sizes = [128, 144], strides = [1, 1]} : vector<128x160xf32> to vector<128x144xf32>
    %48 = arith.mulf %46, %47 : vector<128x144xf32>
    %49 = arith.addf %42, %48 : vector<128x144xf32>
    %50 = vector.extract_strided_slice %2 {offsets = [8, 0], sizes = [1, 128], strides = [1, 1]} : vector<12x160xf32> to vector<1x128xf32>
    %51 = vector.extract_strided_slice %2 {offsets = [9, 0], sizes = [1, 128], strides = [1, 1]} : vector<12x160xf32> to vector<1x128xf32>
    %52 = vector.extract_strided_slice %2 {offsets = [10, 0], sizes = [1, 128], strides = [1, 1]} : vector<12x160xf32> to vector<1x128xf32>
    %53 = vector.extract_strided_slice %2 {offsets = [11, 0], sizes = [1, 128], strides = [1, 1]} : vector<12x160xf32> to vector<1x128xf32>
    %54 = vector.extract_strided_slice %4 {offsets = [0, 0], sizes = [128, 128], strides = [1, 1]} : vector<128x176xf32> to vector<128x128xf32>
    %55 = vector.broadcast %50 : vector<1x128xf32> to vector<128x128xf32>
    %56 = arith.subf %54, %55 : vector<128x128xf32>
    %57 = vector.broadcast %52 : vector<1x128xf32> to vector<128x128xf32>
    %58 = arith.mulf %56, %57 : vector<128x128xf32>
    %59 = vector.extract_strided_slice %49 {offsets = [0, 0], sizes = [128, 128], strides = [1, 1]} : vector<128x144xf32> to vector<128x128xf32>
    %60 = arith.mulf %58, %59 : vector<128x128xf32>
    %61 = vector.broadcast %51 : vector<1x128xf32> to vector<128x128xf32>
    %62 = arith.subf %61, %54 : vector<128x128xf32>
    %63 = vector.broadcast %53 : vector<1x128xf32> to vector<128x128xf32>
    %64 = arith.mulf %62, %63 : vector<128x128xf32>
    %65 = vector.extract_strided_slice %49 {offsets = [0, 16], sizes = [128, 128], strides = [1, 1]} : vector<128x144xf32> to vector<128x128xf32>
    %66 = arith.mulf %64, %65 : vector<128x128xf32>
    %67 = arith.addf %60, %66 : vector<128x128xf32>
    %68 = arith.negf %0 : vector<128x16xf32>
    %69 = math.exp %68 : vector<128x16xf32>
    %cst = arith.constant 1.000000e+00 : f32
    %70 = vector.broadcast %cst : f32 to vector<128x16xf32>
    %71 = arith.addf %70, %69 : vector<128x16xf32>
    %72 = arith.divf %70, %71 : vector<128x16xf32>
    %73 = arith.mulf %0, %72 : vector<128x16xf32>
    %74 = tpu.concatenate %67, %73 in 1 : vector<128x128xf32>, vector<128x16xf32> -> vector<128x144xf32>
    %cst_7 = arith.constant dense<0.000000e+00> : vector<128x32xf32>
    %75 = tpu.matmul %74, %3, %cst_7 {dimension_numbers = #tpu.dot_dimension_numbers<[1], [0], [0], [1], [0, 0, 1, 1], [], []>} : vector<128x144xf32>, vector<144x32xf32>, vector<128x32xf32> -> vector<128x32xf32>
    %c0_8 = arith.constant 0 : index
    %c0_9 = arith.constant 0 : index
    %76 = vector.load %arg5[%c0_8, %c0_9] : memref<2x352xf32, #tpu.memory_space<vmem>>, vector<2x352xf32>
    %c0_10 = arith.constant 0 : index
    %c0_11 = arith.constant 0 : index
    %77 = vector.load %arg6[%c0_10, %c0_11] : memref<12x320xf32, #tpu.memory_space<vmem>>, vector<12x320xf32>
    %c0_12 = arith.constant 0 : index
    %c0_13 = arith.constant 0 : index
    %78 = vector.load %arg7[%c0_12, %c0_13] : memref<288x128xf32, #tpu.memory_space<vmem>>, vector<288x128xf32>
    %79 = tpu.concatenate %75, %75, %75, %75, %75, %75, %75, %75, %75, %75, %75 in 1 : vector<128x32xf32>, vector<128x32xf32>, vector<128x32xf32>, vector<128x32xf32>, vector<128x32xf32>, vector<128x32xf32>, vector<128x32xf32>, vector<128x32xf32>, vector<128x32xf32>, vector<128x32xf32>, vector<128x32xf32> -> vector<128x352xf32>
    %80 = vector.extract_strided_slice %76 {offsets = [0, 0], sizes = [1, 352], strides = [1, 1]} : vector<2x352xf32> to vector<1x352xf32>
    %81 = vector.broadcast %80 : vector<1x352xf32> to vector<128x352xf32>
    %82 = arith.cmpf oge, %79, %81 : vector<128x352xf32>
    %83 = vector.extract_strided_slice %76 {offsets = [1, 0], sizes = [1, 352], strides = [1, 1]} : vector<2x352xf32> to vector<1x352xf32>
    %84 = vector.broadcast %83 : vector<1x352xf32> to vector<128x352xf32>
    %85 = arith.cmpf olt, %79, %84 : vector<128x352xf32>
    %86 = arith.andi %82, %85 : vector<128x352xi1>
    %87 = arith.extui %86 : vector<128x352xi1> to vector<128x352xi32>
    %88 = arith.sitofp %87 : vector<128x352xi32> to vector<128x352xf32>
    %89 = vector.extract_strided_slice %77 {offsets = [0, 0], sizes = [1, 320], strides = [1, 1]} : vector<12x320xf32> to vector<1x320xf32>
    %90 = vector.extract_strided_slice %77 {offsets = [1, 0], sizes = [1, 320], strides = [1, 1]} : vector<12x320xf32> to vector<1x320xf32>
    %91 = vector.extract_strided_slice %77 {offsets = [2, 0], sizes = [1, 320], strides = [1, 1]} : vector<12x320xf32> to vector<1x320xf32>
    %92 = vector.extract_strided_slice %77 {offsets = [3, 0], sizes = [1, 320], strides = [1, 1]} : vector<12x320xf32> to vector<1x320xf32>
    %93 = vector.extract_strided_slice %79 {offsets = [0, 0], sizes = [128, 320], strides = [1, 1]} : vector<128x352xf32> to vector<128x320xf32>
    %94 = vector.broadcast %89 : vector<1x320xf32> to vector<128x320xf32>
    %95 = arith.subf %93, %94 : vector<128x320xf32>
    %96 = vector.broadcast %91 : vector<1x320xf32> to vector<128x320xf32>
    %97 = arith.mulf %95, %96 : vector<128x320xf32>
    %98 = vector.extract_strided_slice %88 {offsets = [0, 0], sizes = [128, 320], strides = [1, 1]} : vector<128x352xf32> to vector<128x320xf32>
    %99 = arith.mulf %97, %98 : vector<128x320xf32>
    %100 = vector.broadcast %90 : vector<1x320xf32> to vector<128x320xf32>
    %101 = arith.subf %100, %93 : vector<128x320xf32>
    %102 = vector.broadcast %92 : vector<1x320xf32> to vector<128x320xf32>
    %103 = arith.mulf %101, %102 : vector<128x320xf32>
    %104 = vector.extract_strided_slice %88 {offsets = [0, 32], sizes = [128, 320], strides = [1, 1]} : vector<128x352xf32> to vector<128x320xf32>
    %105 = arith.mulf %103, %104 : vector<128x320xf32>
    %106 = arith.addf %99, %105 : vector<128x320xf32>
    %107 = vector.extract_strided_slice %77 {offsets = [4, 0], sizes = [1, 288], strides = [1, 1]} : vector<12x320xf32> to vector<1x288xf32>
    %108 = vector.extract_strided_slice %77 {offsets = [5, 0], sizes = [1, 288], strides = [1, 1]} : vector<12x320xf32> to vector<1x288xf32>
    %109 = vector.extract_strided_slice %77 {offsets = [6, 0], sizes = [1, 288], strides = [1, 1]} : vector<12x320xf32> to vector<1x288xf32>
    %110 = vector.extract_strided_slice %77 {offsets = [7, 0], sizes = [1, 288], strides = [1, 1]} : vector<12x320xf32> to vector<1x288xf32>
    %111 = vector.extract_strided_slice %79 {offsets = [0, 0], sizes = [128, 288], strides = [1, 1]} : vector<128x352xf32> to vector<128x288xf32>
    %112 = vector.broadcast %107 : vector<1x288xf32> to vector<128x288xf32>
    %113 = arith.subf %111, %112 : vector<128x288xf32>
    %114 = vector.broadcast %109 : vector<1x288xf32> to vector<128x288xf32>
    %115 = arith.mulf %113, %114 : vector<128x288xf32>
    %116 = vector.extract_strided_slice %106 {offsets = [0, 0], sizes = [128, 288], strides = [1, 1]} : vector<128x320xf32> to vector<128x288xf32>
    %117 = arith.mulf %115, %116 : vector<128x288xf32>
    %118 = vector.broadcast %108 : vector<1x288xf32> to vector<128x288xf32>
    %119 = arith.subf %118, %111 : vector<128x288xf32>
    %120 = vector.broadcast %110 : vector<1x288xf32> to vector<128x288xf32>
    %121 = arith.mulf %119, %120 : vector<128x288xf32>
    %122 = vector.extract_strided_slice %106 {offsets = [0, 32], sizes = [128, 288], strides = [1, 1]} : vector<128x320xf32> to vector<128x288xf32>
    %123 = arith.mulf %121, %122 : vector<128x288xf32>
    %124 = arith.addf %117, %123 : vector<128x288xf32>
    %125 = vector.extract_strided_slice %77 {offsets = [8, 0], sizes = [1, 256], strides = [1, 1]} : vector<12x320xf32> to vector<1x256xf32>
    %126 = vector.extract_strided_slice %77 {offsets = [9, 0], sizes = [1, 256], strides = [1, 1]} : vector<12x320xf32> to vector<1x256xf32>
    %127 = vector.extract_strided_slice %77 {offsets = [10, 0], sizes = [1, 256], strides = [1, 1]} : vector<12x320xf32> to vector<1x256xf32>
    %128 = vector.extract_strided_slice %77 {offsets = [11, 0], sizes = [1, 256], strides = [1, 1]} : vector<12x320xf32> to vector<1x256xf32>
    %129 = vector.extract_strided_slice %79 {offsets = [0, 0], sizes = [128, 256], strides = [1, 1]} : vector<128x352xf32> to vector<128x256xf32>
    %130 = vector.broadcast %125 : vector<1x256xf32> to vector<128x256xf32>
    %131 = arith.subf %129, %130 : vector<128x256xf32>
    %132 = vector.broadcast %127 : vector<1x256xf32> to vector<128x256xf32>
    %133 = arith.mulf %131, %132 : vector<128x256xf32>
    %134 = vector.extract_strided_slice %124 {offsets = [0, 0], sizes = [128, 256], strides = [1, 1]} : vector<128x288xf32> to vector<128x256xf32>
    %135 = arith.mulf %133, %134 : vector<128x256xf32>
    %136 = vector.broadcast %126 : vector<1x256xf32> to vector<128x256xf32>
    %137 = arith.subf %136, %129 : vector<128x256xf32>
    %138 = vector.broadcast %128 : vector<1x256xf32> to vector<128x256xf32>
    %139 = arith.mulf %137, %138 : vector<128x256xf32>
    %140 = vector.extract_strided_slice %124 {offsets = [0, 32], sizes = [128, 256], strides = [1, 1]} : vector<128x288xf32> to vector<128x256xf32>
    %141 = arith.mulf %139, %140 : vector<128x256xf32>
    %142 = arith.addf %135, %141 : vector<128x256xf32>
    %143 = arith.negf %75 : vector<128x32xf32>
    %144 = math.exp %143 : vector<128x32xf32>
    %cst_14 = arith.constant 1.000000e+00 : f32
    %145 = vector.broadcast %cst_14 : f32 to vector<128x32xf32>
    %146 = arith.addf %145, %144 : vector<128x32xf32>
    %147 = arith.divf %145, %146 : vector<128x32xf32>
    %148 = arith.mulf %75, %147 : vector<128x32xf32>
    %149 = tpu.concatenate %142, %148 in 1 : vector<128x256xf32>, vector<128x32xf32> -> vector<128x288xf32>
    %cst_15 = arith.constant dense<0.000000e+00> : vector<128x128xf32>
    %150 = tpu.matmul %149, %78, %cst_15 {dimension_numbers = #tpu.dot_dimension_numbers<[1], [0], [0], [1], [0, 0, 1, 1], [], []>} : vector<128x288xf32>, vector<288x128xf32>, vector<128x128xf32> -> vector<128x128xf32>
    %c0_16 = arith.constant 0 : index
    %c0_17 = arith.constant 0 : index
    %151 = vector.load %arg8[%c0_16, %c0_17] : memref<128x128xf32, #tpu.memory_space<vmem>>, vector<128x128xf32>
    tpu.vector_store %arg8[%c0_16, %c0_17], %150 {strides = array<i32>} : memref<128x128xf32, #tpu.memory_space<vmem>>, vector<128x128xf32>,
    return
  }
  func.func @transform_0(%arg0: i32) -> (i32, i32) {
    %c0_i32 = arith.constant 0 : i32
    %c0_i32_0 = arith.constant 0 : i32
    return %arg0, %c0_i32 : i32, i32
  }
  func.func @transform_1(%arg0: i32) -> (i32, i32) {
    %c0_i32 = arith.constant 0 : i32
    %c0_i32_0 = arith.constant 0 : i32
    %c0_i32_1 = arith.constant 0 : i32
    return %c0_i32, %c0_i32_0 : i32, i32
  }
  func.func @transform_2(%arg0: i32) -> (i32, i32) {
    %c0_i32 = arith.constant 0 : i32
    %c0_i32_0 = arith.constant 0 : i32
    %c0_i32_1 = arith.constant 0 : i32
    return %c0_i32, %c0_i32_0 : i32, i32
  }
  func.func @transform_3(%arg0: i32) -> (i32, i32) {
    %c0_i32 = arith.constant 0 : i32
    %c0_i32_0 = arith.constant 0 : i32
    %c0_i32_1 = arith.constant 0 : i32
    return %c0_i32, %c0_i32_0 : i32, i32
  }
  func.func @transform_4(%arg0: i32) -> (i32, i32) {
    %c0_i32 = arith.constant 0 : i32
    %c0_i32_0 = arith.constant 0 : i32
    %c0_i32_1 = arith.constant 0 : i32
    return %c0_i32, %c0_i32_0 : i32, i32
  }
  func.func @transform_5(%arg0: i32) -> (i32, i32) {
    %c0_i32 = arith.constant 0 : i32
    %c0_i32_0 = arith.constant 0 : i32
    %c0_i32_1 = arith.constant 0 : i32
    return %c0_i32, %c0_i32_0 : i32, i32
  }
  func.func @transform_6(%arg0: i32) -> (i32, i32) {
    %c0_i32 = arith.constant 0 : i32
    %c0_i32_0 = arith.constant 0 : i32
    %c0_i32_1 = arith.constant 0 : i32
    return %c0_i32, %c0_i32_0 : i32, i32
  }
  func.func @transform_7(%arg0: i32) -> (i32, i32) {
    %c0_i32 = arith.constant 0 : i32
    %c0_i32_0 = arith.constant 0 : i32
    return %arg0, %c0_i32 : i32, i32
  }
}

</mosaic_0001>

<llo_original>
// kernel: tpu_custom_call.1
$region0: #{tpu_custom_call.1}
  #allocation0 [shape = 'u32[]', space=smem, size = 0x4, offset = 0x4, fixed_abs, tag = 'smem constant byte address 0x4 - core index']
  #allocation1 [shape = 'u32[72,128]{1,0:T(1,128)}', space=vmem, size = 0x9000, scoped, tag = 'internal scratch']
  %s0 = inlined_call_operand.vmem [shape: f32[256,16], index: 0, kind: input, shape index: {}]
  %s1 = inlined_call_operand.vmem [shape: f32[2,176], index: 1, kind: input, shape index: {}]
  %s2 = inlined_call_operand.vmem [shape: f32[12,160], index: 2, kind: input, shape index: {}]
  %s3 = inlined_call_operand.vmem [shape: f32[144,32], index: 3, kind: input, shape index: {}]
  %s4 = inlined_call_operand.vmem [shape: f32[2,352], index: 4, kind: input, shape index: {}]
  %s5 = inlined_call_operand.vmem [shape: f32[12,320], index: 5, kind: input, shape index: {}]
  %s6 = inlined_call_operand.vmem [shape: f32[288,128], index: 6, kind: input, shape index: {}]
  %s7 = inlined_call_operand.hbm [shape: f32[256,128], index: 7, kind: output, shape index: {}]
  %s8 = sld [smem:[#allocation0]]
  $region61: #{tpu_custom_call.1} parent=0
    _
  %s10 = ssub.s32 1, %s8
  %s11 = scalar_select 0, %s10, %s8
  $region1: #{tpu_custom_call.1} parent=0
    #allocation2 [shape = 'u8[131072]{0}', space=vmem, size = 0x20000, scoped, tag = 'output window, operand 0']
    #allocation3 [shape = 's32[2]{0}', space=sflag, size = 0x8, scoped, tag = 'scoped memory for tpu_custom_call.1']
    %12 = vsyncpa [#allocation3], 0
    %s13 = scalar_lea.sflag [#allocation3], 1
    %14 = vsyncpa %s13, 0
    loop: start=0, step=1, limit=4
    $region2: #{tpu_custom_call.1} parent=1 // loop_pre_header
      _
    $region3: #{tpu_custom_call.1} parent=1 // loop_header
      %s16 = sphi 0, %s20
      %p17 = scmp.ge.s32.totalorder %s16, 4
      %s26 = sphi 0, %s28
      %s29 = sphi 0, %s26
      %s30 = sphi 0, %s29
      %s46 = sphi 0, %s30
      %s50 = sphi 0, %s50
      %s52 = sphi 0, %s50
      %s53 = sphi 0, %s52
      %s67 = sphi 0, %s53
      %s71 = sphi 0, %s71
      %s73 = sphi 0, %s71
      %s74 = sphi 0, %s73
      %s88 = sphi 0, %s74
      %s92 = sphi 0, %s92
      %s94 = sphi 0, %s92
      %s95 = sphi 0, %s94
      %s109 = sphi 0, %s95
      %s113 = sphi 0, %s113
      %s115 = sphi 0, %s113
      %s116 = sphi 0, %s115
      %s130 = sphi 0, %s116
      %s134 = sphi 0, %s134
      %s136 = sphi 0, %s134
      %s137 = sphi 0, %s136
      %s151 = sphi 0, %s137
      %s155 = sphi 0, %s155
      %s157 = sphi 0, %s155
      %s158 = sphi 0, %s157
      %s172 = sphi 0, %s158
      %s178 = sphi 0, %s180
      %s181 = sphi 0, %s178
      %s182 = sphi 0, %s181
      %s198 = sphi 0, %s182
    $region4: #{tpu_custom_call.1} parent=1 // loop_header_branch
      %19 = sbr.rel (%p17) target = $region8
    $region5: #{tpu_custom_call.1} parent=1 // loop_body
      %s21 = ssub.s32 %s16, 1
      %s22 = ssub.s32 %s16, 2
      %s23 = sadd.s32 %s16, 1
      %s24 = ssub.s32 %s16, %s23
      %p25 = scmp.eq.s32.totalorder %s24, 0
      %s27 = sadd.s32 %s26, 1
      %s28 = scalar_select %p25, %s26, %s27
      %p31 = pneg %p25
      %p32 = scmp.eq.s32.totalorder %s16, 1
      %p33 = por %p31, %p32
      %p34 = scmp.ne.s32.totalorder %s26, %s29
      %p35 = scmp.eq.s32.totalorder %s16, 0
      %p36 = por %p34, %p35
      %p37 = scmp.ne.s32.totalorder %s26, %s29
      %p38 = scmp.eq.s32.totalorder %s21, 1
      %p39 = por %p37, %p38
      %p40 = scmp.ne.s32.totalorder %s29, %s30
      %p41 = scmp.eq.s32.totalorder %s21, 0
      %p42 = por %p40, %p41
      %p43 = scmp.ne.s32.totalorder %s29, %s30
      %p44 = scmp.eq.s32.totalorder %s22, 1
      %p45 = por %p43, %p44
      %p47 = scmp.ne.s32.totalorder %s30, %s46
      %p48 = scmp.eq.s32.totalorder %s22, 0
      %p49 = por %p47, %p48
      %s51 = sadd.s32 %s50, 1
      %p54 = scmp.eq.s32.totalorder %s16, 1
      %p55 = scmp.ne.s32.totalorder %s50, %s52
      %p56 = scmp.eq.s32.totalorder %s16, 0
      %p57 = por %p55, %p56
      %p58 = scmp.ne.s32.totalorder %s50, %s52
      %p59 = scmp.eq.s32.totalorder %s21, 1
      %p60 = por %p58, %p59
      %p61 = scmp.ne.s32.totalorder %s52, %s53
      %p62 = scmp.eq.s32.totalorder %s21, 0
      %p63 = por %p61, %p62
      %p64 = scmp.ne.s32.totalorder %s52, %s53
      %p65 = scmp.eq.s32.totalorder %s22, 1
      %p66 = por %p64, %p65
      %p68 = scmp.ne.s32.totalorder %s53, %s67
      %p69 = scmp.eq.s32.totalorder %s22, 0
      %p70 = por %p68, %p69
      %s72 = sadd.s32 %s71, 1
      %p75 = scmp.eq.s32.totalorder %s16, 1
      %p76 = scmp.ne.s32.totalorder %s71, %s73
      %p77 = scmp.eq.s32.totalorder %s16, 0
      %p78 = por %p76, %p77
      %p79 = scmp.ne.s32.totalorder %s71, %s73
      %p80 = scmp.eq.s32.totalorder %s21, 1
      %p81 = por %p79, %p80
      %p82 = scmp.ne.s32.totalorder %s73, %s74
      %p83 = scmp.eq.s32.totalorder %s21, 0
      %p84 = por %p82, %p83
      %p85 = scmp.ne.s32.totalorder %s73, %s74
      %p86 = scmp.eq.s32.totalorder %s22, 1
      %p87 = por %p85, %p86
      %p89 = scmp.ne.s32.totalorder %s74, %s88
      %p90 = scmp.eq.s32.totalorder %s22, 0
      %p91 = por %p89, %p90
      %s93 = sadd.s32 %s92, 1
      %p96 = scmp.eq.s32.totalorder %s16, 1
      %p97 = scmp.ne.s32.totalorder %s92, %s94
      %p98 = scmp.eq.s32.totalorder %s16, 0
      %p99 = por %p97, %p98
      %p100 = scmp.ne.s32.totalorder %s92, %s94
      %p101 = scmp.eq.s32.totalorder %s21, 1
      %p102 = por %p100, %p101
      %p103 = scmp.ne.s32.totalorder %s94, %s95
      %p104 = scmp.eq.s32.totalorder %s21, 0
      %p105 = por %p103, %p104
      %p106 = scmp.ne.s32.totalorder %s94, %s95
      %p107 = scmp.eq.s32.totalorder %s22, 1
      %p108 = por %p106, %p107
      %p110 = scmp.ne.s32.totalorder %s95, %s109
      %p111 = scmp.eq.s32.totalorder %s22, 0
      %p112 = por %p110, %p111
      %s114 = sadd.s32 %s113, 1
      %p117 = scmp.eq.s32.totalorder %s16, 1
      %p118 = scmp.ne.s32.totalorder %s113, %s115
      %p119 = scmp.eq.s32.totalorder %s16, 0
      %p120 = por %p118, %p119
      %p121 = scmp.ne.s32.totalorder %s113, %s115
      %p122 = scmp.eq.s32.totalorder %s21, 1
      %p123 = por %p121, %p122
      %p124 = scmp.ne.s32.totalorder %s115, %s116
      %p125 = scmp.eq.s32.totalorder %s21, 0
      %p126 = por %p124, %p125
      %p127 = scmp.ne.s32.totalorder %s115, %s116
      %p128 = scmp.eq.s32.totalorder %s22, 1
      %p129 = por %p127, %p128
      %p131 = scmp.ne.s32.totalorder %s116, %s130
      %p132 = scmp.eq.s32.totalorder %s22, 0
      %p133 = por %p131, %p132
      %s135 = sadd.s32 %s134, 1
      %p138 = scmp.eq.s32.totalorder %s16, 1
      %p139 = scmp.ne.s32.totalorder %s134, %s136
      %p140 = scmp.eq.s32.totalorder %s16, 0
      %p141 = por %p139, %p140
      %p142 = scmp.ne.s32.totalorder %s134, %s136
      %p143 = scmp.eq.s32.totalorder %s21, 1
      %p144 = por %p142, %p143
      %p145 = scmp.ne.s32.totalorder %s136, %s137
      %p146 = scmp.eq.s32.totalorder %s21, 0
      %p147 = por %p145, %p146
      %p148 = scmp.ne.s32.totalorder %s136, %s137
      %p149 = scmp.eq.s32.totalorder %s22, 1
      %p150 = por %p148, %p149
      %p152 = scmp.ne.s32.totalorder %s137, %s151
      %p153 = scmp.eq.s32.totalorder %s22, 0
      %p154 = por %p152, %p153
      %s156 = sadd.s32 %s155, 1
      %p159 = scmp.eq.s32.totalorder %s16, 1
      %p160 = scmp.ne.s32.totalorder %s155, %s157
      %p161 = scmp.eq.s32.totalorder %s16, 0
      %p162 = por %p160, %p161
      %p163 = scmp.ne.s32.totalorder %s155, %s157
      %p164 = scmp.eq.s32.totalorder %s21, 1
      %p165 = por %p163, %p164
      %p166 = scmp.ne.s32.totalorder %s157, %s158
      %p167 = scmp.eq.s32.totalorder %s21, 0
      %p168 = por %p166, %p167
      %p169 = scmp.ne.s32.totalorder %s157, %s158
      %p170 = scmp.eq.s32.totalorder %s22, 1
      %p171 = por %p169, %p170
      %p173 = scmp.ne.s32.totalorder %s158, %s172
      %p174 = scmp.eq.s32.totalorder %s22, 0
      %p175 = por %p173, %p174
      %s176 = ssub.s32 %s16, %s23
      %p177 = scmp.eq.s32.totalorder %s176, 0
      %s179 = sadd.s32 %s178, 1
      %s180 = scalar_select %p177, %s178, %s179
      %p183 = pneg %p177
      %p184 = scmp.eq.s32.totalorder %s16, 1
      %p185 = por %p183, %p184
      %p186 = scmp.ne.s32.totalorder %s178, %s181
      %p187 = scmp.eq.s32.totalorder %s16, 0
      %p188 = por %p186, %p187
      %p189 = scmp.ne.s32.totalorder %s178, %s181
      %p190 = scmp.eq.s32.totalorder %s21, 1
      %p191 = por %p189, %p190
      %p192 = scmp.ne.s32.totalorder %s181, %s182
      %p193 = scmp.eq.s32.totalorder %s21, 0
      %p194 = por %p192, %p193
      %p195 = scmp.ne.s32.totalorder %s181, %s182
      %p196 = scmp.eq.s32.totalorder %s22, 1
      %p197 = por %p195, %p196
      %p199 = scmp.ne.s32.totalorder %s182, %s198
      %p200 = scmp.eq.s32.totalorder %s22, 0
      %p201 = por %p199, %p200
      %p202 = scmp.le.s32.totalorder 1, %s16
      %p203 = scmp.lt.s32.totalorder %s16, 3
      %p204 = pnand %p202, %p203
      %p205 = pneg %p204
      // Predicated region
      $region9: #{tpu_custom_call.1} parent=5 // pred_check
        _
      $region10: #{tpu_custom_call.1} parent=5 // pred_check_branch
        %207 = sbr.rel (%p204) target = $region12
      $region11: #{tpu_custom_call.1} parent=5 // pred_region
        %s208 = ssub.s32 %s16, 1
        // Predicated region
        $region13: #{tpu_custom_call.1} parent=11 // pred_check
          %p209 = pneg %p63
        $region14: #{tpu_custom_call.1} parent=11 // pred_check_branch
          %211 = sbr.rel (%p209) target = $region16
        $region15: #{tpu_custom_call.1} parent=11 // pred_region
          _
        $region16: #{tpu_custom_call.1} parent=11 // pred_fallthru
          _
        // Predicated region
        $region17: #{tpu_custom_call.1} parent=11 // pred_check
          %p212 = pneg %p84
        $region18: #{tpu_custom_call.1} parent=11 // pred_check_branch
          %214 = sbr.rel (%p212) target = $region20
        $region19: #{tpu_custom_call.1} parent=11 // pred_region
          _
        $region20: #{tpu_custom_call.1} parent=11 // pred_fallthru
          _
        // Predicated region
        $region21: #{tpu_custom_call.1} parent=11 // pred_check
          %p215 = pneg %p105
        $region22: #{tpu_custom_call.1} parent=11 // pred_check_branch
          %217 = sbr.rel (%p215) target = $region24
        $region23: #{tpu_custom_call.1} parent=11 // pred_region
          _
        $region24: #{tpu_custom_call.1} parent=11 // pred_fallthru
          _
        // Predicated region
        $region25: #{tpu_custom_call.1} parent=11 // pred_check
          %p218 = pneg %p126
        $region26: #{tpu_custom_call.1} parent=11 // pred_check_branch
          %220 = sbr.rel (%p218) target = $region28
        $region27: #{tpu_custom_call.1} parent=11 // pred_region
          _
        $region28: #{tpu_custom_call.1} parent=11 // pred_fallthru
          _
        // Predicated region
        $region29: #{tpu_custom_call.1} parent=11 // pred_check
          %p221 = pneg %p147
        $region30: #{tpu_custom_call.1} parent=11 // pred_check_branch
          %223 = sbr.rel (%p221) target = $region32
        $region31: #{tpu_custom_call.1} parent=11 // pred_region
          _
        $region32: #{tpu_custom_call.1} parent=11 // pred_fallthru
          _
        // Predicated region
        $region33: #{tpu_custom_call.1} parent=11 // pred_check
          %p224 = pneg %p168
        $region34: #{tpu_custom_call.1} parent=11 // pred_check_branch
          %226 = sbr.rel (%p224) target = $region36
        $region35: #{tpu_custom_call.1} parent=11 // pred_region
          _
        $region36: #{tpu_custom_call.1} parent=11 // pred_fallthru
          _
      $region12: #{tpu_custom_call.1} parent=5 // pred_fallthru
        _
      %p227 = scmp.lt.s32.totalorder %s16, 2
      // Predicated region
      $region37: #{tpu_custom_call.1} parent=5 // pred_check
        %p228 = pneg %p227
      $region38: #{tpu_custom_call.1} parent=5 // pred_check_branch
        %230 = sbr.rel (%p228) target = $region40
      $region39: #{tpu_custom_call.1} parent=5 // pred_region
        // Predicated region
        $region41: #{tpu_custom_call.1} parent=39 // pred_check
          %p231 = pneg %p36
        $region42: #{tpu_custom_call.1} parent=39 // pred_check_branch
          %233 = sbr.rel (%p231) target = $region44
        $region43: #{tpu_custom_call.1} parent=39 // pred_region
          %s234 = smul.u32 16, %s16
          %p235 = scmp.lt.s32.totalorder %s234, 31
          %s236 = scalar_select %p235, %s234, 31
          %s237 = smul.addr %s236, 8
          %s238 = scalar_lea.vmem %s0, %s237
          %s239 = smul.u32 16, %s16
        $region44: #{tpu_custom_call.1} parent=39 // pred_fallthru
          _
      $region40: #{tpu_custom_call.1} parent=5 // pred_fallthru
        _
      %p240 = scmp.le.s32.totalorder 1, %s16
      %p241 = scmp.lt.s32.totalorder %s16, 3
      %p242 = pnand %p240, %p241
      %p243 = pneg %p242
      // Predicated region
      $region45: #{tpu_custom_call.1} parent=5 // pred_check
        _
      $region46: #{tpu_custom_call.1} parent=5 // pred_check_branch
        %245 = sbr.rel (%p242) target = $region48
      $region47: #{tpu_custom_call.1} parent=5 // pred_region
        %s246 = ssub.s32 %s16, 1
        %s247 = smul.u32 16, %s21
        %p248 = scmp.lt.s32.totalorder %s247, 31
        %s249 = scalar_select %p248, %s247, 31
        %s250 = smul.addr %s249, 8
        %s251 = scalar_lea.vmem %s0, %s250
        %p252 = pneg %p42
        %p253 = pneg %p39
        %p254 = pneg %p63
        %p255 = pneg %p60
        %p256 = pneg %p84
        %p257 = pneg %p81
        %p258 = pneg %p105
        %p259 = pneg %p102
        %p260 = pneg %p126
        %p261 = pneg %p123
        %p262 = pneg %p147
        %p263 = pneg %p144
        %p264 = pneg %p168
        %p265 = pneg %p165
        %p266 = pneg %p194
        %p267 = pneg %p191
        %s268 = sand.u32 %s181, 1
        %s269 = scalar_lea.sflag [#allocation3], %s268
        %s270 = sand.u32 %s181, 1
        %s271 = smul.addr %s270, 128
        %s272 = scalar_lea.vmem [#allocation2], %s271
        %s273 = smul.u32 16, %s21
        %p274 = scmp.lt.s32.totalorder %s273, 31
        %s275 = scalar_select %p274, %s273, 31
        %s276 = smul.addr %s275, 8
        %s277 = scalar_lea.vmem %s0, %s276
        %s278 = smul.u32 16, %s21
        %s279 = smul.u32 16, %s21
        %v280 = vld [vmem:[%s277] sm:$0xff]
        %v281 = vld [vmem:[%s277 + $0x8] sm:$0xff]
        %v282 = vld [vmem:[%s277 + $0x10] sm:$0xff]
        %v283 = vld [vmem:[%s277 + $0x18] sm:$0xff]
        %v284 = vld [vmem:[%s277 + $0x20] sm:$0xff]
        %v285 = vld [vmem:[%s277 + $0x28] sm:$0xff]
        %v286 = vld [vmem:[%s277 + $0x30] sm:$0xff]
        %v287 = vld [vmem:[%s277 + $0x38] sm:$0xff]
        %v288 = vld [vmem:[%s277 + $0x40] sm:$0xff]
        %v289 = vld [vmem:[%s277 + $0x48] sm:$0xff]
        %v290 = vld [vmem:[%s277 + $0x50] sm:$0xff]
        %v291 = vld [vmem:[%s277 + $0x58] sm:$0xff]
        %v292 = vld [vmem:[%s277 + $0x60] sm:$0xff]
        %v293 = vld [vmem:[%s277 + $0x68] sm:$0xff]
        %v294 = vld [vmem:[%s277 + $0x70] sm:$0xff]
        %v295 = vld [vmem:[%s277 + $0x78] sm:$0xff]
        %v296 = vld [vmem:[%s1] sm:$0xf]
        %v297 = vld [vmem:[%s2] sm:$0xff]
        %v298 = vld [vmem:[%s2 + $0x8] sm:$0xff]
        %v299 = vld [vmem:[%s2 + $0x10] sm:$0xf]
        %v300 = vld [vmem:[%s3] sm:$0xff]
        %v301 = vld [vmem:[%s3 + $0x8] sm:$0xff]
        %v302 = vld [vmem:[%s3 + $0x10] sm:$0xff]
        %v303 = vld [vmem:[%s3 + $0x18] sm:$0xff]
        %v304 = vld [vmem:[%s3 + $0x20] sm:$0xff]
        %v305 = vld [vmem:[%s3 + $0x28] sm:$0xff]
        %v306 = vld [vmem:[%s3 + $0x30] sm:$0xff]
        %v307 = vld [vmem:[%s3 + $0x38] sm:$0xff]
        %v308 = vld [vmem:[%s3 + $0x40] sm:$0xff]
        %v309 = vld [vmem:[%s3 + $0x48] sm:$0xff]
        %v310 = vld [vmem:[%s3 + $0x50] sm:$0xff]
        %v311 = vld [vmem:[%s3 + $0x58] sm:$0xff]
        %v312 = vld [vmem:[%s3 + $0x60] sm:$0xff]
        %v313 = vld [vmem:[%s3 + $0x68] sm:$0xff]
        %v314 = vld [vmem:[%s3 + $0x70] sm:$0xff]
        %v315 = vld [vmem:[%s3 + $0x78] sm:$0xff]
        %v316 = vld [vmem:[%s3 + $0x80] sm:$0xff]
        %v317 = vld [vmem:[%s3 + $0x88] sm:$0xff]
        %334 = vrot.lane.b32.xlu0 %v280, 16
        %v335 = vpop.permute.xlu0 %334
        %336 = vrot.lane.b32.xlu0 %v281, 16
        %v337 = vpop.permute.xlu0 %336
        %338 = vrot.lane.b32.xlu0 %v282, 16
        %v339 = vpop.permute.xlu0 %338
        %340 = vrot.lane.b32.xlu0 %v283, 16
        %v341 = vpop.permute.xlu0 %340
        %342 = vrot.lane.b32.xlu0 %v284, 16
        %v343 = vpop.permute.xlu0 %342
        %344 = vrot.lane.b32.xlu0 %v285, 16
        %v345 = vpop.permute.xlu0 %344
        %346 = vrot.lane.b32.xlu0 %v286, 16
        %v347 = vpop.permute.xlu0 %346
        %348 = vrot.lane.b32.xlu0 %v287, 16
        %v349 = vpop.permute.xlu0 %348
        %350 = vrot.lane.b32.xlu0 %v288, 16
        %v351 = vpop.permute.xlu0 %350
        %352 = vrot.lane.b32.xlu0 %v289, 16
        %v353 = vpop.permute.xlu0 %352
        %354 = vrot.lane.b32.xlu0 %v290, 16
        %v355 = vpop.permute.xlu0 %354
        %356 = vrot.lane.b32.xlu0 %v291, 16
        %v357 = vpop.permute.xlu0 %356
        %358 = vrot.lane.b32.xlu0 %v292, 16
        %v359 = vpop.permute.xlu0 %358
        %360 = vrot.lane.b32.xlu0 %v293, 16
        %v361 = vpop.permute.xlu0 %360
        %362 = vrot.lane.b32.xlu0 %v294, 16
        %v363 = vpop.permute.xlu0 %362
        %364 = vrot.lane.b32.xlu0 %v295, 16
        %v365 = vpop.permute.xlu0 %364
        %382 = vrot.lane.b32.xlu0 %v280, 32
        %v383 = vpop.permute.xlu0 %382
        %384 = vrot.lane.b32.xlu0 %v281, 32
        %v385 = vpop.permute.xlu0 %384
        %386 = vrot.lane.b32.xlu0 %v282, 32
        %v387 = vpop.permute.xlu0 %386
        %388 = vrot.lane.b32.xlu0 %v283, 32
        %v389 = vpop.permute.xlu0 %388
        %390 = vrot.lane.b32.xlu0 %v284, 32
        %v391 = vpop.permute.xlu0 %390
        %392 = vrot.lane.b32.xlu0 %v285, 32
        %v393 = vpop.permute.xlu0 %392
        %394 = vrot.lane.b32.xlu0 %v286, 32
        %v395 = vpop.permute.xlu0 %394
        %396 = vrot.lane.b32.xlu0 %v287, 32
        %v397 = vpop.permute.xlu0 %396
        %398 = vrot.lane.b32.xlu0 %v288, 32
        %v399 = vpop.permute.xlu0 %398
        %400 = vrot.lane.b32.xlu0 %v289, 32
        %v401 = vpop.permute.xlu0 %400
        %402 = vrot.lane.b32.xlu0 %v290, 32
        %v403 = vpop.permute.xlu0 %402
        %404 = vrot.lane.b32.xlu0 %v291, 32
        %v405 = vpop.permute.xlu0 %404
        %406 = vrot.lane.b32.xlu0 %v292, 32
        %v407 = vpop.permute.xlu0 %406
        %408 = vrot.lane.b32.xlu0 %v293, 32
        %v409 = vpop.permute.xlu0 %408
        %410 = vrot.lane.b32.xlu0 %v294, 32
        %v411 = vpop.permute.xlu0 %410
        %412 = vrot.lane.b32.xlu0 %v295, 32
        %v413 = vpop.permute.xlu0 %412
        %430 = vrot.lane.b32.xlu0 %v280, 48
        %v431 = vpop.permute.xlu0 %430
        %432 = vrot.lane.b32.xlu0 %v281, 48
        %v433 = vpop.permute.xlu0 %432
        %434 = vrot.lane.b32.xlu0 %v282, 48
        %v435 = vpop.permute.xlu0 %434
        %436 = vrot.lane.b32.xlu0 %v283, 48
        %v437 = vpop.permute.xlu0 %436
        %438 = vrot.lane.b32.xlu0 %v284, 48
        %v439 = vpop.permute.xlu0 %438
        %440 = vrot.lane.b32.xlu0 %v285, 48
        %v441 = vpop.permute.xlu0 %440
        %442 = vrot.lane.b32.xlu0 %v286, 48
        %v443 = vpop.permute.xlu0 %442
        %444 = vrot.lane.b32.xlu0 %v287, 48
        %v445 = vpop.permute.xlu0 %444
        %446 = vrot.lane.b32.xlu0 %v288, 48
        %v447 = vpop.permute.xlu0 %446
        %448 = vrot.lane.b32.xlu0 %v289, 48
        %v449 = vpop.permute.xlu0 %448
        %450 = vrot.lane.b32.xlu0 %v290, 48
        %v451 = vpop.permute.xlu0 %450
        %452 = vrot.lane.b32.xlu0 %v291, 48
        %v453 = vpop.permute.xlu0 %452
        %454 = vrot.lane.b32.xlu0 %v292, 48
        %v455 = vpop.permute.xlu0 %454
        %456 = vrot.lane.b32.xlu0 %v293, 48
        %v457 = vpop.permute.xlu0 %456
        %458 = vrot.lane.b32.xlu0 %v294, 48
        %v459 = vpop.permute.xlu0 %458
        %460 = vrot.lane.b32.xlu0 %v295, 48
        %v461 = vpop.permute.xlu0 %460
        %478 = vrot.lane.b32.xlu0 %v280, 64
        %v479 = vpop.permute.xlu0 %478
        %480 = vrot.lane.b32.xlu0 %v281, 64
        %v481 = vpop.permute.xlu0 %480
        %482 = vrot.lane.b32.xlu0 %v282, 64
        %v483 = vpop.permute.xlu0 %482
        %484 = vrot.lane.b32.xlu0 %v283, 64
        %v485 = vpop.permute.xlu0 %484
        %486 = vrot.lane.b32.xlu0 %v284, 64
        %v487 = vpop.permute.xlu0 %486
        %488 = vrot.lane.b32.xlu0 %v285, 64
        %v489 = vpop.permute.xlu0 %488
        %490 = vrot.lane.b32.xlu0 %v286, 64
        %v491 = vpop.permute.xlu0 %490
        %492 = vrot.lane.b32.xlu0 %v287, 64
        %v493 = vpop.permute.xlu0 %492
        %494 = vrot.lane.b32.xlu0 %v288, 64
        %v495 = vpop.permute.xlu0 %494
        %496 = vrot.lane.b32.xlu0 %v289, 64
        %v497 = vpop.permute.xlu0 %496
        %498 = vrot.lane.b32.xlu0 %v290, 64
        %v499 = vpop.permute.xlu0 %498
        %500 = vrot.lane.b32.xlu0 %v291, 64
        %v501 = vpop.permute.xlu0 %500
        %502 = vrot.lane.b32.xlu0 %v292, 64
        %v503 = vpop.permute.xlu0 %502
        %504 = vrot.lane.b32.xlu0 %v293, 64
        %v505 = vpop.permute.xlu0 %504
        %506 = vrot.lane.b32.xlu0 %v294, 64
        %v507 = vpop.permute.xlu0 %506
        %508 = vrot.lane.b32.xlu0 %v295, 64
        %v509 = vpop.permute.xlu0 %508
        %526 = vrot.lane.b32.xlu0 %v280, 80
        %v527 = vpop.permute.xlu0 %526
        %528 = vrot.lane.b32.xlu0 %v281, 80
        %v529 = vpop.permute.xlu0 %528
        %530 = vrot.lane.b32.xlu0 %v282, 80
        %v531 = vpop.permute.xlu0 %530
        %532 = vrot.lane.b32.xlu0 %v283, 80
        %v533 = vpop.permute.xlu0 %532
        %534 = vrot.lane.b32.xlu0 %v284, 80
        %v535 = vpop.permute.xlu0 %534
        %536 = vrot.lane.b32.xlu0 %v285, 80
        %v537 = vpop.permute.xlu0 %536
        %538 = vrot.lane.b32.xlu0 %v286, 80
        %v539 = vpop.permute.xlu0 %538
        %540 = vrot.lane.b32.xlu0 %v287, 80
        %v541 = vpop.permute.xlu0 %540
        %542 = vrot.lane.b32.xlu0 %v288, 80
        %v543 = vpop.permute.xlu0 %542
        %544 = vrot.lane.b32.xlu0 %v289, 80
        %v545 = vpop.permute.xlu0 %544
        %546 = vrot.lane.b32.xlu0 %v290, 80
        %v547 = vpop.permute.xlu0 %546
        %548 = vrot.lane.b32.xlu0 %v291, 80
        %v549 = vpop.permute.xlu0 %548
        %550 = vrot.lane.b32.xlu0 %v292, 80
        %v551 = vpop.permute.xlu0 %550
        %552 = vrot.lane.b32.xlu0 %v293, 80
        %v553 = vpop.permute.xlu0 %552
        %554 = vrot.lane.b32.xlu0 %v294, 80
        %v555 = vpop.permute.xlu0 %554
        %556 = vrot.lane.b32.xlu0 %v295, 80
        %v557 = vpop.permute.xlu0 %556
        %574 = vrot.lane.b32.xlu0 %v280, 96
        %v575 = vpop.permute.xlu0 %574
        %576 = vrot.lane.b32.xlu0 %v281, 96
        %v577 = vpop.permute.xlu0 %576
        %578 = vrot.lane.b32.xlu0 %v282, 96
        %v579 = vpop.permute.xlu0 %578
        %580 = vrot.lane.b32.xlu0 %v283, 96
        %v581 = vpop.permute.xlu0 %580
        %582 = vrot.lane.b32.xlu0 %v284, 96
        %v583 = vpop.permute.xlu0 %582
        %584 = vrot.lane.b32.xlu0 %v285, 96
        %v585 = vpop.permute.xlu0 %584
        %586 = vrot.lane.b32.xlu0 %v286, 96
        %v587 = vpop.permute.xlu0 %586
        %588 = vrot.lane.b32.xlu0 %v287, 96
        %v589 = vpop.permute.xlu0 %588
        %590 = vrot.lane.b32.xlu0 %v288, 96
        %v591 = vpop.permute.xlu0 %590
        %592 = vrot.lane.b32.xlu0 %v289, 96
        %v593 = vpop.permute.xlu0 %592
        %594 = vrot.lane.b32.xlu0 %v290, 96
        %v595 = vpop.permute.xlu0 %594
        %596 = vrot.lane.b32.xlu0 %v291, 96
        %v597 = vpop.permute.xlu0 %596
        %598 = vrot.lane.b32.xlu0 %v292, 96
        %v599 = vpop.permute.xlu0 %598
        %600 = vrot.lane.b32.xlu0 %v293, 96
        %v601 = vpop.permute.xlu0 %600
        %602 = vrot.lane.b32.xlu0 %v294, 96
        %v603 = vpop.permute.xlu0 %602
        %604 = vrot.lane.b32.xlu0 %v295, 96
        %v605 = vpop.permute.xlu0 %604
        %622 = vrot.lane.b32.xlu0 %v280, 112
        %v623 = vpop.permute.xlu0 %622
        %624 = vrot.lane.b32.xlu0 %v281, 112
        %v625 = vpop.permute.xlu0 %624
        %626 = vrot.lane.b32.xlu0 %v282, 112
        %v627 = vpop.permute.xlu0 %626
        %628 = vrot.lane.b32.xlu0 %v283, 112
        %v629 = vpop.permute.xlu0 %628
        %630 = vrot.lane.b32.xlu0 %v284, 112
        %v631 = vpop.permute.xlu0 %630
        %632 = vrot.lane.b32.xlu0 %v285, 112
        %v633 = vpop.permute.xlu0 %632
        %634 = vrot.lane.b32.xlu0 %v286, 112
        %v635 = vpop.permute.xlu0 %634
        %636 = vrot.lane.b32.xlu0 %v287, 112
        %v637 = vpop.permute.xlu0 %636
        %638 = vrot.lane.b32.xlu0 %v288, 112
        %v639 = vpop.permute.xlu0 %638
        %640 = vrot.lane.b32.xlu0 %v289, 112
        %v641 = vpop.permute.xlu0 %640
        %642 = vrot.lane.b32.xlu0 %v290, 112
        %v643 = vpop.permute.xlu0 %642
        %644 = vrot.lane.b32.xlu0 %v291, 112
        %v645 = vpop.permute.xlu0 %644
        %646 = vrot.lane.b32.xlu0 %v292, 112
        %v647 = vpop.permute.xlu0 %646
        %648 = vrot.lane.b32.xlu0 %v293, 112
        %v649 = vpop.permute.xlu0 %648
        %650 = vrot.lane.b32.xlu0 %v294, 112
        %v651 = vpop.permute.xlu0 %650
        %652 = vrot.lane.b32.xlu0 %v295, 112
        %v653 = vpop.permute.xlu0 %652
        %vm670 = vcmask 130048
        %v671 = vsel %vm670, %v280, %v335
        %v672 = vsel %vm670, %v281, %v337
        %v673 = vsel %vm670, %v282, %v339
        %v674 = vsel %vm670, %v283, %v341
        %v675 = vsel %vm670, %v284, %v343
        %v676 = vsel %vm670, %v285, %v345
        %v677 = vsel %vm670, %v286, %v347
        %v678 = vsel %vm670, %v287, %v349
        %v679 = vsel %vm670, %v288, %v351
        %v680 = vsel %vm670, %v289, %v353
        %v681 = vsel %vm670, %v290, %v355
        %v682 = vsel %vm670, %v291, %v357
        %v683 = vsel %vm670, %v292, %v359
        %v684 = vsel %vm670, %v293, %v361
        %v685 = vsel %vm670, %v294, %v363
        %v686 = vsel %vm670, %v295, %v365
        %vm687 = vcmask 261120
        %v688 = vsel %vm687, %v671, %v383
        %v689 = vsel %vm687, %v672, %v385
        %v690 = vsel %vm687, %v673, %v387
        %v691 = vsel %vm687, %v674, %v389
        %v692 = vsel %vm687, %v675, %v391
        %v693 = vsel %vm687, %v676, %v393
        %v694 = vsel %vm687, %v677, %v395
        %v695 = vsel %vm687, %v678, %v397
        %v696 = vsel %vm687, %v679, %v399
        %v697 = vsel %vm687, %v680, %v401
        %v698 = vsel %vm687, %v681, %v403
        %v699 = vsel %vm687, %v682, %v405
        %v700 = vsel %vm687, %v683, %v407
        %v701 = vsel %vm687, %v684, %v409
        %v702 = vsel %vm687, %v685, %v411
        %v703 = vsel %vm687, %v686, %v413
        %vm704 = vcmask 392192
        %v705 = vsel %vm704, %v688, %v431
        %v706 = vsel %vm704, %v689, %v433
        %v707 = vsel %vm704, %v690, %v435
        %v708 = vsel %vm704, %v691, %v437
        %v709 = vsel %vm704, %v692, %v439
        %v710 = vsel %vm704, %v693, %v441
        %v711 = vsel %vm704, %v694, %v443
        %v712 = vsel %vm704, %v695, %v445
        %v713 = vsel %vm704, %v696, %v447
        %v714 = vsel %vm704, %v697, %v449
        %v715 = vsel %vm704, %v698, %v451
        %v716 = vsel %vm704, %v699, %v453
        %v717 = vsel %vm704, %v700, %v455
        %v718 = vsel %vm704, %v701, %v457
        %v719 = vsel %vm704, %v702, %v459
        %v720 = vsel %vm704, %v703, %v461
        %vm721 = vcmask 523264
        %v722 = vsel %vm721, %v705, %v479
        %v723 = vsel %vm721, %v706, %v481
        %v724 = vsel %vm721, %v707, %v483
        %v725 = vsel %vm721, %v708, %v485
        %v726 = vsel %vm721, %v709, %v487
        %v727 = vsel %vm721, %v710, %v489
        %v728 = vsel %vm721, %v711, %v491
        %v729 = vsel %vm721, %v712, %v493
        %v730 = vsel %vm721, %v713, %v495
        %v731 = vsel %vm721, %v714, %v497
        %v732 = vsel %vm721, %v715, %v499
        %v733 = vsel %vm721, %v716, %v501
        %v734 = vsel %vm721, %v717, %v503
        %v735 = vsel %vm721, %v718, %v505
        %v736 = vsel %vm721, %v719, %v507
        %v737 = vsel %vm721, %v720, %v509
        %vm738 = vcmask 654336
        %v739 = vsel %vm738, %v722, %v527
        %v740 = vsel %vm738, %v723, %v529
        %v741 = vsel %vm738, %v724, %v531
        %v742 = vsel %vm738, %v725, %v533
        %v743 = vsel %vm738, %v726, %v535
        %v744 = vsel %vm738, %v727, %v537
        %v745 = vsel %vm738, %v728, %v539
        %v746 = vsel %vm738, %v729, %v541
        %v747 = vsel %vm738, %v730, %v543
        %v748 = vsel %vm738, %v731, %v545
        %v749 = vsel %vm738, %v732, %v547
        %v750 = vsel %vm738, %v733, %v549
        %v751 = vsel %vm738, %v734, %v551
        %v752 = vsel %vm738, %v735, %v553
        %v753 = vsel %vm738, %v736, %v555
        %v754 = vsel %vm738, %v737, %v557
        %vm755 = vcmask 785408
        %v756 = vsel %vm755, %v739, %v575
        %v757 = vsel %vm755, %v740, %v577
        %v758 = vsel %vm755, %v741, %v579
        %v759 = vsel %vm755, %v742, %v581
        %v760 = vsel %vm755, %v743, %v583
        %v761 = vsel %vm755, %v744, %v585
        %v762 = vsel %vm755, %v745, %v587
        %v763 = vsel %vm755, %v746, %v589
        %v764 = vsel %vm755, %v747, %v591
        %v765 = vsel %vm755, %v748, %v593
        %v766 = vsel %vm755, %v749, %v595
        %v767 = vsel %vm755, %v750, %v597
        %v768 = vsel %vm755, %v751, %v599
        %v769 = vsel %vm755, %v752, %v601
        %v770 = vsel %vm755, %v753, %v603
        %v771 = vsel %vm755, %v754, %v605
        %vm772 = vcmask 916480
        %v773 = vsel %vm772, %v756, %v623
        %v774 = vsel %vm772, %v757, %v625
        %v775 = vsel %vm772, %v758, %v627
        %v776 = vsel %vm772, %v759, %v629
        %v777 = vsel %vm772, %v760, %v631
        %v778 = vsel %vm772, %v761, %v633
        %v779 = vsel %vm772, %v762, %v635
        %v780 = vsel %vm772, %v763, %v637
        %v781 = vsel %vm772, %v764, %v639
        %v782 = vsel %vm772, %v765, %v641
        %v783 = vsel %vm772, %v766, %v643
        %v784 = vsel %vm772, %v767, %v645
        %v785 = vsel %vm772, %v768, %v647
        %v786 = vsel %vm772, %v769, %v649
        %v787 = vsel %vm772, %v770, %v651
        %v788 = vsel %vm772, %v771, %v653
        %v790 = vperm.slane %v296, 0
        %v791 = vperm.slane %v296, 2
        %v794 = vperm.slane %v790, 0
        %v795 = vperm.slane %v791, 0
        %vm796 = vcmp.ge.f32.partialorder %v773, %v794
        %vm797 = vcmp.ge.f32.partialorder %v688, %v795
        %vm798 = vcmp.ge.f32.partialorder %v774, %v794
        %vm799 = vcmp.ge.f32.partialorder %v689, %v795
        %vm800 = vcmp.ge.f32.partialorder %v775, %v794
        %vm801 = vcmp.ge.f32.partialorder %v690, %v795
        %vm802 = vcmp.ge.f32.partialorder %v776, %v794
        %vm803 = vcmp.ge.f32.partialorder %v691, %v795
        %vm804 = vcmp.ge.f32.partialorder %v777, %v794
        %vm805 = vcmp.ge.f32.partialorder %v692, %v795
        %vm806 = vcmp.ge.f32.partialorder %v778, %v794
        %vm807 = vcmp.ge.f32.partialorder %v693, %v795
        %vm808 = vcmp.ge.f32.partialorder %v779, %v794
        %vm809 = vcmp.ge.f32.partialorder %v694, %v795
        %vm810 = vcmp.ge.f32.partialorder %v780, %v794
        %vm811 = vcmp.ge.f32.partialorder %v695, %v795
        %vm812 = vcmp.ge.f32.partialorder %v781, %v794
        %vm813 = vcmp.ge.f32.partialorder %v696, %v795
        %vm814 = vcmp.ge.f32.partialorder %v782, %v794
        %vm815 = vcmp.ge.f32.partialorder %v697, %v795
        %vm816 = vcmp.ge.f32.partialorder %v783, %v794
        %vm817 = vcmp.ge.f32.partialorder %v698, %v795
        %vm818 = vcmp.ge.f32.partialorder %v784, %v794
        %vm819 = vcmp.ge.f32.partialorder %v699, %v795
        %vm820 = vcmp.ge.f32.partialorder %v785, %v794
        %vm821 = vcmp.ge.f32.partialorder %v700, %v795
        %vm822 = vcmp.ge.f32.partialorder %v786, %v794
        %vm823 = vcmp.ge.f32.partialorder %v701, %v795
        %vm824 = vcmp.ge.f32.partialorder %v787, %v794
        %vm825 = vcmp.ge.f32.partialorder %v702, %v795
        %vm826 = vcmp.ge.f32.partialorder %v788, %v794
        %vm827 = vcmp.ge.f32.partialorder %v703, %v795
        %v828 = vperm.slane %v296, 1
        %v829 = vperm.slane %v296, 3
        %v832 = vperm.slane %v828, 1
        %v833 = vperm.slane %v829, 1
        %vm834 = vcmp.lt.f32.partialorder %v773, %v832
        %vm835 = vcmp.lt.f32.partialorder %v688, %v833
        %vm836 = vcmp.lt.f32.partialorder %v774, %v832
        %vm837 = vcmp.lt.f32.partialorder %v689, %v833
        %vm838 = vcmp.lt.f32.partialorder %v775, %v832
        %vm839 = vcmp.lt.f32.partialorder %v690, %v833
        %vm840 = vcmp.lt.f32.partialorder %v776, %v832
        %vm841 = vcmp.lt.f32.partialorder %v691, %v833
        %vm842 = vcmp.lt.f32.partialorder %v777, %v832
        %vm843 = vcmp.lt.f32.partialorder %v692, %v833
        %vm844 = vcmp.lt.f32.partialorder %v778, %v832
        %vm845 = vcmp.lt.f32.partialorder %v693, %v833
        %vm846 = vcmp.lt.f32.partialorder %v779, %v832
        %vm847 = vcmp.lt.f32.partialorder %v694, %v833
        %vm848 = vcmp.lt.f32.partialorder %v780, %v832
        %vm849 = vcmp.lt.f32.partialorder %v695, %v833
        %vm850 = vcmp.lt.f32.partialorder %v781, %v832
        %vm851 = vcmp.lt.f32.partialorder %v696, %v833
        %vm852 = vcmp.lt.f32.partialorder %v782, %v832
        %vm853 = vcmp.lt.f32.partialorder %v697, %v833
        %vm854 = vcmp.lt.f32.partialorder %v783, %v832
        %vm855 = vcmp.lt.f32.partialorder %v698, %v833
        %vm856 = vcmp.lt.f32.partialorder %v784, %v832
        %vm857 = vcmp.lt.f32.partialorder %v699, %v833
        %vm858 = vcmp.lt.f32.partialorder %v785, %v832
        %vm859 = vcmp.lt.f32.partialorder %v700, %v833
        %vm860 = vcmp.lt.f32.partialorder %v786, %v832
        %vm861 = vcmp.lt.f32.partialorder %v701, %v833
        %vm862 = vcmp.lt.f32.partialorder %v787, %v832
        %vm863 = vcmp.lt.f32.partialorder %v702, %v833
        %vm864 = vcmp.lt.f32.partialorder %v788, %v832
        %vm865 = vcmp.lt.f32.partialorder %v703, %v833
        %vm866 = vmand %vm796, %vm834
        %vm867 = vmand %vm797, %vm835
        %vm868 = vmand %vm798, %vm836
        %vm869 = vmand %vm799, %vm837
        %vm870 = vmand %vm800, %vm838
        %vm871 = vmand %vm801, %vm839
        %vm872 = vmand %vm802, %vm840
        %vm873 = vmand %vm803, %vm841
        %vm874 = vmand %vm804, %vm842
        %vm875 = vmand %vm805, %vm843
        %vm876 = vmand %vm806, %vm844
        %vm877 = vmand %vm807, %vm845
        %vm878 = vmand %vm808, %vm846
        %vm879 = vmand %vm809, %vm847
        %vm880 = vmand %vm810, %vm848
        %vm881 = vmand %vm811, %vm849
        %vm882 = vmand %vm812, %vm850
        %vm883 = vmand %vm813, %vm851
        %vm884 = vmand %vm814, %vm852
        %vm885 = vmand %vm815, %vm853
        %vm886 = vmand %vm816, %vm854
        %vm887 = vmand %vm817, %vm855
        %vm888 = vmand %vm818, %vm856
        %vm889 = vmand %vm819, %vm857
        %vm890 = vmand %vm820, %vm858
        %vm891 = vmand %vm821, %vm859
        %vm892 = vmand %vm822, %vm860
        %vm893 = vmand %vm823, %vm861
        %vm894 = vmand %vm824, %vm862
        %vm895 = vmand %vm825, %vm863
        %vm896 = vmand %vm826, %vm864
        %vm897 = vmand %vm827, %vm865
        %v898 = vsel %vm866, 1, 0
        %v899 = vsel %vm867, 1, 0
        %v900 = vsel %vm868, 1, 0
        %v901 = vsel %vm869, 1, 0
        %v902 = vsel %vm870, 1, 0
        %v903 = vsel %vm871, 1, 0
        %v904 = vsel %vm872, 1, 0
        %v905 = vsel %vm873, 1, 0
        %v906 = vsel %vm874, 1, 0
        %v907 = vsel %vm875, 1, 0
        %v908 = vsel %vm876, 1, 0
        %v909 = vsel %vm877, 1, 0
        %v910 = vsel %vm878, 1, 0
        %v911 = vsel %vm879, 1, 0
        %v912 = vsel %vm880, 1, 0
        %v913 = vsel %vm881, 1, 0
        %v914 = vsel %vm882, 1, 0
        %v915 = vsel %vm883, 1, 0
        %v916 = vsel %vm884, 1, 0
        %v917 = vsel %vm885, 1, 0
        %v918 = vsel %vm886, 1, 0
        %v919 = vsel %vm887, 1, 0
        %v920 = vsel %vm888, 1, 0
        %v921 = vsel %vm889, 1, 0
        %v922 = vsel %vm890, 1, 0
        %v923 = vsel %vm891, 1, 0
        %v924 = vsel %vm892, 1, 0
        %v925 = vsel %vm893, 1, 0
        %v926 = vsel %vm894, 1, 0
        %v927 = vsel %vm895, 1, 0
        %v928 = vsel %vm896, 1, 0
        %v929 = vsel %vm897, 1, 0
        %v930 = vcvt.s32.f32 %v898
        %v931 = vcvt.s32.f32 %v899
        %v932 = vcvt.s32.f32 %v900
        %v933 = vcvt.s32.f32 %v901
        %v934 = vcvt.s32.f32 %v902
        %v935 = vcvt.s32.f32 %v903
        %v936 = vcvt.s32.f32 %v904
        %v937 = vcvt.s32.f32 %v905
        %v938 = vcvt.s32.f32 %v906
        %v939 = vcvt.s32.f32 %v907
        %v940 = vcvt.s32.f32 %v908
        %v941 = vcvt.s32.f32 %v909
        %v942 = vcvt.s32.f32 %v910
        %v943 = vcvt.s32.f32 %v911
        %v944 = vcvt.s32.f32 %v912
        %v945 = vcvt.s32.f32 %v913
        %v946 = vcvt.s32.f32 %v914
        %v947 = vcvt.s32.f32 %v915
        %v948 = vcvt.s32.f32 %v916
        %v949 = vcvt.s32.f32 %v917
        %v950 = vcvt.s32.f32 %v918
        %v951 = vcvt.s32.f32 %v919
        %v952 = vcvt.s32.f32 %v920
        %v953 = vcvt.s32.f32 %v921
        %v954 = vcvt.s32.f32 %v922
        %v955 = vcvt.s32.f32 %v923
        %v956 = vcvt.s32.f32 %v924
        %v957 = vcvt.s32.f32 %v925
        %v958 = vcvt.s32.f32 %v926
        %v959 = vcvt.s32.f32 %v927
        %v960 = vcvt.s32.f32 %v928
        %v961 = vcvt.s32.f32 %v929
        %v962 = vperm.slane %v297, 0
        %v963 = vperm.slane %v298, 0
        %v964 = vsub.f32 %v773, %v962
        %v965 = vsub.f32 %v688, %v963
        %v966 = vsub.f32 %v774, %v962
        %v967 = vsub.f32 %v689, %v963
        %v968 = vsub.f32 %v775, %v962
        %v969 = vsub.f32 %v690, %v963
        %v970 = vsub.f32 %v776, %v962
        %v971 = vsub.f32 %v691, %v963
        %v972 = vsub.f32 %v777, %v962
        %v973 = vsub.f32 %v692, %v963
        %v974 = vsub.f32 %v778, %v962
        %v975 = vsub.f32 %v693, %v963
        %v976 = vsub.f32 %v779, %v962
        %v977 = vsub.f32 %v694, %v963
        %v978 = vsub.f32 %v780, %v962
        %v979 = vsub.f32 %v695, %v963
        %v980 = vsub.f32 %v781, %v962
        %v981 = vsub.f32 %v696, %v963
        %v982 = vsub.f32 %v782, %v962
        %v983 = vsub.f32 %v697, %v963
        %v984 = vsub.f32 %v783, %v962
        %v985 = vsub.f32 %v698, %v963
        %v986 = vsub.f32 %v784, %v962
        %v987 = vsub.f32 %v699, %v963
        %v988 = vsub.f32 %v785, %v962
        %v989 = vsub.f32 %v700, %v963
        %v990 = vsub.f32 %v786, %v962
        %v991 = vsub.f32 %v701, %v963
        %v992 = vsub.f32 %v787, %v962
        %v993 = vsub.f32 %v702, %v963
        %v994 = vsub.f32 %v788, %v962
        %v995 = vsub.f32 %v703, %v963
        %v996 = vperm.slane %v297, 2
        %v997 = vperm.slane %v298, 2
        %v998 = vmul.f32 %v964, %v996
        %v999 = vmul.f32 %v965, %v997
        %v1000 = vmul.f32 %v966, %v996
        %v1001 = vmul.f32 %v967, %v997
        %v1002 = vmul.f32 %v968, %v996
        %v1003 = vmul.f32 %v969, %v997
        %v1004 = vmul.f32 %v970, %v996
        %v1005 = vmul.f32 %v971, %v997
        %v1006 = vmul.f32 %v972, %v996
        %v1007 = vmul.f32 %v973, %v997
        %v1008 = vmul.f32 %v974, %v996
        %v1009 = vmul.f32 %v975, %v997
        %v1010 = vmul.f32 %v976, %v996
        %v1011 = vmul.f32 %v977, %v997
        %v1012 = vmul.f32 %v978, %v996
        %v1013 = vmul.f32 %v979, %v997
        %v1014 = vmul.f32 %v980, %v996
        %v1015 = vmul.f32 %v981, %v997
        %v1016 = vmul.f32 %v982, %v996
        %v1017 = vmul.f32 %v983, %v997
        %v1018 = vmul.f32 %v984, %v996
        %v1019 = vmul.f32 %v985, %v997
        %v1020 = vmul.f32 %v986, %v996
        %v1021 = vmul.f32 %v987, %v997
        %v1022 = vmul.f32 %v988, %v996
        %v1023 = vmul.f32 %v989, %v997
        %v1024 = vmul.f32 %v990, %v996
        %v1025 = vmul.f32 %v991, %v997
        %v1026 = vmul.f32 %v992, %v996
        %v1027 = vmul.f32 %v993, %v997
        %v1028 = vmul.f32 %v994, %v996
        %v1029 = vmul.f32 %v995, %v997
        %v1030 = vmul.f32 %v998, %v930
        %v1031 = vmul.f32 %v999, %v931
        %v1032 = vmul.f32 %v1000, %v932
        %v1033 = vmul.f32 %v1001, %v933
        %v1034 = vmul.f32 %v1002, %v934
        %v1035 = vmul.f32 %v1003, %v935
        %v1036 = vmul.f32 %v1004, %v936
        %v1037 = vmul.f32 %v1005, %v937
        %v1038 = vmul.f32 %v1006, %v938
        %v1039 = vmul.f32 %v1007, %v939
        %v1040 = vmul.f32 %v1008, %v940
        %v1041 = vmul.f32 %v1009, %v941
        %v1042 = vmul.f32 %v1010, %v942
        %v1043 = vmul.f32 %v1011, %v943
        %v1044 = vmul.f32 %v1012, %v944
        %v1045 = vmul.f32 %v1013, %v945
        %v1046 = vmul.f32 %v1014, %v946
        %v1047 = vmul.f32 %v1015, %v947
        %v1048 = vmul.f32 %v1016, %v948
        %v1049 = vmul.f32 %v1017, %v949
        %v1050 = vmul.f32 %v1018, %v950
        %v1051 = vmul.f32 %v1019, %v951
        %v1052 = vmul.f32 %v1020, %v952
        %v1053 = vmul.f32 %v1021, %v953
        %v1054 = vmul.f32 %v1022, %v954
        %v1055 = vmul.f32 %v1023, %v955
        %v1056 = vmul.f32 %v1024, %v956
        %v1057 = vmul.f32 %v1025, %v957
        %v1058 = vmul.f32 %v1026, %v958
        %v1059 = vmul.f32 %v1027, %v959
        %v1060 = vmul.f32 %v1028, %v960
        %v1061 = vmul.f32 %v1029, %v961
        %v1062 = vperm.slane %v297, 1
        %v1063 = vperm.slane %v298, 1
        %v1064 = vsub.f32 %v1062, %v773
        %v1065 = vsub.f32 %v1063, %v688
        %v1066 = vsub.f32 %v1062, %v774
        %v1067 = vsub.f32 %v1063, %v689
        %v1068 = vsub.f32 %v1062, %v775
        %v1069 = vsub.f32 %v1063, %v690
        %v1070 = vsub.f32 %v1062, %v776
        %v1071 = vsub.f32 %v1063, %v691
        %v1072 = vsub.f32 %v1062, %v777
        %v1073 = vsub.f32 %v1063, %v692
        %v1074 = vsub.f32 %v1062, %v778
        %v1075 = vsub.f32 %v1063, %v693
        %v1076 = vsub.f32 %v1062, %v779
        %v1077 = vsub.f32 %v1063, %v694
        %v1078 = vsub.f32 %v1062, %v780
        %v1079 = vsub.f32 %v1063, %v695
        %v1080 = vsub.f32 %v1062, %v781
        %v1081 = vsub.f32 %v1063, %v696
        %v1082 = vsub.f32 %v1062, %v782
        %v1083 = vsub.f32 %v1063, %v697
        %v1084 = vsub.f32 %v1062, %v783
        %v1085 = vsub.f32 %v1063, %v698
        %v1086 = vsub.f32 %v1062, %v784
        %v1087 = vsub.f32 %v1063, %v699
        %v1088 = vsub.f32 %v1062, %v785
        %v1089 = vsub.f32 %v1063, %v700
        %v1090 = vsub.f32 %v1062, %v786
        %v1091 = vsub.f32 %v1063, %v701
        %v1092 = vsub.f32 %v1062, %v787
        %v1093 = vsub.f32 %v1063, %v702
        %v1094 = vsub.f32 %v1062, %v788
        %v1095 = vsub.f32 %v1063, %v703
        %v1096 = vperm.slane %v297, 3
        %v1097 = vperm.slane %v298, 3
        %v1098 = vmul.f32 %v1064, %v1096
        %v1099 = vmul.f32 %v1065, %v1097
        %v1100 = vmul.f32 %v1066, %v1096
        %v1101 = vmul.f32 %v1067, %v1097
        %v1102 = vmul.f32 %v1068, %v1096
        %v1103 = vmul.f32 %v1069, %v1097
        %v1104 = vmul.f32 %v1070, %v1096
        %v1105 = vmul.f32 %v1071, %v1097
        %v1106 = vmul.f32 %v1072, %v1096
        %v1107 = vmul.f32 %v1073, %v1097
        %v1108 = vmul.f32 %v1074, %v1096
        %v1109 = vmul.f32 %v1075, %v1097
        %v1110 = vmul.f32 %v1076, %v1096
        %v1111 = vmul.f32 %v1077, %v1097
        %v1112 = vmul.f32 %v1078, %v1096
        %v1113 = vmul.f32 %v1079, %v1097
        %v1114 = vmul.f32 %v1080, %v1096
        %v1115 = vmul.f32 %v1081, %v1097
        %v1116 = vmul.f32 %v1082, %v1096
        %v1117 = vmul.f32 %v1083, %v1097
        %v1118 = vmul.f32 %v1084, %v1096
        %v1119 = vmul.f32 %v1085, %v1097
        %v1120 = vmul.f32 %v1086, %v1096
        %v1121 = vmul.f32 %v1087, %v1097
        %v1122 = vmul.f32 %v1088, %v1096
        %v1123 = vmul.f32 %v1089, %v1097
        %v1124 = vmul.f32 %v1090, %v1096
        %v1125 = vmul.f32 %v1091, %v1097
        %v1126 = vmul.f32 %v1092, %v1096
        %v1127 = vmul.f32 %v1093, %v1097
        %v1128 = vmul.f32 %v1094, %v1096
        %v1129 = vmul.f32 %v1095, %v1097
        %1162 = vrot.lane.b32.xlu0 %v930, 112
        %v1163 = vpop.permute.xlu0 %1162
        %1164 = vrot.lane.b32.xlu0 %v931, 112
        %v1165 = vpop.permute.xlu0 %1164
        %1166 = vrot.lane.b32.xlu0 %v932, 112
        %v1167 = vpop.permute.xlu0 %1166
        %1168 = vrot.lane.b32.xlu0 %v933, 112
        %v1169 = vpop.permute.xlu0 %1168
        %1170 = vrot.lane.b32.xlu0 %v934, 112
        %v1171 = vpop.permute.xlu0 %1170
        %1172 = vrot.lane.b32.xlu0 %v935, 112
        %v1173 = vpop.permute.xlu0 %1172
        %1174 = vrot.lane.b32.xlu0 %v936, 112
        %v1175 = vpop.permute.xlu0 %1174
        %1176 = vrot.lane.b32.xlu0 %v937, 112
        %v1177 = vpop.permute.xlu0 %1176
        %1178 = vrot.lane.b32.xlu0 %v938, 112
        %v1179 = vpop.permute.xlu0 %1178
        %1180 = vrot.lane.b32.xlu0 %v939, 112
        %v1181 = vpop.permute.xlu0 %1180
        %1182 = vrot.lane.b32.xlu0 %v940, 112
        %v1183 = vpop.permute.xlu0 %1182
        %1184 = vrot.lane.b32.xlu0 %v941, 112
        %v1185 = vpop.permute.xlu0 %1184
        %1186 = vrot.lane.b32.xlu0 %v942, 112
        %v1187 = vpop.permute.xlu0 %1186
        %1188 = vrot.lane.b32.xlu0 %v943, 112
        %v1189 = vpop.permute.xlu0 %1188
        %1190 = vrot.lane.b32.xlu0 %v944, 112
        %v1191 = vpop.permute.xlu0 %1190
        %1192 = vrot.lane.b32.xlu0 %v945, 112
        %v1193 = vpop.permute.xlu0 %1192
        %1194 = vrot.lane.b32.xlu0 %v946, 112
        %v1195 = vpop.permute.xlu0 %1194
        %1196 = vrot.lane.b32.xlu0 %v947, 112
        %v1197 = vpop.permute.xlu0 %1196
        %1198 = vrot.lane.b32.xlu0 %v948, 112
        %v1199 = vpop.permute.xlu0 %1198
        %1200 = vrot.lane.b32.xlu0 %v949, 112
        %v1201 = vpop.permute.xlu0 %1200
        %1202 = vrot.lane.b32.xlu0 %v950, 112
        %v1203 = vpop.permute.xlu0 %1202
        %1204 = vrot.lane.b32.xlu0 %v951, 112
        %v1205 = vpop.permute.xlu0 %1204
        %1206 = vrot.lane.b32.xlu0 %v952, 112
        %v1207 = vpop.permute.xlu0 %1206
        %1208 = vrot.lane.b32.xlu0 %v953, 112
        %v1209 = vpop.permute.xlu0 %1208
        %1210 = vrot.lane.b32.xlu0 %v954, 112
        %v1211 = vpop.permute.xlu0 %1210
        %1212 = vrot.lane.b32.xlu0 %v955, 112
        %v1213 = vpop.permute.xlu0 %1212
        %1214 = vrot.lane.b32.xlu0 %v956, 112
        %v1215 = vpop.permute.xlu0 %1214
        %1216 = vrot.lane.b32.xlu0 %v957, 112
        %v1217 = vpop.permute.xlu0 %1216
        %1218 = vrot.lane.b32.xlu0 %v958, 112
        %v1219 = vpop.permute.xlu0 %1218
        %1220 = vrot.lane.b32.xlu0 %v959, 112
        %v1221 = vpop.permute.xlu0 %1220
        %1222 = vrot.lane.b32.xlu0 %v960, 112
        %v1223 = vpop.permute.xlu0 %1222
        %1224 = vrot.lane.b32.xlu0 %v961, 112
        %v1225 = vpop.permute.xlu0 %1224
        %v1226 = vsel %vm772, %v1163, %v1165
        %v1227 = vsel %vm772, %v1167, %v1169
        %v1228 = vsel %vm772, %v1171, %v1173
        %v1229 = vsel %vm772, %v1175, %v1177
        %v1230 = vsel %vm772, %v1179, %v1181
        %v1231 = vsel %vm772, %v1183, %v1185
        %v1232 = vsel %vm772, %v1187, %v1189
        %v1233 = vsel %vm772, %v1191, %v1193
        %v1234 = vsel %vm772, %v1195, %v1197
        %v1235 = vsel %vm772, %v1199, %v1201
        %v1236 = vsel %vm772, %v1203, %v1205
        %v1237 = vsel %vm772, %v1207, %v1209
        %v1238 = vsel %vm772, %v1211, %v1213
        %v1239 = vsel %vm772, %v1215, %v1217
        %v1240 = vsel %vm772, %v1219, %v1221
        %v1241 = vsel %vm772, %v1223, %v1225
        %v1274 = vmul.f32 %v1098, %v1226
        %v1275 = vmul.f32 %v1099, %v1165
        %v1276 = vmul.f32 %v1100, %v1227
        %v1277 = vmul.f32 %v1101, %v1169
        %v1278 = vmul.f32 %v1102, %v1228
        %v1279 = vmul.f32 %v1103, %v1173
        %v1280 = vmul.f32 %v1104, %v1229
        %v1281 = vmul.f32 %v1105, %v1177
        %v1282 = vmul.f32 %v1106, %v1230
        %v1283 = vmul.f32 %v1107, %v1181
        %v1284 = vmul.f32 %v1108, %v1231
        %v1285 = vmul.f32 %v1109, %v1185
        %v1286 = vmul.f32 %v1110, %v1232
        %v1287 = vmul.f32 %v1111, %v1189
        %v1288 = vmul.f32 %v1112, %v1233
        %v1289 = vmul.f32 %v1113, %v1193
        %v1290 = vmul.f32 %v1114, %v1234
        %v1291 = vmul.f32 %v1115, %v1197
        %v1292 = vmul.f32 %v1116, %v1235
        %v1293 = vmul.f32 %v1117, %v1201
        %v1294 = vmul.f32 %v1118, %v1236
        %v1295 = vmul.f32 %v1119, %v1205
        %v1296 = vmul.f32 %v1120, %v1237
        %v1297 = vmul.f32 %v1121, %v1209
        %v1298 = vmul.f32 %v1122, %v1238
        %v1299 = vmul.f32 %v1123, %v1213
        %v1300 = vmul.f32 %v1124, %v1239
        %v1301 = vmul.f32 %v1125, %v1217
        %v1302 = vmul.f32 %v1126, %v1240
        %v1303 = vmul.f32 %v1127, %v1221
        %v1304 = vmul.f32 %v1128, %v1241
        %v1305 = vmul.f32 %v1129, %v1225
        %v1306 = vadd.f32 %v1030, %v1274
        %v1307 = vadd.f32 %v1031, %v1275
        %v1308 = vadd.f32 %v1032, %v1276
        %v1309 = vadd.f32 %v1033, %v1277
        %v1310 = vadd.f32 %v1034, %v1278
        %v1311 = vadd.f32 %v1035, %v1279
        %v1312 = vadd.f32 %v1036, %v1280
        %v1313 = vadd.f32 %v1037, %v1281
        %v1314 = vadd.f32 %v1038, %v1282
        %v1315 = vadd.f32 %v1039, %v1283
        %v1316 = vadd.f32 %v1040, %v1284
        %v1317 = vadd.f32 %v1041, %v1285
        %v1318 = vadd.f32 %v1042, %v1286
        %v1319 = vadd.f32 %v1043, %v1287
        %v1320 = vadd.f32 %v1044, %v1288
        %v1321 = vadd.f32 %v1045, %v1289
        %v1322 = vadd.f32 %v1046, %v1290
        %v1323 = vadd.f32 %v1047, %v1291
        %v1324 = vadd.f32 %v1048, %v1292
        %v1325 = vadd.f32 %v1049, %v1293
        %v1326 = vadd.f32 %v1050, %v1294
        %v1327 = vadd.f32 %v1051, %v1295
        %v1328 = vadd.f32 %v1052, %v1296
        %v1329 = vadd.f32 %v1053, %v1297
        %v1330 = vadd.f32 %v1054, %v1298
        %v1331 = vadd.f32 %v1055, %v1299
        %v1332 = vadd.f32 %v1056, %v1300
        %v1333 = vadd.f32 %v1057, %v1301
        %v1334 = vadd.f32 %v1058, %v1302
        %v1335 = vadd.f32 %v1059, %v1303
        %v1336 = vadd.f32 %v1060, %v1304
        %v1337 = vadd.f32 %v1061, %v1305
        %v1338 = vperm.slane %v297, 4
        %v1339 = vperm.slane %v298, 4
        %v1340 = vsub.f32 %v773, %v1338
        %v1341 = vsub.f32 %v688, %v1339
        %v1342 = vsub.f32 %v774, %v1338
        %v1343 = vsub.f32 %v689, %v1339
        %v1344 = vsub.f32 %v775, %v1338
        %v1345 = vsub.f32 %v690, %v1339
        %v1346 = vsub.f32 %v776, %v1338
        %v1347 = vsub.f32 %v691, %v1339
        %v1348 = vsub.f32 %v777, %v1338
        %v1349 = vsub.f32 %v692, %v1339
        %v1350 = vsub.f32 %v778, %v1338
        %v1351 = vsub.f32 %v693, %v1339
        %v1352 = vsub.f32 %v779, %v1338
        %v1353 = vsub.f32 %v694, %v1339
        %v1354 = vsub.f32 %v780, %v1338
        %v1355 = vsub.f32 %v695, %v1339
        %v1356 = vsub.f32 %v781, %v1338
        %v1357 = vsub.f32 %v696, %v1339
        %v1358 = vsub.f32 %v782, %v1338
        %v1359 = vsub.f32 %v697, %v1339
        %v1360 = vsub.f32 %v783, %v1338
        %v1361 = vsub.f32 %v698, %v1339
        %v1362 = vsub.f32 %v784, %v1338
        %v1363 = vsub.f32 %v699, %v1339
        %v1364 = vsub.f32 %v785, %v1338
        %v1365 = vsub.f32 %v700, %v1339
        %v1366 = vsub.f32 %v786, %v1338
        %v1367 = vsub.f32 %v701, %v1339
        %v1368 = vsub.f32 %v787, %v1338
        %v1369 = vsub.f32 %v702, %v1339
        %v1370 = vsub.f32 %v788, %v1338
        %v1371 = vsub.f32 %v703, %v1339
        %v1372 = vperm.slane %v297, 6
        %v1373 = vperm.slane %v298, 6
        %v1374 = vmul.f32 %v1340, %v1372
        %v1375 = vmul.f32 %v1341, %v1373
        %v1376 = vmul.f32 %v1342, %v1372
        %v1377 = vmul.f32 %v1343, %v1373
        %v1378 = vmul.f32 %v1344, %v1372
        %v1379 = vmul.f32 %v1345, %v1373
        %v1380 = vmul.f32 %v1346, %v1372
        %v1381 = vmul.f32 %v1347, %v1373
        %v1382 = vmul.f32 %v1348, %v1372
        %v1383 = vmul.f32 %v1349, %v1373
        %v1384 = vmul.f32 %v1350, %v1372
        %v1385 = vmul.f32 %v1351, %v1373
        %v1386 = vmul.f32 %v1352, %v1372
        %v1387 = vmul.f32 %v1353, %v1373
        %v1388 = vmul.f32 %v1354, %v1372
        %v1389 = vmul.f32 %v1355, %v1373
        %v1390 = vmul.f32 %v1356, %v1372
        %v1391 = vmul.f32 %v1357, %v1373
        %v1392 = vmul.f32 %v1358, %v1372
        %v1393 = vmul.f32 %v1359, %v1373
        %v1394 = vmul.f32 %v1360, %v1372
        %v1395 = vmul.f32 %v1361, %v1373
        %v1396 = vmul.f32 %v1362, %v1372
        %v1397 = vmul.f32 %v1363, %v1373
        %v1398 = vmul.f32 %v1364, %v1372
        %v1399 = vmul.f32 %v1365, %v1373
        %v1400 = vmul.f32 %v1366, %v1372
        %v1401 = vmul.f32 %v1367, %v1373
        %v1402 = vmul.f32 %v1368, %v1372
        %v1403 = vmul.f32 %v1369, %v1373
        %v1404 = vmul.f32 %v1370, %v1372
        %v1405 = vmul.f32 %v1371, %v1373
        %v1406 = vmul.f32 %v1374, %v1306
        %v1407 = vmul.f32 %v1375, %v1307
        %v1408 = vmul.f32 %v1376, %v1308
        %v1409 = vmul.f32 %v1377, %v1309
        %v1410 = vmul.f32 %v1378, %v1310
        %v1411 = vmul.f32 %v1379, %v1311
        %v1412 = vmul.f32 %v1380, %v1312
        %v1413 = vmul.f32 %v1381, %v1313
        %v1414 = vmul.f32 %v1382, %v1314
        %v1415 = vmul.f32 %v1383, %v1315
        %v1416 = vmul.f32 %v1384, %v1316
        %v1417 = vmul.f32 %v1385, %v1317
        %v1418 = vmul.f32 %v1386, %v1318
        %v1419 = vmul.f32 %v1387, %v1319
        %v1420 = vmul.f32 %v1388, %v1320
        %v1421 = vmul.f32 %v1389, %v1321
        %v1422 = vmul.f32 %v1390, %v1322
        %v1423 = vmul.f32 %v1391, %v1323
        %v1424 = vmul.f32 %v1392, %v1324
        %v1425 = vmul.f32 %v1393, %v1325
        %v1426 = vmul.f32 %v1394, %v1326
        %v1427 = vmul.f32 %v1395, %v1327
        %v1428 = vmul.f32 %v1396, %v1328
        %v1429 = vmul.f32 %v1397, %v1329
        %v1430 = vmul.f32 %v1398, %v1330
        %v1431 = vmul.f32 %v1399, %v1331
        %v1432 = vmul.f32 %v1400, %v1332
        %v1433 = vmul.f32 %v1401, %v1333
        %v1434 = vmul.f32 %v1402, %v1334
        %v1435 = vmul.f32 %v1403, %v1335
        %v1436 = vmul.f32 %v1404, %v1336
        %v1437 = vmul.f32 %v1405, %v1337
        %v1438 = vperm.slane %v297, 5
        %v1439 = vperm.slane %v298, 5
        %v1440 = vsub.f32 %v1438, %v773
        %v1441 = vsub.f32 %v1439, %v688
        %v1442 = vsub.f32 %v1438, %v774
        %v1443 = vsub.f32 %v1439, %v689
        %v1444 = vsub.f32 %v1438, %v775
        %v1445 = vsub.f32 %v1439, %v690
        %v1446 = vsub.f32 %v1438, %v776
        %v1447 = vsub.f32 %v1439, %v691
        %v1448 = vsub.f32 %v1438, %v777
        %v1449 = vsub.f32 %v1439, %v692
        %v1450 = vsub.f32 %v1438, %v778
        %v1451 = vsub.f32 %v1439, %v693
        %v1452 = vsub.f32 %v1438, %v779
        %v1453 = vsub.f32 %v1439, %v694
        %v1454 = vsub.f32 %v1438, %v780
        %v1455 = vsub.f32 %v1439, %v695
        %v1456 = vsub.f32 %v1438, %v781
        %v1457 = vsub.f32 %v1439, %v696
        %v1458 = vsub.f32 %v1438, %v782
        %v1459 = vsub.f32 %v1439, %v697
        %v1460 = vsub.f32 %v1438, %v783
        %v1461 = vsub.f32 %v1439, %v698
        %v1462 = vsub.f32 %v1438, %v784
        %v1463 = vsub.f32 %v1439, %v699
        %v1464 = vsub.f32 %v1438, %v785
        %v1465 = vsub.f32 %v1439, %v700
        %v1466 = vsub.f32 %v1438, %v786
        %v1467 = vsub.f32 %v1439, %v701
        %v1468 = vsub.f32 %v1438, %v787
        %v1469 = vsub.f32 %v1439, %v702
        %v1470 = vsub.f32 %v1438, %v788
        %v1471 = vsub.f32 %v1439, %v703
        %v1472 = vperm.slane %v297, 7
        %v1473 = vperm.slane %v298, 7
        %v1474 = vmul.f32 %v1440, %v1472
        %v1475 = vmul.f32 %v1441, %v1473
        %v1476 = vmul.f32 %v1442, %v1472
        %v1477 = vmul.f32 %v1443, %v1473
        %v1478 = vmul.f32 %v1444, %v1472
        %v1479 = vmul.f32 %v1445, %v1473
        %v1480 = vmul.f32 %v1446, %v1472
        %v1481 = vmul.f32 %v1447, %v1473
        %v1482 = vmul.f32 %v1448, %v1472
        %v1483 = vmul.f32 %v1449, %v1473
        %v1484 = vmul.f32 %v1450, %v1472
        %v1485 = vmul.f32 %v1451, %v1473
        %v1486 = vmul.f32 %v1452, %v1472
        %v1487 = vmul.f32 %v1453, %v1473
        %v1488 = vmul.f32 %v1454, %v1472
        %v1489 = vmul.f32 %v1455, %v1473
        %v1490 = vmul.f32 %v1456, %v1472
        %v1491 = vmul.f32 %v1457, %v1473
        %v1492 = vmul.f32 %v1458, %v1472
        %v1493 = vmul.f32 %v1459, %v1473
        %v1494 = vmul.f32 %v1460, %v1472
        %v1495 = vmul.f32 %v1461, %v1473
        %v1496 = vmul.f32 %v1462, %v1472
        %v1497 = vmul.f32 %v1463, %v1473
        %v1498 = vmul.f32 %v1464, %v1472
        %v1499 = vmul.f32 %v1465, %v1473
        %v1500 = vmul.f32 %v1466, %v1472
        %v1501 = vmul.f32 %v1467, %v1473
        %v1502 = vmul.f32 %v1468, %v1472
        %v1503 = vmul.f32 %v1469, %v1473
        %v1504 = vmul.f32 %v1470, %v1472
        %v1505 = vmul.f32 %v1471, %v1473
        %1538 = vrot.lane.b32.xlu0 %v1306, 112
        %v1539 = vpop.permute.xlu0 %1538
        %1540 = vrot.lane.b32.xlu0 %v1307, 112
        %v1541 = vpop.permute.xlu0 %1540
        %1542 = vrot.lane.b32.xlu0 %v1308, 112
        %v1543 = vpop.permute.xlu0 %1542
        %1544 = vrot.lane.b32.xlu0 %v1309, 112
        %v1545 = vpop.permute.xlu0 %1544
        %1546 = vrot.lane.b32.xlu0 %v1310, 112
        %v1547 = vpop.permute.xlu0 %1546
        %1548 = vrot.lane.b32.xlu0 %v1311, 112
        %v1549 = vpop.permute.xlu0 %1548
        %1550 = vrot.lane.b32.xlu0 %v1312, 112
        %v1551 = vpop.permute.xlu0 %1550
        %1552 = vrot.lane.b32.xlu0 %v1313, 112
        %v1553 = vpop.permute.xlu0 %1552
        %1554 = vrot.lane.b32.xlu0 %v1314, 112
        %v1555 = vpop.permute.xlu0 %1554
        %1556 = vrot.lane.b32.xlu0 %v1315, 112
        %v1557 = vpop.permute.xlu0 %1556
        %1558 = vrot.lane.b32.xlu0 %v1316, 112
        %v1559 = vpop.permute.xlu0 %1558
        %1560 = vrot.lane.b32.xlu0 %v1317, 112
        %v1561 = vpop.permute.xlu0 %1560
        %1562 = vrot.lane.b32.xlu0 %v1318, 112
        %v1563 = vpop.permute.xlu0 %1562
        %1564 = vrot.lane.b32.xlu0 %v1319, 112
        %v1565 = vpop.permute.xlu0 %1564
        %1566 = vrot.lane.b32.xlu0 %v1320, 112
        %v1567 = vpop.permute.xlu0 %1566
        %1568 = vrot.lane.b32.xlu0 %v1321, 112
        %v1569 = vpop.permute.xlu0 %1568
        %1570 = vrot.lane.b32.xlu0 %v1322, 112
        %v1571 = vpop.permute.xlu0 %1570
        %1572 = vrot.lane.b32.xlu0 %v1323, 112
        %v1573 = vpop.permute.xlu0 %1572
        %1574 = vrot.lane.b32.xlu0 %v1324, 112
        %v1575 = vpop.permute.xlu0 %1574
        %1576 = vrot.lane.b32.xlu0 %v1325, 112
        %v1577 = vpop.permute.xlu0 %1576
        %1578 = vrot.lane.b32.xlu0 %v1326, 112
        %v1579 = vpop.permute.xlu0 %1578
        %1580 = vrot.lane.b32.xlu0 %v1327, 112
        %v1581 = vpop.permute.xlu0 %1580
        %1582 = vrot.lane.b32.xlu0 %v1328, 112
        %v1583 = vpop.permute.xlu0 %1582
        %1584 = vrot.lane.b32.xlu0 %v1329, 112
        %v1585 = vpop.permute.xlu0 %1584
        %1586 = vrot.lane.b32.xlu0 %v1330, 112
        %v1587 = vpop.permute.xlu0 %1586
        %1588 = vrot.lane.b32.xlu0 %v1331, 112
        %v1589 = vpop.permute.xlu0 %1588
        %1590 = vrot.lane.b32.xlu0 %v1332, 112
        %v1591 = vpop.permute.xlu0 %1590
        %1592 = vrot.lane.b32.xlu0 %v1333, 112
        %v1593 = vpop.permute.xlu0 %1592
        %1594 = vrot.lane.b32.xlu0 %v1334, 112
        %v1595 = vpop.permute.xlu0 %1594
        %1596 = vrot.lane.b32.xlu0 %v1335, 112
        %v1597 = vpop.permute.xlu0 %1596
        %1598 = vrot.lane.b32.xlu0 %v1336, 112
        %v1599 = vpop.permute.xlu0 %1598
        %1600 = vrot.lane.b32.xlu0 %v1337, 112
        %v1601 = vpop.permute.xlu0 %1600
        %v1602 = vsel %vm772, %v1539, %v1541
        %v1603 = vsel %vm772, %v1543, %v1545
        %v1604 = vsel %vm772, %v1547, %v1549
        %v1605 = vsel %vm772, %v1551, %v1553
        %v1606 = vsel %vm772, %v1555, %v1557
        %v1607 = vsel %vm772, %v1559, %v1561
        %v1608 = vsel %vm772, %v1563, %v1565
        %v1609 = vsel %vm772, %v1567, %v1569
        %v1610 = vsel %vm772, %v1571, %v1573
        %v1611 = vsel %vm772, %v1575, %v1577
        %v1612 = vsel %vm772, %v1579, %v1581
        %v1613 = vsel %vm772, %v1583, %v1585
        %v1614 = vsel %vm772, %v1587, %v1589
        %v1615 = vsel %vm772, %v1591, %v1593
        %v1616 = vsel %vm772, %v1595, %v1597
        %v1617 = vsel %vm772, %v1599, %v1601
        %v1650 = vmul.f32 %v1474, %v1602
        %v1651 = vmul.f32 %v1475, %v1541
        %v1652 = vmul.f32 %v1476, %v1603
        %v1653 = vmul.f32 %v1477, %v1545
        %v1654 = vmul.f32 %v1478, %v1604
        %v1655 = vmul.f32 %v1479, %v1549
        %v1656 = vmul.f32 %v1480, %v1605
        %v1657 = vmul.f32 %v1481, %v1553
        %v1658 = vmul.f32 %v1482, %v1606
        %v1659 = vmul.f32 %v1483, %v1557
        %v1660 = vmul.f32 %v1484, %v1607
        %v1661 = vmul.f32 %v1485, %v1561
        %v1662 = vmul.f32 %v1486, %v1608
        %v1663 = vmul.f32 %v1487, %v1565
        %v1664 = vmul.f32 %v1488, %v1609
        %v1665 = vmul.f32 %v1489, %v1569
        %v1666 = vmul.f32 %v1490, %v1610
        %v1667 = vmul.f32 %v1491, %v1573
        %v1668 = vmul.f32 %v1492, %v1611
        %v1669 = vmul.f32 %v1493, %v1577
        %v1670 = vmul.f32 %v1494, %v1612
        %v1671 = vmul.f32 %v1495, %v1581
        %v1672 = vmul.f32 %v1496, %v1613
        %v1673 = vmul.f32 %v1497, %v1585
        %v1674 = vmul.f32 %v1498, %v1614
        %v1675 = vmul.f32 %v1499, %v1589
        %v1676 = vmul.f32 %v1500, %v1615
        %v1677 = vmul.f32 %v1501, %v1593
        %v1678 = vmul.f32 %v1502, %v1616
        %v1679 = vmul.f32 %v1503, %v1597
        %v1680 = vmul.f32 %v1504, %v1617
        %v1681 = vmul.f32 %v1505, %v1601
        %v1682 = vadd.f32 %v1406, %v1650
        %v1683 = vadd.f32 %v1407, %v1651
        %v1684 = vadd.f32 %v1408, %v1652
        %v1685 = vadd.f32 %v1409, %v1653
        %v1686 = vadd.f32 %v1410, %v1654
        %v1687 = vadd.f32 %v1411, %v1655
        %v1688 = vadd.f32 %v1412, %v1656
        %v1689 = vadd.f32 %v1413, %v1657
        %v1690 = vadd.f32 %v1414, %v1658
        %v1691 = vadd.f32 %v1415, %v1659
        %v1692 = vadd.f32 %v1416, %v1660
        %v1693 = vadd.f32 %v1417, %v1661
        %v1694 = vadd.f32 %v1418, %v1662
        %v1695 = vadd.f32 %v1419, %v1663
        %v1696 = vadd.f32 %v1420, %v1664
        %v1697 = vadd.f32 %v1421, %v1665
        %v1698 = vadd.f32 %v1422, %v1666
        %v1699 = vadd.f32 %v1423, %v1667
        %v1700 = vadd.f32 %v1424, %v1668
        %v1701 = vadd.f32 %v1425, %v1669
        %v1702 = vadd.f32 %v1426, %v1670
        %v1703 = vadd.f32 %v1427, %v1671
        %v1704 = vadd.f32 %v1428, %v1672
        %v1705 = vadd.f32 %v1429, %v1673
        %v1706 = vadd.f32 %v1430, %v1674
        %v1707 = vadd.f32 %v1431, %v1675
        %v1708 = vadd.f32 %v1432, %v1676
        %v1709 = vadd.f32 %v1433, %v1677
        %v1710 = vadd.f32 %v1434, %v1678
        %v1711 = vadd.f32 %v1435, %v1679
        %v1712 = vadd.f32 %v1436, %v1680
        %v1713 = vadd.f32 %v1437, %v1681
        %v1714 = vperm.slane %v299, 0
        %v1715 = vsub.f32 %v773, %v1714
        %v1716 = vsub.f32 %v774, %v1714
        %v1717 = vsub.f32 %v775, %v1714
        %v1718 = vsub.f32 %v776, %v1714
        %v1719 = vsub.f32 %v777, %v1714
        %v1720 = vsub.f32 %v778, %v1714
        %v1721 = vsub.f32 %v779, %v1714
        %v1722 = vsub.f32 %v780, %v1714
        %v1723 = vsub.f32 %v781, %v1714
        %v1724 = vsub.f32 %v782, %v1714
        %v1725 = vsub.f32 %v783, %v1714
        %v1726 = vsub.f32 %v784, %v1714
        %v1727 = vsub.f32 %v785, %v1714
        %v1728 = vsub.f32 %v786, %v1714
        %v1729 = vsub.f32 %v787, %v1714
        %v1730 = vsub.f32 %v788, %v1714
        %v1731 = vperm.slane %v299, 2
        %v1732 = vmul.f32 %v1715, %v1731
        %v1733 = vmul.f32 %v1716, %v1731
        %v1734 = vmul.f32 %v1717, %v1731
        %v1735 = vmul.f32 %v1718, %v1731
        %v1736 = vmul.f32 %v1719, %v1731
        %v1737 = vmul.f32 %v1720, %v1731
        %v1738 = vmul.f32 %v1721, %v1731
        %v1739 = vmul.f32 %v1722, %v1731
        %v1740 = vmul.f32 %v1723, %v1731
        %v1741 = vmul.f32 %v1724, %v1731
        %v1742 = vmul.f32 %v1725, %v1731
        %v1743 = vmul.f32 %v1726, %v1731
        %v1744 = vmul.f32 %v1727, %v1731
        %v1745 = vmul.f32 %v1728, %v1731
        %v1746 = vmul.f32 %v1729, %v1731
        %v1747 = vmul.f32 %v1730, %v1731
        %v1748 = vmul.f32 %v1732, %v1682
        %v1749 = vmul.f32 %v1733, %v1684
        %v1750 = vmul.f32 %v1734, %v1686
        %v1751 = vmul.f32 %v1735, %v1688
        %v1752 = vmul.f32 %v1736, %v1690
        %v1753 = vmul.f32 %v1737, %v1692
        %v1754 = vmul.f32 %v1738, %v1694
        %v1755 = vmul.f32 %v1739, %v1696
        %v1756 = vmul.f32 %v1740, %v1698
        %v1757 = vmul.f32 %v1741, %v1700
        %v1758 = vmul.f32 %v1742, %v1702
        %v1759 = vmul.f32 %v1743, %v1704
        %v1760 = vmul.f32 %v1744, %v1706
        %v1761 = vmul.f32 %v1745, %v1708
        %v1762 = vmul.f32 %v1746, %v1710
        %v1763 = vmul.f32 %v1747, %v1712
        %v1764 = vperm.slane %v299, 1
        %v1765 = vsub.f32 %v1764, %v773
        %v1766 = vsub.f32 %v1764, %v774
        %v1767 = vsub.f32 %v1764, %v775
        %v1768 = vsub.f32 %v1764, %v776
        %v1769 = vsub.f32 %v1764, %v777
        %v1770 = vsub.f32 %v1764, %v778
        %v1771 = vsub.f32 %v1764, %v779
        %v1772 = vsub.f32 %v1764, %v780
        %v1773 = vsub.f32 %v1764, %v781
        %v1774 = vsub.f32 %v1764, %v782
        %v1775 = vsub.f32 %v1764, %v783
        %v1776 = vsub.f32 %v1764, %v784
        %v1777 = vsub.f32 %v1764, %v785
        %v1778 = vsub.f32 %v1764, %v786
        %v1779 = vsub.f32 %v1764, %v787
        %v1780 = vsub.f32 %v1764, %v788
        %v1781 = vperm.slane %v299, 3
        %v1782 = vmul.f32 %v1765, %v1781
        %v1783 = vmul.f32 %v1766, %v1781
        %v1784 = vmul.f32 %v1767, %v1781
        %v1785 = vmul.f32 %v1768, %v1781
        %v1786 = vmul.f32 %v1769, %v1781
        %v1787 = vmul.f32 %v1770, %v1781
        %v1788 = vmul.f32 %v1771, %v1781
        %v1789 = vmul.f32 %v1772, %v1781
        %v1790 = vmul.f32 %v1773, %v1781
        %v1791 = vmul.f32 %v1774, %v1781
        %v1792 = vmul.f32 %v1775, %v1781
        %v1793 = vmul.f32 %v1776, %v1781
        %v1794 = vmul.f32 %v1777, %v1781
        %v1795 = vmul.f32 %v1778, %v1781
        %v1796 = vmul.f32 %v1779, %v1781
        %v1797 = vmul.f32 %v1780, %v1781
        %1830 = vrot.lane.b32.xlu0 %v1682, 112
        %v1831 = vpop.permute.xlu0 %1830
        %1832 = vrot.lane.b32.xlu0 %v1683, 112
        %v1833 = vpop.permute.xlu0 %1832
        %1834 = vrot.lane.b32.xlu0 %v1684, 112
        %v1835 = vpop.permute.xlu0 %1834
        %1836 = vrot.lane.b32.xlu0 %v1685, 112
        %v1837 = vpop.permute.xlu0 %1836
        %1838 = vrot.lane.b32.xlu0 %v1686, 112
        %v1839 = vpop.permute.xlu0 %1838
        %1840 = vrot.lane.b32.xlu0 %v1687, 112
        %v1841 = vpop.permute.xlu0 %1840
        %1842 = vrot.lane.b32.xlu0 %v1688, 112
        %v1843 = vpop.permute.xlu0 %1842
        %1844 = vrot.lane.b32.xlu0 %v1689, 112
        %v1845 = vpop.permute.xlu0 %1844
        %1846 = vrot.lane.b32.xlu0 %v1690, 112
        %v1847 = vpop.permute.xlu0 %1846
        %1848 = vrot.lane.b32.xlu0 %v1691, 112
        %v1849 = vpop.permute.xlu0 %1848
        %1850 = vrot.lane.b32.xlu0 %v1692, 112
        %v1851 = vpop.permute.xlu0 %1850
        %1852 = vrot.lane.b32.xlu0 %v1693, 112
        %v1853 = vpop.permute.xlu0 %1852
        %1854 = vrot.lane.b32.xlu0 %v1694, 112
        %v1855 = vpop.permute.xlu0 %1854
        %1856 = vrot.lane.b32.xlu0 %v1695, 112
        %v1857 = vpop.permute.xlu0 %1856
        %1858 = vrot.lane.b32.xlu0 %v1696, 112
        %v1859 = vpop.permute.xlu0 %1858
        %1860 = vrot.lane.b32.xlu0 %v1697, 112
        %v1861 = vpop.permute.xlu0 %1860
        %1862 = vrot.lane.b32.xlu0 %v1698, 112
        %v1863 = vpop.permute.xlu0 %1862
        %1864 = vrot.lane.b32.xlu0 %v1699, 112
        %v1865 = vpop.permute.xlu0 %1864
        %1866 = vrot.lane.b32.xlu0 %v1700, 112
        %v1867 = vpop.permute.xlu0 %1866
        %1868 = vrot.lane.b32.xlu0 %v1701, 112
        %v1869 = vpop.permute.xlu0 %1868
        %1870 = vrot.lane.b32.xlu0 %v1702, 112
        %v1871 = vpop.permute.xlu0 %1870
        %1872 = vrot.lane.b32.xlu0 %v1703, 112
        %v1873 = vpop.permute.xlu0 %1872
        %1874 = vrot.lane.b32.xlu0 %v1704, 112
        %v1875 = vpop.permute.xlu0 %1874
        %1876 = vrot.lane.b32.xlu0 %v1705, 112
        %v1877 = vpop.permute.xlu0 %1876
        %1878 = vrot.lane.b32.xlu0 %v1706, 112
        %v1879 = vpop.permute.xlu0 %1878
        %1880 = vrot.lane.b32.xlu0 %v1707, 112
        %v1881 = vpop.permute.xlu0 %1880
        %1882 = vrot.lane.b32.xlu0 %v1708, 112
        %v1883 = vpop.permute.xlu0 %1882
        %1884 = vrot.lane.b32.xlu0 %v1709, 112
        %v1885 = vpop.permute.xlu0 %1884
        %1886 = vrot.lane.b32.xlu0 %v1710, 112
        %v1887 = vpop.permute.xlu0 %1886
        %1888 = vrot.lane.b32.xlu0 %v1711, 112
        %v1889 = vpop.permute.xlu0 %1888
        %1890 = vrot.lane.b32.xlu0 %v1712, 112
        %v1891 = vpop.permute.xlu0 %1890
        %1892 = vrot.lane.b32.xlu0 %v1713, 112
        %v1893 = vpop.permute.xlu0 %1892
        %v1894 = vsel %vm772, %v1831, %v1833
        %v1895 = vsel %vm772, %v1835, %v1837
        %v1896 = vsel %vm772, %v1839, %v1841
        %v1897 = vsel %vm772, %v1843, %v1845
        %v1898 = vsel %vm772, %v1847, %v1849
        %v1899 = vsel %vm772, %v1851, %v1853
        %v1900 = vsel %vm772, %v1855, %v1857
        %v1901 = vsel %vm772, %v1859, %v1861
        %v1902 = vsel %vm772, %v1863, %v1865
        %v1903 = vsel %vm772, %v1867, %v1869
        %v1904 = vsel %vm772, %v1871, %v1873
        %v1905 = vsel %vm772, %v1875, %v1877
        %v1906 = vsel %vm772, %v1879, %v1881
        %v1907 = vsel %vm772, %v1883, %v1885
        %v1908 = vsel %vm772, %v1887, %v1889
        %v1909 = vsel %vm772, %v1891, %v1893
        %v1926 = vmul.f32 %v1782, %v1894
        %v1927 = vmul.f32 %v1783, %v1895
        %v1928 = vmul.f32 %v1784, %v1896
        %v1929 = vmul.f32 %v1785, %v1897
        %v1930 = vmul.f32 %v1786, %v1898
        %v1931 = vmul.f32 %v1787, %v1899
        %v1932 = vmul.f32 %v1788, %v1900
        %v1933 = vmul.f32 %v1789, %v1901
        %v1934 = vmul.f32 %v1790, %v1902
        %v1935 = vmul.f32 %v1791, %v1903
        %v1936 = vmul.f32 %v1792, %v1904
        %v1937 = vmul.f32 %v1793, %v1905
        %v1938 = vmul.f32 %v1794, %v1906
        %v1939 = vmul.f32 %v1795, %v1907
        %v1940 = vmul.f32 %v1796, %v1908
        %v1941 = vmul.f32 %v1797, %v1909
        %v1942 = vadd.f32 %v1748, %v1926
        %v1943 = vadd.f32 %v1749, %v1927
        %v1944 = vadd.f32 %v1750, %v1928
        %v1945 = vadd.f32 %v1751, %v1929
        %v1946 = vadd.f32 %v1752, %v1930
        %v1947 = vadd.f32 %v1753, %v1931
        %v1948 = vadd.f32 %v1754, %v1932
        %v1949 = vadd.f32 %v1755, %v1933
        %v1950 = vadd.f32 %v1756, %v1934
        %v1951 = vadd.f32 %v1757, %v1935
        %v1952 = vadd.f32 %v1758, %v1936
        %v1953 = vadd.f32 %v1759, %v1937
        %v1954 = vadd.f32 %v1760, %v1938
        %v1955 = vadd.f32 %v1761, %v1939
        %v1956 = vadd.f32 %v1762, %v1940
        %v1957 = vadd.f32 %v1763, %v1941
        %v1958 = vxor.u32 %v280, 2147483648
        %v1959 = vxor.u32 %v281, 2147483648
        %v1960 = vxor.u32 %v282, 2147483648
        %v1961 = vxor.u32 %v283, 2147483648
        %v1962 = vxor.u32 %v284, 2147483648
        %v1963 = vxor.u32 %v285, 2147483648
        %v1964 = vxor.u32 %v286, 2147483648
        %v1965 = vxor.u32 %v287, 2147483648
        %v1966 = vxor.u32 %v288, 2147483648
        %v1967 = vxor.u32 %v289, 2147483648
        %v1968 = vxor.u32 %v290, 2147483648
        %v1969 = vxor.u32 %v291, 2147483648
        %v1970 = vxor.u32 %v292, 2147483648
        %v1971 = vxor.u32 %v293, 2147483648
        %v1972 = vxor.u32 %v294, 2147483648
        %v1973 = vxor.u32 %v295, 2147483648
        %v1974 = vmul.f32 %v1958, 1.442695
        %v1975 = vpow.pop %v1974
        %v1976 = vmul.f32 %v1959, 1.442695
        %v1977 = vpow.pop %v1976
        %v1978 = vmul.f32 %v1960, 1.442695
        %v1979 = vpow.pop %v1978
        %v1980 = vmul.f32 %v1961, 1.442695
        %v1981 = vpow.pop %v1980
        %v1982 = vmul.f32 %v1962, 1.442695
        %v1983 = vpow.pop %v1982
        %v1984 = vmul.f32 %v1963, 1.442695
        %v1985 = vpow.pop %v1984
        %v1986 = vmul.f32 %v1964, 1.442695
        %v1987 = vpow.pop %v1986
        %v1988 = vmul.f32 %v1965, 1.442695
        %v1989 = vpow.pop %v1988
        %v1990 = vmul.f32 %v1966, 1.442695
        %v1991 = vpow.pop %v1990
        %v1992 = vmul.f32 %v1967, 1.442695
        %v1993 = vpow.pop %v1992
        %v1994 = vmul.f32 %v1968, 1.442695
        %v1995 = vpow.pop %v1994
        %v1996 = vmul.f32 %v1969, 1.442695
        %v1997 = vpow.pop %v1996
        %v1998 = vmul.f32 %v1970, 1.442695
        %v1999 = vpow.pop %v1998
        %v2000 = vmul.f32 %v1971, 1.442695
        %v2001 = vpow.pop %v2000
        %v2002 = vmul.f32 %v1972, 1.442695
        %v2003 = vpow.pop %v2002
        %v2004 = vmul.f32 %v1973, 1.442695
        %v2005 = vpow.pop %v2004
        %v2006 = vadd.f32 %v1975, 1.0
        %v2007 = vadd.f32 %v1977, 1.0
        %v2008 = vadd.f32 %v1979, 1.0
        %v2009 = vadd.f32 %v1981, 1.0
        %v2010 = vadd.f32 %v1983, 1.0
        %v2011 = vadd.f32 %v1985, 1.0
        %v2012 = vadd.f32 %v1987, 1.0
        %v2013 = vadd.f32 %v1989, 1.0
        %v2014 = vadd.f32 %v1991, 1.0
        %v2015 = vadd.f32 %v1993, 1.0
        %v2016 = vadd.f32 %v1995, 1.0
        %v2017 = vadd.f32 %v1997, 1.0
        %v2018 = vadd.f32 %v1999, 1.0
        %v2019 = vadd.f32 %v2001, 1.0
        %v2020 = vadd.f32 %v2003, 1.0
        %v2021 = vadd.f32 %v2005, 1.0
        %v2022 = vrcp.pop %v2006
        %v2023 = vmul.f32 %v2006, %v2022
        %v2024 = vsub.f32 1.0, %v2023
        %v2025 = vmul.f32 %v2022, %v2024
        %v2026 = vadd.f32 %v2022, %v2025
        %vm2027 = vweird.f32 %v2006
        %vm2028 = vweird.f32 %v2022
        %vm2029 = vmor %vm2027, %vm2028
        %v2030 = vsel %vm2029, %v2022, %v2026
        %v2031 = vand.u32 2147483647, %v2006
        %vm2032 = vcmp.eq.f32.partialorder %v2031, 8.507059e+37
        %v2033 = vand.u32 %v2006, 2147483648
        %v2034 = vor.u32 1.1754944e-38, %v2033
        %v2035 = vsel %vm2032, %v2034, %v2030
        %v2036 = vmul.f32 1.0, %v2035
        %v2037 = vrcp.pop %v2007
        %v2038 = vmul.f32 %v2007, %v2037
        %v2039 = vsub.f32 1.0, %v2038
        %v2040 = vmul.f32 %v2037, %v2039
        %v2041 = vadd.f32 %v2037, %v2040
        %vm2042 = vweird.f32 %v2007
        %vm2043 = vweird.f32 %v2037
        %vm2044 = vmor %vm2042, %vm2043
        %v2045 = vsel %vm2044, %v2037, %v2041
        %v2046 = vand.u32 2147483647, %v2007
        %vm2047 = vcmp.eq.f32.partialorder %v2046, 8.507059e+37
        %v2048 = vand.u32 %v2007, 2147483648
        %v2049 = vor.u32 1.1754944e-38, %v2048
        %v2050 = vsel %vm2047, %v2049, %v2045
        %v2051 = vmul.f32 1.0, %v2050
        %v2052 = vrcp.pop %v2008
        %v2053 = vmul.f32 %v2008, %v2052
        %v2054 = vsub.f32 1.0, %v2053
        %v2055 = vmul.f32 %v2052, %v2054
        %v2056 = vadd.f32 %v2052, %v2055
        %vm2057 = vweird.f32 %v2008
        %vm2058 = vweird.f32 %v2052
        %vm2059 = vmor %vm2057, %vm2058
        %v2060 = vsel %vm2059, %v2052, %v2056
        %v2061 = vand.u32 2147483647, %v2008
        %vm2062 = vcmp.eq.f32.partialorder %v2061, 8.507059e+37
        %v2063 = vand.u32 %v2008, 2147483648
        %v2064 = vor.u32 1.1754944e-38, %v2063
        %v2065 = vsel %vm2062, %v2064, %v2060
        %v2066 = vmul.f32 1.0, %v2065
        %v2067 = vrcp.pop %v2009
        %v2068 = vmul.f32 %v2009, %v2067
        %v2069 = vsub.f32 1.0, %v2068
        %v2070 = vmul.f32 %v2067, %v2069
        %v2071 = vadd.f32 %v2067, %v2070
        %vm2072 = vweird.f32 %v2009
        %vm2073 = vweird.f32 %v2067
        %vm2074 = vmor %vm2072, %vm2073
        %v2075 = vsel %vm2074, %v2067, %v2071
        %v2076 = vand.u32 2147483647, %v2009
        %vm2077 = vcmp.eq.f32.partialorder %v2076, 8.507059e+37
        %v2078 = vand.u32 %v2009, 2147483648
        %v2079 = vor.u32 1.1754944e-38, %v2078
        %v2080 = vsel %vm2077, %v2079, %v2075
        %v2081 = vmul.f32 1.0, %v2080
        %v2082 = vrcp.pop %v2010
        %v2083 = vmul.f32 %v2010, %v2082
        %v2084 = vsub.f32 1.0, %v2083
        %v2085 = vmul.f32 %v2082, %v2084
        %v2086 = vadd.f32 %v2082, %v2085
        %vm2087 = vweird.f32 %v2010
        %vm2088 = vweird.f32 %v2082
        %vm2089 = vmor %vm2087, %vm2088
        %v2090 = vsel %vm2089, %v2082, %v2086
        %v2091 = vand.u32 2147483647, %v2010
        %vm2092 = vcmp.eq.f32.partialorder %v2091, 8.507059e+37
        %v2093 = vand.u32 %v2010, 2147483648
        %v2094 = vor.u32 1.1754944e-38, %v2093
        %v2095 = vsel %vm2092, %v2094, %v2090
        %v2096 = vmul.f32 1.0, %v2095
        %v2097 = vrcp.pop %v2011
        %v2098 = vmul.f32 %v2011, %v2097
        %v2099 = vsub.f32 1.0, %v2098
        %v2100 = vmul.f32 %v2097, %v2099
        %v2101 = vadd.f32 %v2097, %v2100
        %vm2102 = vweird.f32 %v2011
        %vm2103 = vweird.f32 %v2097
        %vm2104 = vmor %vm2102, %vm2103
        %v2105 = vsel %vm2104, %v2097, %v2101
        %v2106 = vand.u32 2147483647, %v2011
        %vm2107 = vcmp.eq.f32.partialorder %v2106, 8.507059e+37
        %v2108 = vand.u32 %v2011, 2147483648
        %v2109 = vor.u32 1.1754944e-38, %v2108
        %v2110 = vsel %vm2107, %v2109, %v2105
        %v2111 = vmul.f32 1.0, %v2110
        %v2112 = vrcp.pop %v2012
        %v2113 = vmul.f32 %v2012, %v2112
        %v2114 = vsub.f32 1.0, %v2113
        %v2115 = vmul.f32 %v2112, %v2114
        %v2116 = vadd.f32 %v2112, %v2115
        %vm2117 = vweird.f32 %v2012
        %vm2118 = vweird.f32 %v2112
        %vm2119 = vmor %vm2117, %vm2118
        %v2120 = vsel %vm2119, %v2112, %v2116
        %v2121 = vand.u32 2147483647, %v2012
        %vm2122 = vcmp.eq.f32.partialorder %v2121, 8.507059e+37
        %v2123 = vand.u32 %v2012, 2147483648
        %v2124 = vor.u32 1.1754944e-38, %v2123
        %v2125 = vsel %vm2122, %v2124, %v2120
        %v2126 = vmul.f32 1.0, %v2125
        %v2127 = vrcp.pop %v2013
        %v2128 = vmul.f32 %v2013, %v2127
        %v2129 = vsub.f32 1.0, %v2128
        %v2130 = vmul.f32 %v2127, %v2129
        %v2131 = vadd.f32 %v2127, %v2130
        %vm2132 = vweird.f32 %v2013
        %vm2133 = vweird.f32 %v2127
        %vm2134 = vmor %vm2132, %vm2133
        %v2135 = vsel %vm2134, %v2127, %v2131
        %v2136 = vand.u32 2147483647, %v2013
        %vm2137 = vcmp.eq.f32.partialorder %v2136, 8.507059e+37
        %v2138 = vand.u32 %v2013, 2147483648
        %v2139 = vor.u32 1.1754944e-38, %v2138
        %v2140 = vsel %vm2137, %v2139, %v2135
        %v2141 = vmul.f32 1.0, %v2140
        %v2142 = vrcp.pop %v2014
        %v2143 = vmul.f32 %v2014, %v2142
        %v2144 = vsub.f32 1.0, %v2143
        %v2145 = vmul.f32 %v2142, %v2144
        %v2146 = vadd.f32 %v2142, %v2145
        %vm2147 = vweird.f32 %v2014
        %vm2148 = vweird.f32 %v2142
        %vm2149 = vmor %vm2147, %vm2148
        %v2150 = vsel %vm2149, %v2142, %v2146
        %v2151 = vand.u32 2147483647, %v2014
        %vm2152 = vcmp.eq.f32.partialorder %v2151, 8.507059e+37
        %v2153 = vand.u32 %v2014, 2147483648
        %v2154 = vor.u32 1.1754944e-38, %v2153
        %v2155 = vsel %vm2152, %v2154, %v2150
        %v2156 = vmul.f32 1.0, %v2155
        %v2157 = vrcp.pop %v2015
        %v2158 = vmul.f32 %v2015, %v2157
        %v2159 = vsub.f32 1.0, %v2158
        %v2160 = vmul.f32 %v2157, %v2159
        %v2161 = vadd.f32 %v2157, %v2160
        %vm2162 = vweird.f32 %v2015
        %vm2163 = vweird.f32 %v2157
        %vm2164 = vmor %vm2162, %vm2163
        %v2165 = vsel %vm2164, %v2157, %v2161
        %v2166 = vand.u32 2147483647, %v2015
        %vm2167 = vcmp.eq.f32.partialorder %v2166, 8.507059e+37
        %v2168 = vand.u32 %v2015, 2147483648
        %v2169 = vor.u32 1.1754944e-38, %v2168
        %v2170 = vsel %vm2167, %v2169, %v2165
        %v2171 = vmul.f32 1.0, %v2170
        %v2172 = vrcp.pop %v2016
        %v2173 = vmul.f32 %v2016, %v2172
        %v2174 = vsub.f32 1.0, %v2173
        %v2175 = vmul.f32 %v2172, %v2174
        %v2176 = vadd.f32 %v2172, %v2175
        %vm2177 = vweird.f32 %v2016
        %vm2178 = vweird.f32 %v2172
        %vm2179 = vmor %vm2177, %vm2178
        %v2180 = vsel %vm2179, %v2172, %v2176
        %v2181 = vand.u32 2147483647, %v2016
        %vm2182 = vcmp.eq.f32.partialorder %v2181, 8.507059e+37
        %v2183 = vand.u32 %v2016, 2147483648
        %v2184 = vor.u32 1.1754944e-38, %v2183
        %v2185 = vsel %vm2182, %v2184, %v2180
        %v2186 = vmul.f32 1.0, %v2185
        %v2187 = vrcp.pop %v2017
        %v2188 = vmul.f32 %v2017, %v2187
        %v2189 = vsub.f32 1.0, %v2188
        %v2190 = vmul.f32 %v2187, %v2189
        %v2191 = vadd.f32 %v2187, %v2190
        %vm2192 = vweird.f32 %v2017
        %vm2193 = vweird.f32 %v2187
        %vm2194 = vmor %vm2192, %vm2193
        %v2195 = vsel %vm2194, %v2187, %v2191
        %v2196 = vand.u32 2147483647, %v2017
        %vm2197 = vcmp.eq.f32.partialorder %v2196, 8.507059e+37
        %v2198 = vand.u32 %v2017, 2147483648
        %v2199 = vor.u32 1.1754944e-38, %v2198
        %v2200 = vsel %vm2197, %v2199, %v2195
        %v2201 = vmul.f32 1.0, %v2200
        %v2202 = vrcp.pop %v2018
        %v2203 = vmul.f32 %v2018, %v2202
        %v2204 = vsub.f32 1.0, %v2203
        %v2205 = vmul.f32 %v2202, %v2204
        %v2206 = vadd.f32 %v2202, %v2205
        %vm2207 = vweird.f32 %v2018
        %vm2208 = vweird.f32 %v2202
        %vm2209 = vmor %vm2207, %vm2208
        %v2210 = vsel %vm2209, %v2202, %v2206
        %v2211 = vand.u32 2147483647, %v2018
        %vm2212 = vcmp.eq.f32.partialorder %v2211, 8.507059e+37
        %v2213 = vand.u32 %v2018, 2147483648
        %v2214 = vor.u32 1.1754944e-38, %v2213
        %v2215 = vsel %vm2212, %v2214, %v2210
        %v2216 = vmul.f32 1.0, %v2215
        %v2217 = vrcp.pop %v2019
        %v2218 = vmul.f32 %v2019, %v2217
        %v2219 = vsub.f32 1.0, %v2218
        %v2220 = vmul.f32 %v2217, %v2219
        %v2221 = vadd.f32 %v2217, %v2220
        %vm2222 = vweird.f32 %v2019
        %vm2223 = vweird.f32 %v2217
        %vm2224 = vmor %vm2222, %vm2223
        %v2225 = vsel %vm2224, %v2217, %v2221
        %v2226 = vand.u32 2147483647, %v2019
        %vm2227 = vcmp.eq.f32.partialorder %v2226, 8.507059e+37
        %v2228 = vand.u32 %v2019, 2147483648
        %v2229 = vor.u32 1.1754944e-38, %v2228
        %v2230 = vsel %vm2227, %v2229, %v2225
        %v2231 = vmul.f32 1.0, %v2230
        %v2232 = vrcp.pop %v2020
        %v2233 = vmul.f32 %v2020, %v2232
        %v2234 = vsub.f32 1.0, %v2233
        %v2235 = vmul.f32 %v2232, %v2234
        %v2236 = vadd.f32 %v2232, %v2235
        %vm2237 = vweird.f32 %v2020
        %vm2238 = vweird.f32 %v2232
        %vm2239 = vmor %vm2237, %vm2238
        %v2240 = vsel %vm2239, %v2232, %v2236
        %v2241 = vand.u32 2147483647, %v2020
        %vm2242 = vcmp.eq.f32.partialorder %v2241, 8.507059e+37
        %v2243 = vand.u32 %v2020, 2147483648
        %v2244 = vor.u32 1.1754944e-38, %v2243
        %v2245 = vsel %vm2242, %v2244, %v2240
        %v2246 = vmul.f32 1.0, %v2245
        %v2247 = vrcp.pop %v2021
        %v2248 = vmul.f32 %v2021, %v2247
        %v2249 = vsub.f32 1.0, %v2248
        %v2250 = vmul.f32 %v2247, %v2249
        %v2251 = vadd.f32 %v2247, %v2250
        %vm2252 = vweird.f32 %v2021
        %vm2253 = vweird.f32 %v2247
        %vm2254 = vmor %vm2252, %vm2253
        %v2255 = vsel %vm2254, %v2247, %v2251
        %v2256 = vand.u32 2147483647, %v2021
        %vm2257 = vcmp.eq.f32.partialorder %v2256, 8.507059e+37
        %v2258 = vand.u32 %v2021, 2147483648
        %v2259 = vor.u32 1.1754944e-38, %v2258
        %v2260 = vsel %vm2257, %v2259, %v2255
        %v2261 = vmul.f32 1.0, %v2260
        %v2262 = vmul.f32 %v280, %v2036
        %v2263 = vmul.f32 %v281, %v2051
        %v2264 = vmul.f32 %v282, %v2066
        %v2265 = vmul.f32 %v283, %v2081
        %v2266 = vmul.f32 %v284, %v2096
        %v2267 = vmul.f32 %v285, %v2111
        %v2268 = vmul.f32 %v286, %v2126
        %v2269 = vmul.f32 %v287, %v2141
        %v2270 = vmul.f32 %v288, %v2156
        %v2271 = vmul.f32 %v289, %v2171
        %v2272 = vmul.f32 %v290, %v2186
        %v2273 = vmul.f32 %v291, %v2201
        %v2274 = vmul.f32 %v292, %v2216
        %v2275 = vmul.f32 %v293, %v2231
        %v2276 = vmul.f32 %v294, %v2246
        %v2277 = vmul.f32 %v295, %v2261
        %v2279 = vsel %vm670, %v2262, 0
        %v2282 = vsel %vm670, %v2263, 0
        %v2285 = vsel %vm670, %v2264, 0
        %v2288 = vsel %vm670, %v2265, 0
        %v2291 = vsel %vm670, %v2266, 0
        %v2294 = vsel %vm670, %v2267, 0
        %v2297 = vsel %vm670, %v2268, 0
        %v2300 = vsel %vm670, %v2269, 0
        %v2303 = vsel %vm670, %v2270, 0
        %v2306 = vsel %vm670, %v2271, 0
        %v2309 = vsel %vm670, %v2272, 0
        %v2312 = vsel %vm670, %v2273, 0
        %v2315 = vsel %vm670, %v2274, 0
        %v2318 = vsel %vm670, %v2275, 0
        %v2321 = vsel %vm670, %v2276, 0
        %v2324 = vsel %vm670, %v2277, 0
        %2326 = vmatpush.msra.mxu0 %v315
        %2327 = vmatpush.msra.mxu0 %v314
        %2328 = vmatpush.msra.mxu0 %v313
        %2329 = vmatpush.msra.mxu0 %v312
        %2330 = vmatpush.msra.mxu0 %v311
        %2331 = vmatpush.msra.mxu0 %v310
        %2332 = vmatpush.msra.mxu0 %v309
        %2333 = vmatpush.msra.mxu0 %v308
        %2334 = vmatpush.msra.mxu0 %v307
        %2335 = vmatpush.msra.mxu0 %v306
        %2336 = vmatpush.msra.mxu0 %v305
        %2337 = vmatpush.msra.mxu0 %v304
        %2338 = vmatpush.msra.mxu0 %v303
        %2339 = vmatpush.msra.mxu0 %v302
        %2340 = vmatpush.msra.mxu0 %v301
        %2341 = vmatpush.msra.mxu0 %v300
        %2342 = vmatmul.f32.gmra.mxu0 %v1942
        %v2343 = vpop.f32.mrf.mxu0
        %v2344 = vadd.f32 0.0, %v2343
        %2345 = vmatmul.f32.gmra.mxu0 %v1943
        %v2346 = vpop.f32.mrf.mxu0
        %v2347 = vadd.f32 0.0, %v2346
        %2348 = vmatmul.f32.gmra.mxu0 %v1944
        %v2349 = vpop.f32.mrf.mxu0
        %v2350 = vadd.f32 0.0, %v2349
        %2351 = vmatmul.f32.gmra.mxu0 %v1945
        %v2352 = vpop.f32.mrf.mxu0
        %v2353 = vadd.f32 0.0, %v2352
        %2354 = vmatmul.f32.gmra.mxu0 %v1946
        %v2355 = vpop.f32.mrf.mxu0
        %v2356 = vadd.f32 0.0, %v2355
        %2357 = vmatmul.f32.gmra.mxu0 %v1947
        %v2358 = vpop.f32.mrf.mxu0
        %v2359 = vadd.f32 0.0, %v2358
        %2360 = vmatmul.f32.gmra.mxu0 %v1948
        %v2361 = vpop.f32.mrf.mxu0
        %v2362 = vadd.f32 0.0, %v2361
        %2363 = vmatmul.f32.gmra.mxu0 %v1949
        %v2364 = vpop.f32.mrf.mxu0
        %v2365 = vadd.f32 0.0, %v2364
        %2366 = vmatmul.f32.gmra.mxu0 %v1950
        %v2367 = vpop.f32.mrf.mxu0
        %v2368 = vadd.f32 0.0, %v2367
        %2369 = vmatmul.f32.gmra.mxu0 %v1951
        %v2370 = vpop.f32.mrf.mxu0
        %v2371 = vadd.f32 0.0, %v2370
        %2372 = vmatmul.f32.gmra.mxu0 %v1952
        %v2373 = vpop.f32.mrf.mxu0
        %v2374 = vadd.f32 0.0, %v2373
        %2375 = vmatmul.f32.gmra.mxu0 %v1953
        %v2376 = vpop.f32.mrf.mxu0
        %v2377 = vadd.f32 0.0, %v2376
        %2378 = vmatmul.f32.gmra.mxu0 %v1954
        %v2379 = vpop.f32.mrf.mxu0
        %v2380 = vadd.f32 0.0, %v2379
        %2381 = vmatmul.f32.gmra.mxu0 %v1955
        %v2382 = vpop.f32.mrf.mxu0
        %v2383 = vadd.f32 0.0, %v2382
        %2384 = vmatmul.f32.gmra.mxu0 %v1956
        %v2385 = vpop.f32.mrf.mxu0
        %v2386 = vadd.f32 0.0, %v2385
        %2387 = vmatmul.f32.gmra.mxu0 %v1957
        %v2388 = vpop.f32.mrf.mxu0
        %v2389 = vadd.f32 0.0, %v2388
        %2390 = vdwg.mxu0
        %2391 = vmatpush.msra.mxu0 0.0
        %2392 = vmatpush.msra.mxu0 0.0
        %2393 = vmatpush.msra.mxu0 0.0
        %2394 = vmatpush.msra.mxu0 0.0
        %2395 = vmatpush.msra.mxu0 0.0
        %2396 = vmatpush.msra.mxu0 0.0
        %2397 = vmatpush.msra.mxu0 0.0
        %2398 = vmatpush.msra.mxu0 0.0
        %2399 = vmatpush.msra.mxu0 0.0
        %2400 = vmatpush.msra.mxu0 0.0
        %2401 = vmatpush.msra.mxu0 0.0
        %2402 = vmatpush.msra.mxu0 0.0
        %2403 = vmatpush.msra.mxu0 0.0
        %2404 = vmatpush.msra.mxu0 0.0
        %2405 = vmatpush.msra.mxu0 %v317
        %2406 = vmatpush.msra.mxu0 %v316
        %2407 = vmatmul.f32.gmra.mxu0 %v2279
        %v2408 = vpop.f32.mrf.mxu0
        %v2409 = vadd.f32 %v2344, %v2408
        %2410 = vmatmul.f32.gmra.mxu0 %v2282
        %v2411 = vpop.f32.mrf.mxu0
        %v2412 = vadd.f32 %v2347, %v2411
        %2413 = vmatmul.f32.gmra.mxu0 %v2285
        %v2414 = vpop.f32.mrf.mxu0
        %v2415 = vadd.f32 %v2350, %v2414
        %2416 = vmatmul.f32.gmra.mxu0 %v2288
        %v2417 = vpop.f32.mrf.mxu0
        %v2418 = vadd.f32 %v2353, %v2417
        %2419 = vmatmul.f32.gmra.mxu0 %v2291
        %v2420 = vpop.f32.mrf.mxu0
        %v2421 = vadd.f32 %v2356, %v2420
        %2422 = vmatmul.f32.gmra.mxu0 %v2294
        %v2423 = vpop.f32.mrf.mxu0
        %v2424 = vadd.f32 %v2359, %v2423
        %2425 = vmatmul.f32.gmra.mxu0 %v2297
        %v2426 = vpop.f32.mrf.mxu0
        %v2427 = vadd.f32 %v2362, %v2426
        %2428 = vmatmul.f32.gmra.mxu0 %v2300
        %v2429 = vpop.f32.mrf.mxu0
        %v2430 = vadd.f32 %v2365, %v2429
        %2431 = vmatmul.f32.gmra.mxu0 %v2303
        %v2432 = vpop.f32.mrf.mxu0
        %v2433 = vadd.f32 %v2368, %v2432
        %2434 = vmatmul.f32.gmra.mxu0 %v2306
        %v2435 = vpop.f32.mrf.mxu0
        %v2436 = vadd.f32 %v2371, %v2435
        %2437 = vmatmul.f32.gmra.mxu0 %v2309
        %v2438 = vpop.f32.mrf.mxu0
        %v2439 = vadd.f32 %v2374, %v2438
        %2440 = vmatmul.f32.gmra.mxu0 %v2312
        %v2441 = vpop.f32.mrf.mxu0
        %v2442 = vadd.f32 %v2377, %v2441
        %2443 = vmatmul.f32.gmra.mxu0 %v2315
        %v2444 = vpop.f32.mrf.mxu0
        %v2445 = vadd.f32 %v2380, %v2444
        %2446 = vmatmul.f32.gmra.mxu0 %v2318
        %v2447 = vpop.f32.mrf.mxu0
        %v2448 = vadd.f32 %v2383, %v2447
        %2449 = vmatmul.f32.gmra.mxu0 %v2321
        %v2450 = vpop.f32.mrf.mxu0
        %v2451 = vadd.f32 %v2386, %v2450
        %2452 = vmatmul.f32.gmra.mxu0 %v2324
        %v2453 = vpop.f32.mrf.mxu0
        %v2454 = vadd.f32 %v2389, %v2453
        %2455 = vdwg.mxu0
        %v2456 = vld [vmem:[%s4] sm:$0x3f]
        %v2457 = vld [vmem:[%s5] sm:$0xff]
        %v2458 = vld [vmem:[%s5 + $0x8] sm:$0xff]
        %v2459 = vld [vmem:[%s5 + $0x10] sm:$0xff]
        %v2460 = vld [vmem:[%s5 + $0x18] sm:$0xf]
        %v2461 = vld [vmem:[%s5 + $0x20] sm:$0xf]
        %v2462 = vld [vmem:[%s6] sm:$0xff]
        %v2463 = vld [vmem:[%s6 + $0x8] sm:$0xff]
        %v2464 = vld [vmem:[%s6 + $0x10] sm:$0xff]
        %v2465 = vld [vmem:[%s6 + $0x18] sm:$0xff]
        %v2466 = vld [vmem:[%s6 + $0x20] sm:$0xff]
        %v2467 = vld [vmem:[%s6 + $0x28] sm:$0xff]
        %v2468 = vld [vmem:[%s6 + $0x30] sm:$0xff]
        %v2469 = vld [vmem:[%s6 + $0x38] sm:$0xff]
        %v2470 = vld [vmem:[%s6 + $0x40] sm:$0xff]
        %v2471 = vld [vmem:[%s6 + $0x48] sm:$0xff]
        %v2472 = vld [vmem:[%s6 + $0x50] sm:$0xff]
        %v2473 = vld [vmem:[%s6 + $0x58] sm:$0xff]
        %v2474 = vld [vmem:[%s6 + $0x60] sm:$0xff]
        %v2475 = vld [vmem:[%s6 + $0x68] sm:$0xff]
        %v2476 = vld [vmem:[%s6 + $0x70] sm:$0xff]
        %v2477 = vld [vmem:[%s6 + $0x78] sm:$0xff]
        %v2478 = vld [vmem:[%s6 + $0x80] sm:$0xff]
        %v2479 = vld [vmem:[%s6 + $0x88] sm:$0xff]
        %v2480 = vld [vmem:[%s6 + $0x90] sm:$0xff]
        %v2481 = vld [vmem:[%s6 + $0x98] sm:$0xff]
        %v2482 = vld [vmem:[%s6 + $0xa0] sm:$0xff]
        %v2483 = vld [vmem:[%s6 + $0xa8] sm:$0xff]
        %v2484 = vld [vmem:[%s6 + $0xb0] sm:$0xff]
        %v2485 = vld [vmem:[%s6 + $0xb8] sm:$0xff]
        %v2486 = vld [vmem:[%s6 + $0xc0] sm:$0xff]
        %v2487 = vld [vmem:[%s6 + $0xc8] sm:$0xff]
        %v2488 = vld [vmem:[%s6 + $0xd0] sm:$0xff]
        %v2489 = vld [vmem:[%s6 + $0xd8] sm:$0xff]
        %v2490 = vld [vmem:[%s6 + $0xe0] sm:$0xff]
        %v2491 = vld [vmem:[%s6 + $0xe8] sm:$0xff]
        %v2492 = vld [vmem:[%s6 + $0xf0] sm:$0xff]
        %v2493 = vld [vmem:[%s6 + $0xf8] sm:$0xff]
        %v2494 = vld [vmem:[%s6 + $0x100] sm:$0xff]
        %v2495 = vld [vmem:[%s6 + $0x108] sm:$0xff]
        %v2496 = vld [vmem:[%s6 + $0x110] sm:$0xff]
        %v2497 = vld [vmem:[%s6 + $0x118] sm:$0xff]
        %2514 = vrot.lane.b32.xlu0 %v2409, 32
        %v2515 = vpop.permute.xlu0 %2514
        %2516 = vrot.lane.b32.xlu0 %v2412, 32
        %v2517 = vpop.permute.xlu0 %2516
        %2518 = vrot.lane.b32.xlu0 %v2415, 32
        %v2519 = vpop.permute.xlu0 %2518
        %2520 = vrot.lane.b32.xlu0 %v2418, 32
        %v2521 = vpop.permute.xlu0 %2520
        %2522 = vrot.lane.b32.xlu0 %v2421, 32
        %v2523 = vpop.permute.xlu0 %2522
        %2524 = vrot.lane.b32.xlu0 %v2424, 32
        %v2525 = vpop.permute.xlu0 %2524
        %2526 = vrot.lane.b32.xlu0 %v2427, 32
        %v2527 = vpop.permute.xlu0 %2526
        %2528 = vrot.lane.b32.xlu0 %v2430, 32
        %v2529 = vpop.permute.xlu0 %2528
        %2530 = vrot.lane.b32.xlu0 %v2433, 32
        %v2531 = vpop.permute.xlu0 %2530
        %2532 = vrot.lane.b32.xlu0 %v2436, 32
        %v2533 = vpop.permute.xlu0 %2532
        %2534 = vrot.lane.b32.xlu0 %v2439, 32
        %v2535 = vpop.permute.xlu0 %2534
        %2536 = vrot.lane.b32.xlu0 %v2442, 32
        %v2537 = vpop.permute.xlu0 %2536
        %2538 = vrot.lane.b32.xlu0 %v2445, 32
        %v2539 = vpop.permute.xlu0 %2538
        %2540 = vrot.lane.b32.xlu0 %v2448, 32
        %v2541 = vpop.permute.xlu0 %2540
        %2542 = vrot.lane.b32.xlu0 %v2451, 32
        %v2543 = vpop.permute.xlu0 %2542
        %2544 = vrot.lane.b32.xlu0 %v2454, 32
        %v2545 = vpop.permute.xlu0 %2544
        %2562 = vrot.lane.b32.xlu0 %v2409, 64
        %v2563 = vpop.permute.xlu0 %2562
        %2564 = vrot.lane.b32.xlu0 %v2412, 64
        %v2565 = vpop.permute.xlu0 %2564
        %2566 = vrot.lane.b32.xlu0 %v2415, 64
        %v2567 = vpop.permute.xlu0 %2566
        %2568 = vrot.lane.b32.xlu0 %v2418, 64
        %v2569 = vpop.permute.xlu0 %2568
        %2570 = vrot.lane.b32.xlu0 %v2421, 64
        %v2571 = vpop.permute.xlu0 %2570
        %2572 = vrot.lane.b32.xlu0 %v2424, 64
        %v2573 = vpop.permute.xlu0 %2572
        %2574 = vrot.lane.b32.xlu0 %v2427, 64
        %v2575 = vpop.permute.xlu0 %2574
        %2576 = vrot.lane.b32.xlu0 %v2430, 64
        %v2577 = vpop.permute.xlu0 %2576
        %2578 = vrot.lane.b32.xlu0 %v2433, 64
        %v2579 = vpop.permute.xlu0 %2578
        %2580 = vrot.lane.b32.xlu0 %v2436, 64
        %v2581 = vpop.permute.xlu0 %2580
        %2582 = vrot.lane.b32.xlu0 %v2439, 64
        %v2583 = vpop.permute.xlu0 %2582
        %2584 = vrot.lane.b32.xlu0 %v2442, 64
        %v2585 = vpop.permute.xlu0 %2584
        %2586 = vrot.lane.b32.xlu0 %v2445, 64
        %v2587 = vpop.permute.xlu0 %2586
        %2588 = vrot.lane.b32.xlu0 %v2448, 64
        %v2589 = vpop.permute.xlu0 %2588
        %2590 = vrot.lane.b32.xlu0 %v2451, 64
        %v2591 = vpop.permute.xlu0 %2590
        %2592 = vrot.lane.b32.xlu0 %v2454, 64
        %v2593 = vpop.permute.xlu0 %2592
        %2610 = vrot.lane.b32.xlu0 %v2409, 96
        %v2611 = vpop.permute.xlu0 %2610
        %2612 = vrot.lane.b32.xlu0 %v2412, 96
        %v2613 = vpop.permute.xlu0 %2612
        %2614 = vrot.lane.b32.xlu0 %v2415, 96
        %v2615 = vpop.permute.xlu0 %2614
        %2616 = vrot.lane.b32.xlu0 %v2418, 96
        %v2617 = vpop.permute.xlu0 %2616
        %2618 = vrot.lane.b32.xlu0 %v2421, 96
        %v2619 = vpop.permute.xlu0 %2618
        %2620 = vrot.lane.b32.xlu0 %v2424, 96
        %v2621 = vpop.permute.xlu0 %2620
        %2622 = vrot.lane.b32.xlu0 %v2427, 96
        %v2623 = vpop.permute.xlu0 %2622
        %2624 = vrot.lane.b32.xlu0 %v2430, 96
        %v2625 = vpop.permute.xlu0 %2624
        %2626 = vrot.lane.b32.xlu0 %v2433, 96
        %v2627 = vpop.permute.xlu0 %2626
        %2628 = vrot.lane.b32.xlu0 %v2436, 96
        %v2629 = vpop.permute.xlu0 %2628
        %2630 = vrot.lane.b32.xlu0 %v2439, 96
        %v2631 = vpop.permute.xlu0 %2630
        %2632 = vrot.lane.b32.xlu0 %v2442, 96
        %v2633 = vpop.permute.xlu0 %2632
        %2634 = vrot.lane.b32.xlu0 %v2445, 96
        %v2635 = vpop.permute.xlu0 %2634
        %2636 = vrot.lane.b32.xlu0 %v2448, 96
        %v2637 = vpop.permute.xlu0 %2636
        %2638 = vrot.lane.b32.xlu0 %v2451, 96
        %v2639 = vpop.permute.xlu0 %2638
        %2640 = vrot.lane.b32.xlu0 %v2454, 96
        %v2641 = vpop.permute.xlu0 %2640
        %v2658 = vsel %vm687, %v2409, %v2515
        %v2659 = vsel %vm687, %v2412, %v2517
        %v2660 = vsel %vm687, %v2415, %v2519
        %v2661 = vsel %vm687, %v2418, %v2521
        %v2662 = vsel %vm687, %v2421, %v2523
        %v2663 = vsel %vm687, %v2424, %v2525
        %v2664 = vsel %vm687, %v2427, %v2527
        %v2665 = vsel %vm687, %v2430, %v2529
        %v2666 = vsel %vm687, %v2433, %v2531
        %v2667 = vsel %vm687, %v2436, %v2533
        %v2668 = vsel %vm687, %v2439, %v2535
        %v2669 = vsel %vm687, %v2442, %v2537
        %v2670 = vsel %vm687, %v2445, %v2539
        %v2671 = vsel %vm687, %v2448, %v2541
        %v2672 = vsel %vm687, %v2451, %v2543
        %v2673 = vsel %vm687, %v2454, %v2545
        %v2674 = vsel %vm721, %v2658, %v2563
        %v2675 = vsel %vm721, %v2659, %v2565
        %v2676 = vsel %vm721, %v2660, %v2567
        %v2677 = vsel %vm721, %v2661, %v2569
        %v2678 = vsel %vm721, %v2662, %v2571
        %v2679 = vsel %vm721, %v2663, %v2573
        %v2680 = vsel %vm721, %v2664, %v2575
        %v2681 = vsel %vm721, %v2665, %v2577
        %v2682 = vsel %vm721, %v2666, %v2579
        %v2683 = vsel %vm721, %v2667, %v2581
        %v2684 = vsel %vm721, %v2668, %v2583
        %v2685 = vsel %vm721, %v2669, %v2585
        %v2686 = vsel %vm721, %v2670, %v2587
        %v2687 = vsel %vm721, %v2671, %v2589
        %v2688 = vsel %vm721, %v2672, %v2591
        %v2689 = vsel %vm721, %v2673, %v2593
        %v2690 = vsel %vm755, %v2674, %v2611
        %v2691 = vsel %vm755, %v2675, %v2613
        %v2692 = vsel %vm755, %v2676, %v2615
        %v2693 = vsel %vm755, %v2677, %v2617
        %v2694 = vsel %vm755, %v2678, %v2619
        %v2695 = vsel %vm755, %v2679, %v2621
        %v2696 = vsel %vm755, %v2680, %v2623
        %v2697 = vsel %vm755, %v2681, %v2625
        %v2698 = vsel %vm755, %v2682, %v2627
        %v2699 = vsel %vm755, %v2683, %v2629
        %v2700 = vsel %vm755, %v2684, %v2631
        %v2701 = vsel %vm755, %v2685, %v2633
        %v2702 = vsel %vm755, %v2686, %v2635
        %v2703 = vsel %vm755, %v2687, %v2637
        %v2704 = vsel %vm755, %v2688, %v2639
        %v2705 = vsel %vm755, %v2689, %v2641
        %v2707 = vperm.slane %v2456, 0
        %v2708 = vperm.slane %v2456, 2
        %v2709 = vperm.slane %v2456, 4
        %v2713 = vperm.slane %v2707, 0
        %v2714 = vperm.slane %v2708, 0
        %v2715 = vperm.slane %v2709, 0
        %vm2716 = vcmp.ge.f32.partialorder %v2690, %v2713
        %vm2717 = vcmp.ge.f32.partialorder %v2690, %v2714
        %vm2718 = vcmp.ge.f32.partialorder %v2674, %v2715
        %vm2719 = vcmp.ge.f32.partialorder %v2691, %v2713
        %vm2720 = vcmp.ge.f32.partialorder %v2691, %v2714
        %vm2721 = vcmp.ge.f32.partialorder %v2675, %v2715
        %vm2722 = vcmp.ge.f32.partialorder %v2692, %v2713
        %vm2723 = vcmp.ge.f32.partialorder %v2692, %v2714
        %vm2724 = vcmp.ge.f32.partialorder %v2676, %v2715
        %vm2725 = vcmp.ge.f32.partialorder %v2693, %v2713
        %vm2726 = vcmp.ge.f32.partialorder %v2693, %v2714
        %vm2727 = vcmp.ge.f32.partialorder %v2677, %v2715
        %vm2728 = vcmp.ge.f32.partialorder %v2694, %v2713
        %vm2729 = vcmp.ge.f32.partialorder %v2694, %v2714
        %vm2730 = vcmp.ge.f32.partialorder %v2678, %v2715
        %vm2731 = vcmp.ge.f32.partialorder %v2695, %v2713
        %vm2732 = vcmp.ge.f32.partialorder %v2695, %v2714
        %vm2733 = vcmp.ge.f32.partialorder %v2679, %v2715
        %vm2734 = vcmp.ge.f32.partialorder %v2696, %v2713
        %vm2735 = vcmp.ge.f32.partialorder %v2696, %v2714
        %vm2736 = vcmp.ge.f32.partialorder %v2680, %v2715
        %vm2737 = vcmp.ge.f32.partialorder %v2697, %v2713
        %vm2738 = vcmp.ge.f32.partialorder %v2697, %v2714
        %vm2739 = vcmp.ge.f32.partialorder %v2681, %v2715
        %vm2740 = vcmp.ge.f32.partialorder %v2698, %v2713
        %vm2741 = vcmp.ge.f32.partialorder %v2698, %v2714
        %vm2742 = vcmp.ge.f32.partialorder %v2682, %v2715
        %vm2743 = vcmp.ge.f32.partialorder %v2699, %v2713
        %vm2744 = vcmp.ge.f32.partialorder %v2699, %v2714
        %vm2745 = vcmp.ge.f32.partialorder %v2683, %v2715
        %vm2746 = vcmp.ge.f32.partialorder %v2700, %v2713
        %vm2747 = vcmp.ge.f32.partialorder %v2700, %v2714
        %vm2748 = vcmp.ge.f32.partialorder %v2684, %v2715
        %vm2749 = vcmp.ge.f32.partialorder %v2701, %v2713
        %vm2750 = vcmp.ge.f32.partialorder %v2701, %v2714
        %vm2751 = vcmp.ge.f32.partialorder %v2685, %v2715
        %vm2752 = vcmp.ge.f32.partialorder %v2702, %v2713
        %vm2753 = vcmp.ge.f32.partialorder %v2702, %v2714
        %vm2754 = vcmp.ge.f32.partialorder %v2686, %v2715
        %vm2755 = vcmp.ge.f32.partialorder %v2703, %v2713
        %vm2756 = vcmp.ge.f32.partialorder %v2703, %v2714
        %vm2757 = vcmp.ge.f32.partialorder %v2687, %v2715
        %vm2758 = vcmp.ge.f32.partialorder %v2704, %v2713
        %vm2759 = vcmp.ge.f32.partialorder %v2704, %v2714
        %vm2760 = vcmp.ge.f32.partialorder %v2688, %v2715
        %vm2761 = vcmp.ge.f32.partialorder %v2705, %v2713
        %vm2762 = vcmp.ge.f32.partialorder %v2705, %v2714
        %vm2763 = vcmp.ge.f32.partialorder %v2689, %v2715
        %v2764 = vperm.slane %v2456, 1
        %v2765 = vperm.slane %v2456, 3
        %v2766 = vperm.slane %v2456, 5
        %v2770 = vperm.slane %v2764, 1
        %v2771 = vperm.slane %v2765, 1
        %v2772 = vperm.slane %v2766, 1
        %vm2773 = vcmp.lt.f32.partialorder %v2690, %v2770
        %vm2774 = vcmp.lt.f32.partialorder %v2690, %v2771
        %vm2775 = vcmp.lt.f32.partialorder %v2674, %v2772
        %vm2776 = vcmp.lt.f32.partialorder %v2691, %v2770
        %vm2777 = vcmp.lt.f32.partialorder %v2691, %v2771
        %vm2778 = vcmp.lt.f32.partialorder %v2675, %v2772
        %vm2779 = vcmp.lt.f32.partialorder %v2692, %v2770
        %vm2780 = vcmp.lt.f32.partialorder %v2692, %v2771
        %vm2781 = vcmp.lt.f32.partialorder %v2676, %v2772
        %vm2782 = vcmp.lt.f32.partialorder %v2693, %v2770
        %vm2783 = vcmp.lt.f32.partialorder %v2693, %v2771
        %vm2784 = vcmp.lt.f32.partialorder %v2677, %v2772
        %vm2785 = vcmp.lt.f32.partialorder %v2694, %v2770
        %vm2786 = vcmp.lt.f32.partialorder %v2694, %v2771
        %vm2787 = vcmp.lt.f32.partialorder %v2678, %v2772
        %vm2788 = vcmp.lt.f32.partialorder %v2695, %v2770
        %vm2789 = vcmp.lt.f32.partialorder %v2695, %v2771
        %vm2790 = vcmp.lt.f32.partialorder %v2679, %v2772
        %vm2791 = vcmp.lt.f32.partialorder %v2696, %v2770
        %vm2792 = vcmp.lt.f32.partialorder %v2696, %v2771
        %vm2793 = vcmp.lt.f32.partialorder %v2680, %v2772
        %vm2794 = vcmp.lt.f32.partialorder %v2697, %v2770
        %vm2795 = vcmp.lt.f32.partialorder %v2697, %v2771
        %vm2796 = vcmp.lt.f32.partialorder %v2681, %v2772
        %vm2797 = vcmp.lt.f32.partialorder %v2698, %v2770
        %vm2798 = vcmp.lt.f32.partialorder %v2698, %v2771
        %vm2799 = vcmp.lt.f32.partialorder %v2682, %v2772
        %vm2800 = vcmp.lt.f32.partialorder %v2699, %v2770
        %vm2801 = vcmp.lt.f32.partialorder %v2699, %v2771
        %vm2802 = vcmp.lt.f32.partialorder %v2683, %v2772
        %vm2803 = vcmp.lt.f32.partialorder %v2700, %v2770
        %vm2804 = vcmp.lt.f32.partialorder %v2700, %v2771
        %vm2805 = vcmp.lt.f32.partialorder %v2684, %v2772
        %vm2806 = vcmp.lt.f32.partialorder %v2701, %v2770
        %vm2807 = vcmp.lt.f32.partialorder %v2701, %v2771
        %vm2808 = vcmp.lt.f32.partialorder %v2685, %v2772
        %vm2809 = vcmp.lt.f32.partialorder %v2702, %v2770
        %vm2810 = vcmp.lt.f32.partialorder %v2702, %v2771
        %vm2811 = vcmp.lt.f32.partialorder %v2686, %v2772
        %vm2812 = vcmp.lt.f32.partialorder %v2703, %v2770
        %vm2813 = vcmp.lt.f32.partialorder %v2703, %v2771
        %vm2814 = vcmp.lt.f32.partialorder %v2687, %v2772
        %vm2815 = vcmp.lt.f32.partialorder %v2704, %v2770
        %vm2816 = vcmp.lt.f32.partialorder %v2704, %v2771
        %vm2817 = vcmp.lt.f32.partialorder %v2688, %v2772
        %vm2818 = vcmp.lt.f32.partialorder %v2705, %v2770
        %vm2819 = vcmp.lt.f32.partialorder %v2705, %v2771
        %vm2820 = vcmp.lt.f32.partialorder %v2689, %v2772
        %vm2821 = vmand %vm2716, %vm2773
        %vm2822 = vmand %vm2717, %vm2774
        %vm2823 = vmand %vm2718, %vm2775
        %vm2824 = vmand %vm2719, %vm2776
        %vm2825 = vmand %vm2720, %vm2777
        %vm2826 = vmand %vm2721, %vm2778
        %vm2827 = vmand %vm2722, %vm2779
        %vm2828 = vmand %vm2723, %vm2780
        %vm2829 = vmand %vm2724, %vm2781
        %vm2830 = vmand %vm2725, %vm2782
        %vm2831 = vmand %vm2726, %vm2783
        %vm2832 = vmand %vm2727, %vm2784
        %vm2833 = vmand %vm2728, %vm2785
        %vm2834 = vmand %vm2729, %vm2786
        %vm2835 = vmand %vm2730, %vm2787
        %vm2836 = vmand %vm2731, %vm2788
        %vm2837 = vmand %vm2732, %vm2789
        %vm2838 = vmand %vm2733, %vm2790
        %vm2839 = vmand %vm2734, %vm2791
        %vm2840 = vmand %vm2735, %vm2792
        %vm2841 = vmand %vm2736, %vm2793
        %vm2842 = vmand %vm2737, %vm2794
        %vm2843 = vmand %vm2738, %vm2795
        %vm2844 = vmand %vm2739, %vm2796
        %vm2845 = vmand %vm2740, %vm2797
        %vm2846 = vmand %vm2741, %vm2798
        %vm2847 = vmand %vm2742, %vm2799
        %vm2848 = vmand %vm2743, %vm2800
        %vm2849 = vmand %vm2744, %vm2801
        %vm2850 = vmand %vm2745, %vm2802
        %vm2851 = vmand %vm2746, %vm2803
        %vm2852 = vmand %vm2747, %vm2804
        %vm2853 = vmand %vm2748, %vm2805
        %vm2854 = vmand %vm2749, %vm2806
        %vm2855 = vmand %vm2750, %vm2807
        %vm2856 = vmand %vm2751, %vm2808
        %vm2857 = vmand %vm2752, %vm2809
        %vm2858 = vmand %vm2753, %vm2810
        %vm2859 = vmand %vm2754, %vm2811
        %vm2860 = vmand %vm2755, %vm2812
        %vm2861 = vmand %vm2756, %vm2813
        %vm2862 = vmand %vm2757, %vm2814
        %vm2863 = vmand %vm2758, %vm2815
        %vm2864 = vmand %vm2759, %vm2816
        %vm2865 = vmand %vm2760, %vm2817
        %vm2866 = vmand %vm2761, %vm2818
        %vm2867 = vmand %vm2762, %vm2819
        %vm2868 = vmand %vm2763, %vm2820
        %v2869 = vsel %vm2821, 1, 0
        %v2870 = vsel %vm2822, 1, 0
        %v2871 = vsel %vm2823, 1, 0
        %v2872 = vsel %vm2824, 1, 0
        %v2873 = vsel %vm2825, 1, 0
        %v2874 = vsel %vm2826, 1, 0
        %v2875 = vsel %vm2827, 1, 0
        %v2876 = vsel %vm2828, 1, 0
        %v2877 = vsel %vm2829, 1, 0
        %v2878 = vsel %vm2830, 1, 0
        %v2879 = vsel %vm2831, 1, 0
        %v2880 = vsel %vm2832, 1, 0
        %v2881 = vsel %vm2833, 1, 0
        %v2882 = vsel %vm2834, 1, 0
        %v2883 = vsel %vm2835, 1, 0
        %v2884 = vsel %vm2836, 1, 0
        %v2885 = vsel %vm2837, 1, 0
        %v2886 = vsel %vm2838, 1, 0
        %v2887 = vsel %vm2839, 1, 0
        %v2888 = vsel %vm2840, 1, 0
        %v2889 = vsel %vm2841, 1, 0
        %v2890 = vsel %vm2842, 1, 0
        %v2891 = vsel %vm2843, 1, 0
        %v2892 = vsel %vm2844, 1, 0
        %v2893 = vsel %vm2845, 1, 0
        %v2894 = vsel %vm2846, 1, 0
        %v2895 = vsel %vm2847, 1, 0
        %v2896 = vsel %vm2848, 1, 0
        %v2897 = vsel %vm2849, 1, 0
        %v2898 = vsel %vm2850, 1, 0
        %v2899 = vsel %vm2851, 1, 0
        %v2900 = vsel %vm2852, 1, 0
        %v2901 = vsel %vm2853, 1, 0
        %v2902 = vsel %vm2854, 1, 0
        %v2903 = vsel %vm2855, 1, 0
        %v2904 = vsel %vm2856, 1, 0
        %v2905 = vsel %vm2857, 1, 0
        %v2906 = vsel %vm2858, 1, 0
        %v2907 = vsel %vm2859, 1, 0
        %v2908 = vsel %vm2860, 1, 0
        %v2909 = vsel %vm2861, 1, 0
        %v2910 = vsel %vm2862, 1, 0
        %v2911 = vsel %vm2863, 1, 0
        %v2912 = vsel %vm2864, 1, 0
        %v2913 = vsel %vm2865, 1, 0
        %v2914 = vsel %vm2866, 1, 0
        %v2915 = vsel %vm2867, 1, 0
        %v2916 = vsel %vm2868, 1, 0
        %v2917 = vcvt.s32.f32 %v2869
        %v2918 = vcvt.s32.f32 %v2870
        %v2919 = vcvt.s32.f32 %v2871
        %v2920 = vcvt.s32.f32 %v2872
        %v2921 = vcvt.s32.f32 %v2873
        %v2922 = vcvt.s32.f32 %v2874
        %v2923 = vcvt.s32.f32 %v2875
        %v2924 = vcvt.s32.f32 %v2876
        %v2925 = vcvt.s32.f32 %v2877
        %v2926 = vcvt.s32.f32 %v2878
        %v2927 = vcvt.s32.f32 %v2879
        %v2928 = vcvt.s32.f32 %v2880
        %v2929 = vcvt.s32.f32 %v2881
        %v2930 = vcvt.s32.f32 %v2882
        %v2931 = vcvt.s32.f32 %v2883
        %v2932 = vcvt.s32.f32 %v2884
        %v2933 = vcvt.s32.f32 %v2885
        %v2934 = vcvt.s32.f32 %v2886
        %v2935 = vcvt.s32.f32 %v2887
        %v2936 = vcvt.s32.f32 %v2888
        %v2937 = vcvt.s32.f32 %v2889
        %v2938 = vcvt.s32.f32 %v2890
        %v2939 = vcvt.s32.f32 %v2891
        %v2940 = vcvt.s32.f32 %v2892
        %v2941 = vcvt.s32.f32 %v2893
        %v2942 = vcvt.s32.f32 %v2894
        %v2943 = vcvt.s32.f32 %v2895
        %v2944 = vcvt.s32.f32 %v2896
        %v2945 = vcvt.s32.f32 %v2897
        %v2946 = vcvt.s32.f32 %v2898
        %v2947 = vcvt.s32.f32 %v2899
        %v2948 = vcvt.s32.f32 %v2900
        %v2949 = vcvt.s32.f32 %v2901
        %v2950 = vcvt.s32.f32 %v2902
        %v2951 = vcvt.s32.f32 %v2903
        %v2952 = vcvt.s32.f32 %v2904
        %v2953 = vcvt.s32.f32 %v2905
        %v2954 = vcvt.s32.f32 %v2906
        %v2955 = vcvt.s32.f32 %v2907
        %v2956 = vcvt.s32.f32 %v2908
        %v2957 = vcvt.s32.f32 %v2909
        %v2958 = vcvt.s32.f32 %v2910
        %v2959 = vcvt.s32.f32 %v2911
        %v2960 = vcvt.s32.f32 %v2912
        %v2961 = vcvt.s32.f32 %v2913
        %v2962 = vcvt.s32.f32 %v2914
        %v2963 = vcvt.s32.f32 %v2915
        %v2964 = vcvt.s32.f32 %v2916
        %v2965 = vperm.slane %v2457, 0
        %v2966 = vperm.slane %v2458, 0
        %v2967 = vperm.slane %v2459, 0
        %v2968 = vsub.f32 %v2690, %v2965
        %v2969 = vsub.f32 %v2690, %v2966
        %v2970 = vsub.f32 %v2674, %v2967
        %v2971 = vsub.f32 %v2691, %v2965
        %v2972 = vsub.f32 %v2691, %v2966
        %v2973 = vsub.f32 %v2675, %v2967
        %v2974 = vsub.f32 %v2692, %v2965
        %v2975 = vsub.f32 %v2692, %v2966
        %v2976 = vsub.f32 %v2676, %v2967
        %v2977 = vsub.f32 %v2693, %v2965
        %v2978 = vsub.f32 %v2693, %v2966
        %v2979 = vsub.f32 %v2677, %v2967
        %v2980 = vsub.f32 %v2694, %v2965
        %v2981 = vsub.f32 %v2694, %v2966
        %v2982 = vsub.f32 %v2678, %v2967
        %v2983 = vsub.f32 %v2695, %v2965
        %v2984 = vsub.f32 %v2695, %v2966
        %v2985 = vsub.f32 %v2679, %v2967
        %v2986 = vsub.f32 %v2696, %v2965
        %v2987 = vsub.f32 %v2696, %v2966
        %v2988 = vsub.f32 %v2680, %v2967
        %v2989 = vsub.f32 %v2697, %v2965
        %v2990 = vsub.f32 %v2697, %v2966
        %v2991 = vsub.f32 %v2681, %v2967
        %v2992 = vsub.f32 %v2698, %v2965
        %v2993 = vsub.f32 %v2698, %v2966
        %v2994 = vsub.f32 %v2682, %v2967
        %v2995 = vsub.f32 %v2699, %v2965
        %v2996 = vsub.f32 %v2699, %v2966
        %v2997 = vsub.f32 %v2683, %v2967
        %v2998 = vsub.f32 %v2700, %v2965
        %v2999 = vsub.f32 %v2700, %v2966
        %v3000 = vsub.f32 %v2684, %v2967
        %v3001 = vsub.f32 %v2701, %v2965
        %v3002 = vsub.f32 %v2701, %v2966
        %v3003 = vsub.f32 %v2685, %v2967
        %v3004 = vsub.f32 %v2702, %v2965
        %v3005 = vsub.f32 %v2702, %v2966
        %v3006 = vsub.f32 %v2686, %v2967
        %v3007 = vsub.f32 %v2703, %v2965
        %v3008 = vsub.f32 %v2703, %v2966
        %v3009 = vsub.f32 %v2687, %v2967
        %v3010 = vsub.f32 %v2704, %v2965
        %v3011 = vsub.f32 %v2704, %v2966
        %v3012 = vsub.f32 %v2688, %v2967
        %v3013 = vsub.f32 %v2705, %v2965
        %v3014 = vsub.f32 %v2705, %v2966
        %v3015 = vsub.f32 %v2689, %v2967
        %v3016 = vperm.slane %v2457, 2
        %v3017 = vperm.slane %v2458, 2
        %v3018 = vperm.slane %v2459, 2
        %v3019 = vmul.f32 %v2968, %v3016
        %v3020 = vmul.f32 %v2969, %v3017
        %v3021 = vmul.f32 %v2970, %v3018
        %v3022 = vmul.f32 %v2971, %v3016
        %v3023 = vmul.f32 %v2972, %v3017
        %v3024 = vmul.f32 %v2973, %v3018
        %v3025 = vmul.f32 %v2974, %v3016
        %v3026 = vmul.f32 %v2975, %v3017
        %v3027 = vmul.f32 %v2976, %v3018
        %v3028 = vmul.f32 %v2977, %v3016
        %v3029 = vmul.f32 %v2978, %v3017
        %v3030 = vmul.f32 %v2979, %v3018
        %v3031 = vmul.f32 %v2980, %v3016
        %v3032 = vmul.f32 %v2981, %v3017
        %v3033 = vmul.f32 %v2982, %v3018
        %v3034 = vmul.f32 %v2983, %v3016
        %v3035 = vmul.f32 %v2984, %v3017
        %v3036 = vmul.f32 %v2985, %v3018
        %v3037 = vmul.f32 %v2986, %v3016
        %v3038 = vmul.f32 %v2987, %v3017
        %v3039 = vmul.f32 %v2988, %v3018
        %v3040 = vmul.f32 %v2989, %v3016
        %v3041 = vmul.f32 %v2990, %v3017
        %v3042 = vmul.f32 %v2991, %v3018
        %v3043 = vmul.f32 %v2992, %v3016
        %v3044 = vmul.f32 %v2993, %v3017
        %v3045 = vmul.f32 %v2994, %v3018
        %v3046 = vmul.f32 %v2995, %v3016
        %v3047 = vmul.f32 %v2996, %v3017
        %v3048 = vmul.f32 %v2997, %v3018
        %v3049 = vmul.f32 %v2998, %v3016
        %v3050 = vmul.f32 %v2999, %v3017
        %v3051 = vmul.f32 %v3000, %v3018
        %v3052 = vmul.f32 %v3001, %v3016
        %v3053 = vmul.f32 %v3002, %v3017
        %v3054 = vmul.f32 %v3003, %v3018
        %v3055 = vmul.f32 %v3004, %v3016
        %v3056 = vmul.f32 %v3005, %v3017
        %v3057 = vmul.f32 %v3006, %v3018
        %v3058 = vmul.f32 %v3007, %v3016
        %v3059 = vmul.f32 %v3008, %v3017
        %v3060 = vmul.f32 %v3009, %v3018
        %v3061 = vmul.f32 %v3010, %v3016
        %v3062 = vmul.f32 %v3011, %v3017
        %v3063 = vmul.f32 %v3012, %v3018
        %v3064 = vmul.f32 %v3013, %v3016
        %v3065 = vmul.f32 %v3014, %v3017
        %v3066 = vmul.f32 %v3015, %v3018
        %v3067 = vmul.f32 %v3019, %v2917
        %v3068 = vmul.f32 %v3020, %v2918
        %v3069 = vmul.f32 %v3021, %v2919
        %v3070 = vmul.f32 %v3022, %v2920
        %v3071 = vmul.f32 %v3023, %v2921
        %v3072 = vmul.f32 %v3024, %v2922
        %v3073 = vmul.f32 %v3025, %v2923
        %v3074 = vmul.f32 %v3026, %v2924
        %v3075 = vmul.f32 %v3027, %v2925
        %v3076 = vmul.f32 %v3028, %v2926
        %v3077 = vmul.f32 %v3029, %v2927
        %v3078 = vmul.f32 %v3030, %v2928
        %v3079 = vmul.f32 %v3031, %v2929
        %v3080 = vmul.f32 %v3032, %v2930
        %v3081 = vmul.f32 %v3033, %v2931
        %v3082 = vmul.f32 %v3034, %v2932
        %v3083 = vmul.f32 %v3035, %v2933
        %v3084 = vmul.f32 %v3036, %v2934
        %v3085 = vmul.f32 %v3037, %v2935
        %v3086 = vmul.f32 %v3038, %v2936
        %v3087 = vmul.f32 %v3039, %v2937
        %v3088 = vmul.f32 %v3040, %v2938
        %v3089 = vmul.f32 %v3041, %v2939
        %v3090 = vmul.f32 %v3042, %v2940
        %v3091 = vmul.f32 %v3043, %v2941
        %v3092 = vmul.f32 %v3044, %v2942
        %v3093 = vmul.f32 %v3045, %v2943
        %v3094 = vmul.f32 %v3046, %v2944
        %v3095 = vmul.f32 %v3047, %v2945
        %v3096 = vmul.f32 %v3048, %v2946
        %v3097 = vmul.f32 %v3049, %v2947
        %v3098 = vmul.f32 %v3050, %v2948
        %v3099 = vmul.f32 %v3051, %v2949
        %v3100 = vmul.f32 %v3052, %v2950
        %v3101 = vmul.f32 %v3053, %v2951
        %v3102 = vmul.f32 %v3054, %v2952
        %v3103 = vmul.f32 %v3055, %v2953
        %v3104 = vmul.f32 %v3056, %v2954
        %v3105 = vmul.f32 %v3057, %v2955
        %v3106 = vmul.f32 %v3058, %v2956
        %v3107 = vmul.f32 %v3059, %v2957
        %v3108 = vmul.f32 %v3060, %v2958
        %v3109 = vmul.f32 %v3061, %v2959
        %v3110 = vmul.f32 %v3062, %v2960
        %v3111 = vmul.f32 %v3063, %v2961
        %v3112 = vmul.f32 %v3064, %v2962
        %v3113 = vmul.f32 %v3065, %v2963
        %v3114 = vmul.f32 %v3066, %v2964
        %v3115 = vperm.slane %v2457, 1
        %v3116 = vperm.slane %v2458, 1
        %v3117 = vperm.slane %v2459, 1
        %v3118 = vsub.f32 %v3115, %v2690
        %v3119 = vsub.f32 %v3116, %v2690
        %v3120 = vsub.f32 %v3117, %v2674
        %v3121 = vsub.f32 %v3115, %v2691
        %v3122 = vsub.f32 %v3116, %v2691
        %v3123 = vsub.f32 %v3117, %v2675
        %v3124 = vsub.f32 %v3115, %v2692
        %v3125 = vsub.f32 %v3116, %v2692
        %v3126 = vsub.f32 %v3117, %v2676
        %v3127 = vsub.f32 %v3115, %v2693
        %v3128 = vsub.f32 %v3116, %v2693
        %v3129 = vsub.f32 %v3117, %v2677
        %v3130 = vsub.f32 %v3115, %v2694
        %v3131 = vsub.f32 %v3116, %v2694
        %v3132 = vsub.f32 %v3117, %v2678
        %v3133 = vsub.f32 %v3115, %v2695
        %v3134 = vsub.f32 %v3116, %v2695
        %v3135 = vsub.f32 %v3117, %v2679
        %v3136 = vsub.f32 %v3115, %v2696
        %v3137 = vsub.f32 %v3116, %v2696
        %v3138 = vsub.f32 %v3117, %v2680
        %v3139 = vsub.f32 %v3115, %v2697
        %v3140 = vsub.f32 %v3116, %v2697
        %v3141 = vsub.f32 %v3117, %v2681
        %v3142 = vsub.f32 %v3115, %v2698
        %v3143 = vsub.f32 %v3116, %v2698
        %v3144 = vsub.f32 %v3117, %v2682
        %v3145 = vsub.f32 %v3115, %v2699
        %v3146 = vsub.f32 %v3116, %v2699
        %v3147 = vsub.f32 %v3117, %v2683
        %v3148 = vsub.f32 %v3115, %v2700
        %v3149 = vsub.f32 %v3116, %v2700
        %v3150 = vsub.f32 %v3117, %v2684
        %v3151 = vsub.f32 %v3115, %v2701
        %v3152 = vsub.f32 %v3116, %v2701
        %v3153 = vsub.f32 %v3117, %v2685
        %v3154 = vsub.f32 %v3115, %v2702
        %v3155 = vsub.f32 %v3116, %v2702
        %v3156 = vsub.f32 %v3117, %v2686
        %v3157 = vsub.f32 %v3115, %v2703
        %v3158 = vsub.f32 %v3116, %v2703
        %v3159 = vsub.f32 %v3117, %v2687
        %v3160 = vsub.f32 %v3115, %v2704
        %v3161 = vsub.f32 %v3116, %v2704
        %v3162 = vsub.f32 %v3117, %v2688
        %v3163 = vsub.f32 %v3115, %v2705
        %v3164 = vsub.f32 %v3116, %v2705
        %v3165 = vsub.f32 %v3117, %v2689
        %v3166 = vperm.slane %v2457, 3
        %v3167 = vperm.slane %v2458, 3
        %v3168 = vperm.slane %v2459, 3
        %v3169 = vmul.f32 %v3118, %v3166
        %v3170 = vmul.f32 %v3119, %v3167
        %v3171 = vmul.f32 %v3120, %v3168
        %v3172 = vmul.f32 %v3121, %v3166
        %v3173 = vmul.f32 %v3122, %v3167
        %v3174 = vmul.f32 %v3123, %v3168
        %v3175 = vmul.f32 %v3124, %v3166
        %v3176 = vmul.f32 %v3125, %v3167
        %v3177 = vmul.f32 %v3126, %v3168
        %v3178 = vmul.f32 %v3127, %v3166
        %v3179 = vmul.f32 %v3128, %v3167
        %v3180 = vmul.f32 %v3129, %v3168
        %v3181 = vmul.f32 %v3130, %v3166
        %v3182 = vmul.f32 %v3131, %v3167
        %v3183 = vmul.f32 %v3132, %v3168
        %v3184 = vmul.f32 %v3133, %v3166
        %v3185 = vmul.f32 %v3134, %v3167
        %v3186 = vmul.f32 %v3135, %v3168
        %v3187 = vmul.f32 %v3136, %v3166
        %v3188 = vmul.f32 %v3137, %v3167
        %v3189 = vmul.f32 %v3138, %v3168
        %v3190 = vmul.f32 %v3139, %v3166
        %v3191 = vmul.f32 %v3140, %v3167
        %v3192 = vmul.f32 %v3141, %v3168
        %v3193 = vmul.f32 %v3142, %v3166
        %v3194 = vmul.f32 %v3143, %v3167
        %v3195 = vmul.f32 %v3144, %v3168
        %v3196 = vmul.f32 %v3145, %v3166
        %v3197 = vmul.f32 %v3146, %v3167
        %v3198 = vmul.f32 %v3147, %v3168
        %v3199 = vmul.f32 %v3148, %v3166
        %v3200 = vmul.f32 %v3149, %v3167
        %v3201 = vmul.f32 %v3150, %v3168
        %v3202 = vmul.f32 %v3151, %v3166
        %v3203 = vmul.f32 %v3152, %v3167
        %v3204 = vmul.f32 %v3153, %v3168
        %v3205 = vmul.f32 %v3154, %v3166
        %v3206 = vmul.f32 %v3155, %v3167
        %v3207 = vmul.f32 %v3156, %v3168
        %v3208 = vmul.f32 %v3157, %v3166
        %v3209 = vmul.f32 %v3158, %v3167
        %v3210 = vmul.f32 %v3159, %v3168
        %v3211 = vmul.f32 %v3160, %v3166
        %v3212 = vmul.f32 %v3161, %v3167
        %v3213 = vmul.f32 %v3162, %v3168
        %v3214 = vmul.f32 %v3163, %v3166
        %v3215 = vmul.f32 %v3164, %v3167
        %v3216 = vmul.f32 %v3165, %v3168
        %3265 = vrot.lane.b32.xlu0 %v2917, 96
        %v3266 = vpop.permute.xlu0 %3265
        %3267 = vrot.lane.b32.xlu0 %v2918, 96
        %v3268 = vpop.permute.xlu0 %3267
        %3269 = vrot.lane.b32.xlu0 %v2919, 96
        %v3270 = vpop.permute.xlu0 %3269
        %3271 = vrot.lane.b32.xlu0 %v2920, 96
        %v3272 = vpop.permute.xlu0 %3271
        %3273 = vrot.lane.b32.xlu0 %v2921, 96
        %v3274 = vpop.permute.xlu0 %3273
        %3275 = vrot.lane.b32.xlu0 %v2922, 96
        %v3276 = vpop.permute.xlu0 %3275
        %3277 = vrot.lane.b32.xlu0 %v2923, 96
        %v3278 = vpop.permute.xlu0 %3277
        %3279 = vrot.lane.b32.xlu0 %v2924, 96
        %v3280 = vpop.permute.xlu0 %3279
        %3281 = vrot.lane.b32.xlu0 %v2925, 96
        %v3282 = vpop.permute.xlu0 %3281
        %3283 = vrot.lane.b32.xlu0 %v2926, 96
        %v3284 = vpop.permute.xlu0 %3283
        %3285 = vrot.lane.b32.xlu0 %v2927, 96
        %v3286 = vpop.permute.xlu0 %3285
        %3287 = vrot.lane.b32.xlu0 %v2928, 96
        %v3288 = vpop.permute.xlu0 %3287
        %3289 = vrot.lane.b32.xlu0 %v2929, 96
        %v3290 = vpop.permute.xlu0 %3289
        %3291 = vrot.lane.b32.xlu0 %v2930, 96
        %v3292 = vpop.permute.xlu0 %3291
        %3293 = vrot.lane.b32.xlu0 %v2931, 96
        %v3294 = vpop.permute.xlu0 %3293
        %3295 = vrot.lane.b32.xlu0 %v2932, 96
        %v3296 = vpop.permute.xlu0 %3295
        %3297 = vrot.lane.b32.xlu0 %v2933, 96
        %v3298 = vpop.permute.xlu0 %3297
        %3299 = vrot.lane.b32.xlu0 %v2934, 96
        %v3300 = vpop.permute.xlu0 %3299
        %3301 = vrot.lane.b32.xlu0 %v2935, 96
        %v3302 = vpop.permute.xlu0 %3301
        %3303 = vrot.lane.b32.xlu0 %v2936, 96
        %v3304 = vpop.permute.xlu0 %3303
        %3305 = vrot.lane.b32.xlu0 %v2937, 96
        %v3306 = vpop.permute.xlu0 %3305
        %3307 = vrot.lane.b32.xlu0 %v2938, 96
        %v3308 = vpop.permute.xlu0 %3307
        %3309 = vrot.lane.b32.xlu0 %v2939, 96
        %v3310 = vpop.permute.xlu0 %3309
        %3311 = vrot.lane.b32.xlu0 %v2940, 96
        %v3312 = vpop.permute.xlu0 %3311
        %3313 = vrot.lane.b32.xlu0 %v2941, 96
        %v3314 = vpop.permute.xlu0 %3313
        %3315 = vrot.lane.b32.xlu0 %v2942, 96
        %v3316 = vpop.permute.xlu0 %3315
        %3317 = vrot.lane.b32.xlu0 %v2943, 96
        %v3318 = vpop.permute.xlu0 %3317
        %3319 = vrot.lane.b32.xlu0 %v2944, 96
        %v3320 = vpop.permute.xlu0 %3319
        %3321 = vrot.lane.b32.xlu0 %v2945, 96
        %v3322 = vpop.permute.xlu0 %3321
        %3323 = vrot.lane.b32.xlu0 %v2946, 96
        %v3324 = vpop.permute.xlu0 %3323
        %3325 = vrot.lane.b32.xlu0 %v2947, 96
        %v3326 = vpop.permute.xlu0 %3325
        %3327 = vrot.lane.b32.xlu0 %v2948, 96
        %v3328 = vpop.permute.xlu0 %3327
        %3329 = vrot.lane.b32.xlu0 %v2949, 96
        %v3330 = vpop.permute.xlu0 %3329
        %3331 = vrot.lane.b32.xlu0 %v2950, 96
        %v3332 = vpop.permute.xlu0 %3331
        %3333 = vrot.lane.b32.xlu0 %v2951, 96
        %v3334 = vpop.permute.xlu0 %3333
        %3335 = vrot.lane.b32.xlu0 %v2952, 96
        %v3336 = vpop.permute.xlu0 %3335
        %3337 = vrot.lane.b32.xlu0 %v2953, 96
        %v3338 = vpop.permute.xlu0 %3337
        %3339 = vrot.lane.b32.xlu0 %v2954, 96
        %v3340 = vpop.permute.xlu0 %3339
        %3341 = vrot.lane.b32.xlu0 %v2955, 96
        %v3342 = vpop.permute.xlu0 %3341
        %3343 = vrot.lane.b32.xlu0 %v2956, 96
        %v3344 = vpop.permute.xlu0 %3343
        %3345 = vrot.lane.b32.xlu0 %v2957, 96
        %v3346 = vpop.permute.xlu0 %3345
        %3347 = vrot.lane.b32.xlu0 %v2958, 96
        %v3348 = vpop.permute.xlu0 %3347
        %3349 = vrot.lane.b32.xlu0 %v2959, 96
        %v3350 = vpop.permute.xlu0 %3349
        %3351 = vrot.lane.b32.xlu0 %v2960, 96
        %v3352 = vpop.permute.xlu0 %3351
        %3353 = vrot.lane.b32.xlu0 %v2961, 96
        %v3354 = vpop.permute.xlu0 %3353
        %3355 = vrot.lane.b32.xlu0 %v2962, 96
        %v3356 = vpop.permute.xlu0 %3355
        %3357 = vrot.lane.b32.xlu0 %v2963, 96
        %v3358 = vpop.permute.xlu0 %3357
        %3359 = vrot.lane.b32.xlu0 %v2964, 96
        %v3360 = vpop.permute.xlu0 %3359
        %v3361 = vsel %vm755, %v3266, %v3268
        %v3362 = vsel %vm755, %v3268, %v3270
        %v3363 = vsel %vm755, %v3272, %v3274
        %v3364 = vsel %vm755, %v3274, %v3276
        %v3365 = vsel %vm755, %v3278, %v3280
        %v3366 = vsel %vm755, %v3280, %v3282
        %v3367 = vsel %vm755, %v3284, %v3286
        %v3368 = vsel %vm755, %v3286, %v3288
        %v3369 = vsel %vm755, %v3290, %v3292
        %v3370 = vsel %vm755, %v3292, %v3294
        %v3371 = vsel %vm755, %v3296, %v3298
        %v3372 = vsel %vm755, %v3298, %v3300
        %v3373 = vsel %vm755, %v3302, %v3304
        %v3374 = vsel %vm755, %v3304, %v3306
        %v3375 = vsel %vm755, %v3308, %v3310
        %v3376 = vsel %vm755, %v3310, %v3312
        %v3377 = vsel %vm755, %v3314, %v3316
        %v3378 = vsel %vm755, %v3316, %v3318
        %v3379 = vsel %vm755, %v3320, %v3322
        %v3380 = vsel %vm755, %v3322, %v3324
        %v3381 = vsel %vm755, %v3326, %v3328
        %v3382 = vsel %vm755, %v3328, %v3330
        %v3383 = vsel %vm755, %v3332, %v3334
        %v3384 = vsel %vm755, %v3334, %v3336
        %v3385 = vsel %vm755, %v3338, %v3340
        %v3386 = vsel %vm755, %v3340, %v3342
        %v3387 = vsel %vm755, %v3344, %v3346
        %v3388 = vsel %vm755, %v3346, %v3348
        %v3389 = vsel %vm755, %v3350, %v3352
        %v3390 = vsel %vm755, %v3352, %v3354
        %v3391 = vsel %vm755, %v3356, %v3358
        %v3392 = vsel %vm755, %v3358, %v3360
        %v3441 = vmul.f32 %v3169, %v3361
        %v3442 = vmul.f32 %v3170, %v3362
        %v3443 = vmul.f32 %v3171, %v3270
        %v3444 = vmul.f32 %v3172, %v3363
        %v3445 = vmul.f32 %v3173, %v3364
        %v3446 = vmul.f32 %v3174, %v3276
        %v3447 = vmul.f32 %v3175, %v3365
        %v3448 = vmul.f32 %v3176, %v3366
        %v3449 = vmul.f32 %v3177, %v3282
        %v3450 = vmul.f32 %v3178, %v3367
        %v3451 = vmul.f32 %v3179, %v3368
        %v3452 = vmul.f32 %v3180, %v3288
        %v3453 = vmul.f32 %v3181, %v3369
        %v3454 = vmul.f32 %v3182, %v3370
        %v3455 = vmul.f32 %v3183, %v3294
        %v3456 = vmul.f32 %v3184, %v3371
        %v3457 = vmul.f32 %v3185, %v3372
        %v3458 = vmul.f32 %v3186, %v3300
        %v3459 = vmul.f32 %v3187, %v3373
        %v3460 = vmul.f32 %v3188, %v3374
        %v3461 = vmul.f32 %v3189, %v3306
        %v3462 = vmul.f32 %v3190, %v3375
        %v3463 = vmul.f32 %v3191, %v3376
        %v3464 = vmul.f32 %v3192, %v3312
        %v3465 = vmul.f32 %v3193, %v3377
        %v3466 = vmul.f32 %v3194, %v3378
        %v3467 = vmul.f32 %v3195, %v3318
        %v3468 = vmul.f32 %v3196, %v3379
        %v3469 = vmul.f32 %v3197, %v3380
        %v3470 = vmul.f32 %v3198, %v3324
        %v3471 = vmul.f32 %v3199, %v3381
        %v3472 = vmul.f32 %v3200, %v3382
        %v3473 = vmul.f32 %v3201, %v3330
        %v3474 = vmul.f32 %v3202, %v3383
        %v3475 = vmul.f32 %v3203, %v3384
        %v3476 = vmul.f32 %v3204, %v3336
        %v3477 = vmul.f32 %v3205, %v3385
        %v3478 = vmul.f32 %v3206, %v3386
        %v3479 = vmul.f32 %v3207, %v3342
        %v3480 = vmul.f32 %v3208, %v3387
        %v3481 = vmul.f32 %v3209, %v3388
        %v3482 = vmul.f32 %v3210, %v3348
        %v3483 = vmul.f32 %v3211, %v3389
        %v3484 = vmul.f32 %v3212, %v3390
        %v3485 = vmul.f32 %v3213, %v3354
        %v3486 = vmul.f32 %v3214, %v3391
        %v3487 = vmul.f32 %v3215, %v3392
        %v3488 = vmul.f32 %v3216, %v3360
        %v3489 = vadd.f32 %v3067, %v3441
        %v3490 = vadd.f32 %v3068, %v3442
        %v3491 = vadd.f32 %v3069, %v3443
        %v3492 = vadd.f32 %v3070, %v3444
        %v3493 = vadd.f32 %v3071, %v3445
        %v3494 = vadd.f32 %v3072, %v3446
        %v3495 = vadd.f32 %v3073, %v3447
        %v3496 = vadd.f32 %v3074, %v3448
        %v3497 = vadd.f32 %v3075, %v3449
        %v3498 = vadd.f32 %v3076, %v3450
        %v3499 = vadd.f32 %v3077, %v3451
        %v3500 = vadd.f32 %v3078, %v3452
        %v3501 = vadd.f32 %v3079, %v3453
        %v3502 = vadd.f32 %v3080, %v3454
        %v3503 = vadd.f32 %v3081, %v3455
        %v3504 = vadd.f32 %v3082, %v3456
        %v3505 = vadd.f32 %v3083, %v3457
        %v3506 = vadd.f32 %v3084, %v3458
        %v3507 = vadd.f32 %v3085, %v3459
        %v3508 = vadd.f32 %v3086, %v3460
        %v3509 = vadd.f32 %v3087, %v3461
        %v3510 = vadd.f32 %v3088, %v3462
        %v3511 = vadd.f32 %v3089, %v3463
        %v3512 = vadd.f32 %v3090, %v3464
        %v3513 = vadd.f32 %v3091, %v3465
        %v3514 = vadd.f32 %v3092, %v3466
        %v3515 = vadd.f32 %v3093, %v3467
        %v3516 = vadd.f32 %v3094, %v3468
        %v3517 = vadd.f32 %v3095, %v3469
        %v3518 = vadd.f32 %v3096, %v3470
        %v3519 = vadd.f32 %v3097, %v3471
        %v3520 = vadd.f32 %v3098, %v3472
        %v3521 = vadd.f32 %v3099, %v3473
        %v3522 = vadd.f32 %v3100, %v3474
        %v3523 = vadd.f32 %v3101, %v3475
        %v3524 = vadd.f32 %v3102, %v3476
        %v3525 = vadd.f32 %v3103, %v3477
        %v3526 = vadd.f32 %v3104, %v3478
        %v3527 = vadd.f32 %v3105, %v3479
        %v3528 = vadd.f32 %v3106, %v3480
        %v3529 = vadd.f32 %v3107, %v3481
        %v3530 = vadd.f32 %v3108, %v3482
        %v3531 = vadd.f32 %v3109, %v3483
        %v3532 = vadd.f32 %v3110, %v3484
        %v3533 = vadd.f32 %v3111, %v3485
        %v3534 = vadd.f32 %v3112, %v3486
        %v3535 = vadd.f32 %v3113, %v3487
        %v3536 = vadd.f32 %v3114, %v3488
        %v3537 = vperm.slane %v2457, 4
        %v3538 = vperm.slane %v2458, 4
        %v3539 = vperm.slane %v2459, 4
        %v3540 = vsub.f32 %v2690, %v3537
        %v3541 = vsub.f32 %v2690, %v3538
        %v3542 = vsub.f32 %v2674, %v3539
        %v3543 = vsub.f32 %v2691, %v3537
        %v3544 = vsub.f32 %v2691, %v3538
        %v3545 = vsub.f32 %v2675, %v3539
        %v3546 = vsub.f32 %v2692, %v3537
        %v3547 = vsub.f32 %v2692, %v3538
        %v3548 = vsub.f32 %v2676, %v3539
        %v3549 = vsub.f32 %v2693, %v3537
        %v3550 = vsub.f32 %v2693, %v3538
        %v3551 = vsub.f32 %v2677, %v3539
        %v3552 = vsub.f32 %v2694, %v3537
        %v3553 = vsub.f32 %v2694, %v3538
        %v3554 = vsub.f32 %v2678, %v3539
        %v3555 = vsub.f32 %v2695, %v3537
        %v3556 = vsub.f32 %v2695, %v3538
        %v3557 = vsub.f32 %v2679, %v3539
        %v3558 = vsub.f32 %v2696, %v3537
        %v3559 = vsub.f32 %v2696, %v3538
        %v3560 = vsub.f32 %v2680, %v3539
        %v3561 = vsub.f32 %v2697, %v3537
        %v3562 = vsub.f32 %v2697, %v3538
        %v3563 = vsub.f32 %v2681, %v3539
        %v3564 = vsub.f32 %v2698, %v3537
        %v3565 = vsub.f32 %v2698, %v3538
        %v3566 = vsub.f32 %v2682, %v3539
        %v3567 = vsub.f32 %v2699, %v3537
        %v3568 = vsub.f32 %v2699, %v3538
        %v3569 = vsub.f32 %v2683, %v3539
        %v3570 = vsub.f32 %v2700, %v3537
        %v3571 = vsub.f32 %v2700, %v3538
        %v3572 = vsub.f32 %v2684, %v3539
        %v3573 = vsub.f32 %v2701, %v3537
        %v3574 = vsub.f32 %v2701, %v3538
        %v3575 = vsub.f32 %v2685, %v3539
        %v3576 = vsub.f32 %v2702, %v3537
        %v3577 = vsub.f32 %v2702, %v3538
        %v3578 = vsub.f32 %v2686, %v3539
        %v3579 = vsub.f32 %v2703, %v3537
        %v3580 = vsub.f32 %v2703, %v3538
        %v3581 = vsub.f32 %v2687, %v3539
        %v3582 = vsub.f32 %v2704, %v3537
        %v3583 = vsub.f32 %v2704, %v3538
        %v3584 = vsub.f32 %v2688, %v3539
        %v3585 = vsub.f32 %v2705, %v3537
        %v3586 = vsub.f32 %v2705, %v3538
        %v3587 = vsub.f32 %v2689, %v3539
        %v3588 = vperm.slane %v2457, 6
        %v3589 = vperm.slane %v2458, 6
        %v3590 = vperm.slane %v2459, 6
        %v3591 = vmul.f32 %v3540, %v3588
        %v3592 = vmul.f32 %v3541, %v3589
        %v3593 = vmul.f32 %v3542, %v3590
        %v3594 = vmul.f32 %v3543, %v3588
        %v3595 = vmul.f32 %v3544, %v3589
        %v3596 = vmul.f32 %v3545, %v3590
        %v3597 = vmul.f32 %v3546, %v3588
        %v3598 = vmul.f32 %v3547, %v3589
        %v3599 = vmul.f32 %v3548, %v3590
        %v3600 = vmul.f32 %v3549, %v3588
        %v3601 = vmul.f32 %v3550, %v3589
        %v3602 = vmul.f32 %v3551, %v3590
        %v3603 = vmul.f32 %v3552, %v3588
        %v3604 = vmul.f32 %v3553, %v3589
        %v3605 = vmul.f32 %v3554, %v3590
        %v3606 = vmul.f32 %v3555, %v3588
        %v3607 = vmul.f32 %v3556, %v3589
        %v3608 = vmul.f32 %v3557, %v3590
        %v3609 = vmul.f32 %v3558, %v3588
        %v3610 = vmul.f32 %v3559, %v3589
        %v3611 = vmul.f32 %v3560, %v3590
        %v3612 = vmul.f32 %v3561, %v3588
        %v3613 = vmul.f32 %v3562, %v3589
        %v3614 = vmul.f32 %v3563, %v3590
        %v3615 = vmul.f32 %v3564, %v3588
        %v3616 = vmul.f32 %v3565, %v3589
        %v3617 = vmul.f32 %v3566, %v3590
        %v3618 = vmul.f32 %v3567, %v3588
        %v3619 = vmul.f32 %v3568, %v3589
        %v3620 = vmul.f32 %v3569, %v3590
        %v3621 = vmul.f32 %v3570, %v3588
        %v3622 = vmul.f32 %v3571, %v3589
        %v3623 = vmul.f32 %v3572, %v3590
        %v3624 = vmul.f32 %v3573, %v3588
        %v3625 = vmul.f32 %v3574, %v3589
        %v3626 = vmul.f32 %v3575, %v3590
        %v3627 = vmul.f32 %v3576, %v3588
        %v3628 = vmul.f32 %v3577, %v3589
        %v3629 = vmul.f32 %v3578, %v3590
        %v3630 = vmul.f32 %v3579, %v3588
        %v3631 = vmul.f32 %v3580, %v3589
        %v3632 = vmul.f32 %v3581, %v3590
        %v3633 = vmul.f32 %v3582, %v3588
        %v3634 = vmul.f32 %v3583, %v3589
        %v3635 = vmul.f32 %v3584, %v3590
        %v3636 = vmul.f32 %v3585, %v3588
        %v3637 = vmul.f32 %v3586, %v3589
        %v3638 = vmul.f32 %v3587, %v3590
        %v3639 = vmul.f32 %v3591, %v3489
        %v3640 = vmul.f32 %v3592, %v3490
        %v3641 = vmul.f32 %v3593, %v3491
        %v3642 = vmul.f32 %v3594, %v3492
        %v3643 = vmul.f32 %v3595, %v3493
        %v3644 = vmul.f32 %v3596, %v3494
        %v3645 = vmul.f32 %v3597, %v3495
        %v3646 = vmul.f32 %v3598, %v3496
        %v3647 = vmul.f32 %v3599, %v3497
        %v3648 = vmul.f32 %v3600, %v3498
        %v3649 = vmul.f32 %v3601, %v3499
        %v3650 = vmul.f32 %v3602, %v3500
        %v3651 = vmul.f32 %v3603, %v3501
        %v3652 = vmul.f32 %v3604, %v3502
        %v3653 = vmul.f32 %v3605, %v3503
        %v3654 = vmul.f32 %v3606, %v3504
        %v3655 = vmul.f32 %v3607, %v3505
        %v3656 = vmul.f32 %v3608, %v3506
        %v3657 = vmul.f32 %v3609, %v3507
        %v3658 = vmul.f32 %v3610, %v3508
        %v3659 = vmul.f32 %v3611, %v3509
        %v3660 = vmul.f32 %v3612, %v3510
        %v3661 = vmul.f32 %v3613, %v3511
        %v3662 = vmul.f32 %v3614, %v3512
        %v3663 = vmul.f32 %v3615, %v3513
        %v3664 = vmul.f32 %v3616, %v3514
        %v3665 = vmul.f32 %v3617, %v3515
        %v3666 = vmul.f32 %v3618, %v3516
        %v3667 = vmul.f32 %v3619, %v3517
        %v3668 = vmul.f32 %v3620, %v3518
        %v3669 = vmul.f32 %v3621, %v3519
        %v3670 = vmul.f32 %v3622, %v3520
        %v3671 = vmul.f32 %v3623, %v3521
        %v3672 = vmul.f32 %v3624, %v3522
        %v3673 = vmul.f32 %v3625, %v3523
        %v3674 = vmul.f32 %v3626, %v3524
        %v3675 = vmul.f32 %v3627, %v3525
        %v3676 = vmul.f32 %v3628, %v3526
        %v3677 = vmul.f32 %v3629, %v3527
        %v3678 = vmul.f32 %v3630, %v3528
        %v3679 = vmul.f32 %v3631, %v3529
        %v3680 = vmul.f32 %v3632, %v3530
        %v3681 = vmul.f32 %v3633, %v3531
        %v3682 = vmul.f32 %v3634, %v3532
        %v3683 = vmul.f32 %v3635, %v3533
        %v3684 = vmul.f32 %v3636, %v3534
        %v3685 = vmul.f32 %v3637, %v3535
        %v3686 = vmul.f32 %v3638, %v3536
        %v3687 = vperm.slane %v2457, 5
        %v3688 = vperm.slane %v2458, 5
        %v3689 = vperm.slane %v2459, 5
        %v3690 = vsub.f32 %v3687, %v2690
        %v3691 = vsub.f32 %v3688, %v2690
        %v3692 = vsub.f32 %v3689, %v2674
        %v3693 = vsub.f32 %v3687, %v2691
        %v3694 = vsub.f32 %v3688, %v2691
        %v3695 = vsub.f32 %v3689, %v2675
        %v3696 = vsub.f32 %v3687, %v2692
        %v3697 = vsub.f32 %v3688, %v2692
        %v3698 = vsub.f32 %v3689, %v2676
        %v3699 = vsub.f32 %v3687, %v2693
        %v3700 = vsub.f32 %v3688, %v2693
        %v3701 = vsub.f32 %v3689, %v2677
        %v3702 = vsub.f32 %v3687, %v2694
        %v3703 = vsub.f32 %v3688, %v2694
        %v3704 = vsub.f32 %v3689, %v2678
        %v3705 = vsub.f32 %v3687, %v2695
        %v3706 = vsub.f32 %v3688, %v2695
        %v3707 = vsub.f32 %v3689, %v2679
        %v3708 = vsub.f32 %v3687, %v2696
        %v3709 = vsub.f32 %v3688, %v2696
        %v3710 = vsub.f32 %v3689, %v2680
        %v3711 = vsub.f32 %v3687, %v2697
        %v3712 = vsub.f32 %v3688, %v2697
        %v3713 = vsub.f32 %v3689, %v2681
        %v3714 = vsub.f32 %v3687, %v2698
        %v3715 = vsub.f32 %v3688, %v2698
        %v3716 = vsub.f32 %v3689, %v2682
        %v3717 = vsub.f32 %v3687, %v2699
        %v3718 = vsub.f32 %v3688, %v2699
        %v3719 = vsub.f32 %v3689, %v2683
        %v3720 = vsub.f32 %v3687, %v2700
        %v3721 = vsub.f32 %v3688, %v2700
        %v3722 = vsub.f32 %v3689, %v2684
        %v3723 = vsub.f32 %v3687, %v2701
        %v3724 = vsub.f32 %v3688, %v2701
        %v3725 = vsub.f32 %v3689, %v2685
        %v3726 = vsub.f32 %v3687, %v2702
        %v3727 = vsub.f32 %v3688, %v2702
        %v3728 = vsub.f32 %v3689, %v2686
        %v3729 = vsub.f32 %v3687, %v2703
        %v3730 = vsub.f32 %v3688, %v2703
        %v3731 = vsub.f32 %v3689, %v2687
        %v3732 = vsub.f32 %v3687, %v2704
        %v3733 = vsub.f32 %v3688, %v2704
        %v3734 = vsub.f32 %v3689, %v2688
        %v3735 = vsub.f32 %v3687, %v2705
        %v3736 = vsub.f32 %v3688, %v2705
        %v3737 = vsub.f32 %v3689, %v2689
        %v3738 = vperm.slane %v2457, 7
        %v3739 = vperm.slane %v2458, 7
        %v3740 = vperm.slane %v2459, 7
        %v3741 = vmul.f32 %v3690, %v3738
        %v3742 = vmul.f32 %v3691, %v3739
        %v3743 = vmul.f32 %v3692, %v3740
        %v3744 = vmul.f32 %v3693, %v3738
        %v3745 = vmul.f32 %v3694, %v3739
        %v3746 = vmul.f32 %v3695, %v3740
        %v3747 = vmul.f32 %v3696, %v3738
        %v3748 = vmul.f32 %v3697, %v3739
        %v3749 = vmul.f32 %v3698, %v3740
        %v3750 = vmul.f32 %v3699, %v3738
        %v3751 = vmul.f32 %v3700, %v3739
        %v3752 = vmul.f32 %v3701, %v3740
        %v3753 = vmul.f32 %v3702, %v3738
        %v3754 = vmul.f32 %v3703, %v3739
        %v3755 = vmul.f32 %v3704, %v3740
        %v3756 = vmul.f32 %v3705, %v3738
        %v3757 = vmul.f32 %v3706, %v3739
        %v3758 = vmul.f32 %v3707, %v3740
        %v3759 = vmul.f32 %v3708, %v3738
        %v3760 = vmul.f32 %v3709, %v3739
        %v3761 = vmul.f32 %v3710, %v3740
        %v3762 = vmul.f32 %v3711, %v3738
        %v3763 = vmul.f32 %v3712, %v3739
        %v3764 = vmul.f32 %v3713, %v3740
        %v3765 = vmul.f32 %v3714, %v3738
        %v3766 = vmul.f32 %v3715, %v3739
        %v3767 = vmul.f32 %v3716, %v3740
        %v3768 = vmul.f32 %v3717, %v3738
        %v3769 = vmul.f32 %v3718, %v3739
        %v3770 = vmul.f32 %v3719, %v3740
        %v3771 = vmul.f32 %v3720, %v3738
        %v3772 = vmul.f32 %v3721, %v3739
        %v3773 = vmul.f32 %v3722, %v3740
        %v3774 = vmul.f32 %v3723, %v3738
        %v3775 = vmul.f32 %v3724, %v3739
        %v3776 = vmul.f32 %v3725, %v3740
        %v3777 = vmul.f32 %v3726, %v3738
        %v3778 = vmul.f32 %v3727, %v3739
        %v3779 = vmul.f32 %v3728, %v3740
        %v3780 = vmul.f32 %v3729, %v3738
        %v3781 = vmul.f32 %v3730, %v3739
        %v3782 = vmul.f32 %v3731, %v3740
        %v3783 = vmul.f32 %v3732, %v3738
        %v3784 = vmul.f32 %v3733, %v3739
        %v3785 = vmul.f32 %v3734, %v3740
        %v3786 = vmul.f32 %v3735, %v3738
        %v3787 = vmul.f32 %v3736, %v3739
        %v3788 = vmul.f32 %v3737, %v3740
        %3837 = vrot.lane.b32.xlu0 %v3489, 96
        %v3838 = vpop.permute.xlu0 %3837
        %3839 = vrot.lane.b32.xlu0 %v3490, 96
        %v3840 = vpop.permute.xlu0 %3839
        %3841 = vrot.lane.b32.xlu0 %v3491, 96
        %v3842 = vpop.permute.xlu0 %3841
        %3843 = vrot.lane.b32.xlu0 %v3492, 96
        %v3844 = vpop.permute.xlu0 %3843
        %3845 = vrot.lane.b32.xlu0 %v3493, 96
        %v3846 = vpop.permute.xlu0 %3845
        %3847 = vrot.lane.b32.xlu0 %v3494, 96
        %v3848 = vpop.permute.xlu0 %3847
        %3849 = vrot.lane.b32.xlu0 %v3495, 96
        %v3850 = vpop.permute.xlu0 %3849
        %3851 = vrot.lane.b32.xlu0 %v3496, 96
        %v3852 = vpop.permute.xlu0 %3851
        %3853 = vrot.lane.b32.xlu0 %v3497, 96
        %v3854 = vpop.permute.xlu0 %3853
        %3855 = vrot.lane.b32.xlu0 %v3498, 96
        %v3856 = vpop.permute.xlu0 %3855
        %3857 = vrot.lane.b32.xlu0 %v3499, 96
        %v3858 = vpop.permute.xlu0 %3857
        %3859 = vrot.lane.b32.xlu0 %v3500, 96
        %v3860 = vpop.permute.xlu0 %3859
        %3861 = vrot.lane.b32.xlu0 %v3501, 96
        %v3862 = vpop.permute.xlu0 %3861
        %3863 = vrot.lane.b32.xlu0 %v3502, 96
        %v3864 = vpop.permute.xlu0 %3863
        %3865 = vrot.lane.b32.xlu0 %v3503, 96
        %v3866 = vpop.permute.xlu0 %3865
        %3867 = vrot.lane.b32.xlu0 %v3504, 96
        %v3868 = vpop.permute.xlu0 %3867
        %3869 = vrot.lane.b32.xlu0 %v3505, 96
        %v3870 = vpop.permute.xlu0 %3869
        %3871 = vrot.lane.b32.xlu0 %v3506, 96
        %v3872 = vpop.permute.xlu0 %3871
        %3873 = vrot.lane.b32.xlu0 %v3507, 96
        %v3874 = vpop.permute.xlu0 %3873
        %3875 = vrot.lane.b32.xlu0 %v3508, 96
        %v3876 = vpop.permute.xlu0 %3875
        %3877 = vrot.lane.b32.xlu0 %v3509, 96
        %v3878 = vpop.permute.xlu0 %3877
        %3879 = vrot.lane.b32.xlu0 %v3510, 96
        %v3880 = vpop.permute.xlu0 %3879
        %3881 = vrot.lane.b32.xlu0 %v3511, 96
        %v3882 = vpop.permute.xlu0 %3881
        %3883 = vrot.lane.b32.xlu0 %v3512, 96
        %v3884 = vpop.permute.xlu0 %3883
        %3885 = vrot.lane.b32.xlu0 %v3513, 96
        %v3886 = vpop.permute.xlu0 %3885
        %3887 = vrot.lane.b32.xlu0 %v3514, 96
        %v3888 = vpop.permute.xlu0 %3887
        %3889 = vrot.lane.b32.xlu0 %v3515, 96
        %v3890 = vpop.permute.xlu0 %3889
        %3891 = vrot.lane.b32.xlu0 %v3516, 96
        %v3892 = vpop.permute.xlu0 %3891
        %3893 = vrot.lane.b32.xlu0 %v3517, 96
        %v3894 = vpop.permute.xlu0 %3893
        %3895 = vrot.lane.b32.xlu0 %v3518, 96
        %v3896 = vpop.permute.xlu0 %3895
        %3897 = vrot.lane.b32.xlu0 %v3519, 96
        %v3898 = vpop.permute.xlu0 %3897
        %3899 = vrot.lane.b32.xlu0 %v3520, 96
        %v3900 = vpop.permute.xlu0 %3899
        %3901 = vrot.lane.b32.xlu0 %v3521, 96
        %v3902 = vpop.permute.xlu0 %3901
        %3903 = vrot.lane.b32.xlu0 %v3522, 96
        %v3904 = vpop.permute.xlu0 %3903
        %3905 = vrot.lane.b32.xlu0 %v3523, 96
        %v3906 = vpop.permute.xlu0 %3905
        %3907 = vrot.lane.b32.xlu0 %v3524, 96
        %v3908 = vpop.permute.xlu0 %3907
        %3909 = vrot.lane.b32.xlu0 %v3525, 96
        %v3910 = vpop.permute.xlu0 %3909
        %3911 = vrot.lane.b32.xlu0 %v3526, 96
        %v3912 = vpop.permute.xlu0 %3911
        %3913 = vrot.lane.b32.xlu0 %v3527, 96
        %v3914 = vpop.permute.xlu0 %3913
        %3915 = vrot.lane.b32.xlu0 %v3528, 96
        %v3916 = vpop.permute.xlu0 %3915
        %3917 = vrot.lane.b32.xlu0 %v3529, 96
        %v3918 = vpop.permute.xlu0 %3917
        %3919 = vrot.lane.b32.xlu0 %v3530, 96
        %v3920 = vpop.permute.xlu0 %3919
        %3921 = vrot.lane.b32.xlu0 %v3531, 96
        %v3922 = vpop.permute.xlu0 %3921
        %3923 = vrot.lane.b32.xlu0 %v3532, 96
        %v3924 = vpop.permute.xlu0 %3923
        %3925 = vrot.lane.b32.xlu0 %v3533, 96
        %v3926 = vpop.permute.xlu0 %3925
        %3927 = vrot.lane.b32.xlu0 %v3534, 96
        %v3928 = vpop.permute.xlu0 %3927
        %3929 = vrot.lane.b32.xlu0 %v3535, 96
        %v3930 = vpop.permute.xlu0 %3929
        %3931 = vrot.lane.b32.xlu0 %v3536, 96
        %v3932 = vpop.permute.xlu0 %3931
        %v3933 = vsel %vm755, %v3838, %v3840
        %v3934 = vsel %vm755, %v3840, %v3842
        %v3935 = vsel %vm755, %v3844, %v3846
        %v3936 = vsel %vm755, %v3846, %v3848
        %v3937 = vsel %vm755, %v3850, %v3852
        %v3938 = vsel %vm755, %v3852, %v3854
        %v3939 = vsel %vm755, %v3856, %v3858
        %v3940 = vsel %vm755, %v3858, %v3860
        %v3941 = vsel %vm755, %v3862, %v3864
        %v3942 = vsel %vm755, %v3864, %v3866
        %v3943 = vsel %vm755, %v3868, %v3870
        %v3944 = vsel %vm755, %v3870, %v3872
        %v3945 = vsel %vm755, %v3874, %v3876
        %v3946 = vsel %vm755, %v3876, %v3878
        %v3947 = vsel %vm755, %v3880, %v3882
        %v3948 = vsel %vm755, %v3882, %v3884
        %v3949 = vsel %vm755, %v3886, %v3888
        %v3950 = vsel %vm755, %v3888, %v3890
        %v3951 = vsel %vm755, %v3892, %v3894
        %v3952 = vsel %vm755, %v3894, %v3896
        %v3953 = vsel %vm755, %v3898, %v3900
        %v3954 = vsel %vm755, %v3900, %v3902
        %v3955 = vsel %vm755, %v3904, %v3906
        %v3956 = vsel %vm755, %v3906, %v3908
        %v3957 = vsel %vm755, %v3910, %v3912
        %v3958 = vsel %vm755, %v3912, %v3914
        %v3959 = vsel %vm755, %v3916, %v3918
        %v3960 = vsel %vm755, %v3918, %v3920
        %v3961 = vsel %vm755, %v3922, %v3924
        %v3962 = vsel %vm755, %v3924, %v3926
        %v3963 = vsel %vm755, %v3928, %v3930
        %v3964 = vsel %vm755, %v3930, %v3932
        %v4013 = vmul.f32 %v3741, %v3933
        %v4014 = vmul.f32 %v3742, %v3934
        %v4015 = vmul.f32 %v3743, %v3842
        %v4016 = vmul.f32 %v3744, %v3935
        %v4017 = vmul.f32 %v3745, %v3936
        %v4018 = vmul.f32 %v3746, %v3848
        %v4019 = vmul.f32 %v3747, %v3937
        %v4020 = vmul.f32 %v3748, %v3938
        %v4021 = vmul.f32 %v3749, %v3854
        %v4022 = vmul.f32 %v3750, %v3939
        %v4023 = vmul.f32 %v3751, %v3940
        %v4024 = vmul.f32 %v3752, %v3860
        %v4025 = vmul.f32 %v3753, %v3941
        %v4026 = vmul.f32 %v3754, %v3942
        %v4027 = vmul.f32 %v3755, %v3866
        %v4028 = vmul.f32 %v3756, %v3943
        %v4029 = vmul.f32 %v3757, %v3944
        %v4030 = vmul.f32 %v3758, %v3872
        %v4031 = vmul.f32 %v3759, %v3945
        %v4032 = vmul.f32 %v3760, %v3946
        %v4033 = vmul.f32 %v3761, %v3878
        %v4034 = vmul.f32 %v3762, %v3947
        %v4035 = vmul.f32 %v3763, %v3948
        %v4036 = vmul.f32 %v3764, %v3884
        %v4037 = vmul.f32 %v3765, %v3949
        %v4038 = vmul.f32 %v3766, %v3950
        %v4039 = vmul.f32 %v3767, %v3890
        %v4040 = vmul.f32 %v3768, %v3951
        %v4041 = vmul.f32 %v3769, %v3952
        %v4042 = vmul.f32 %v3770, %v3896
        %v4043 = vmul.f32 %v3771, %v3953
        %v4044 = vmul.f32 %v3772, %v3954
        %v4045 = vmul.f32 %v3773, %v3902
        %v4046 = vmul.f32 %v3774, %v3955
        %v4047 = vmul.f32 %v3775, %v3956
        %v4048 = vmul.f32 %v3776, %v3908
        %v4049 = vmul.f32 %v3777, %v3957
        %v4050 = vmul.f32 %v3778, %v3958
        %v4051 = vmul.f32 %v3779, %v3914
        %v4052 = vmul.f32 %v3780, %v3959
        %v4053 = vmul.f32 %v3781, %v3960
        %v4054 = vmul.f32 %v3782, %v3920
        %v4055 = vmul.f32 %v3783, %v3961
        %v4056 = vmul.f32 %v3784, %v3962
        %v4057 = vmul.f32 %v3785, %v3926
        %v4058 = vmul.f32 %v3786, %v3963
        %v4059 = vmul.f32 %v3787, %v3964
        %v4060 = vmul.f32 %v3788, %v3932
        %v4061 = vadd.f32 %v3639, %v4013
        %v4062 = vadd.f32 %v3640, %v4014
        %v4063 = vadd.f32 %v3641, %v4015
        %v4064 = vadd.f32 %v3642, %v4016
        %v4065 = vadd.f32 %v3643, %v4017
        %v4066 = vadd.f32 %v3644, %v4018
        %v4067 = vadd.f32 %v3645, %v4019
        %v4068 = vadd.f32 %v3646, %v4020
        %v4069 = vadd.f32 %v3647, %v4021
        %v4070 = vadd.f32 %v3648, %v4022
        %v4071 = vadd.f32 %v3649, %v4023
        %v4072 = vadd.f32 %v3650, %v4024
        %v4073 = vadd.f32 %v3651, %v4025
        %v4074 = vadd.f32 %v3652, %v4026
        %v4075 = vadd.f32 %v3653, %v4027
        %v4076 = vadd.f32 %v3654, %v4028
        %v4077 = vadd.f32 %v3655, %v4029
        %v4078 = vadd.f32 %v3656, %v4030
        %v4079 = vadd.f32 %v3657, %v4031
        %v4080 = vadd.f32 %v3658, %v4032
        %v4081 = vadd.f32 %v3659, %v4033
        %v4082 = vadd.f32 %v3660, %v4034
        %v4083 = vadd.f32 %v3661, %v4035
        %v4084 = vadd.f32 %v3662, %v4036
        %v4085 = vadd.f32 %v3663, %v4037
        %v4086 = vadd.f32 %v3664, %v4038
        %v4087 = vadd.f32 %v3665, %v4039
        %v4088 = vadd.f32 %v3666, %v4040
        %v4089 = vadd.f32 %v3667, %v4041
        %v4090 = vadd.f32 %v3668, %v4042
        %v4091 = vadd.f32 %v3669, %v4043
        %v4092 = vadd.f32 %v3670, %v4044
        %v4093 = vadd.f32 %v3671, %v4045
        %v4094 = vadd.f32 %v3672, %v4046
        %v4095 = vadd.f32 %v3673, %v4047
        %v4096 = vadd.f32 %v3674, %v4048
        %v4097 = vadd.f32 %v3675, %v4049
        %v4098 = vadd.f32 %v3676, %v4050
        %v4099 = vadd.f32 %v3677, %v4051
        %v4100 = vadd.f32 %v3678, %v4052
        %v4101 = vadd.f32 %v3679, %v4053
        %v4102 = vadd.f32 %v3680, %v4054
        %v4103 = vadd.f32 %v3681, %v4055
        %v4104 = vadd.f32 %v3682, %v4056
        %v4105 = vadd.f32 %v3683, %v4057
        %v4106 = vadd.f32 %v3684, %v4058
        %v4107 = vadd.f32 %v3685, %v4059
        %v4108 = vadd.f32 %v3686, %v4060
        %v4109 = vperm.slane %v2460, 0
        %v4110 = vperm.slane %v2461, 0
        %v4111 = vsub.f32 %v2690, %v4109
        %v4112 = vsub.f32 %v2690, %v4110
        %v4113 = vsub.f32 %v2691, %v4109
        %v4114 = vsub.f32 %v2691, %v4110
        %v4115 = vsub.f32 %v2692, %v4109
        %v4116 = vsub.f32 %v2692, %v4110
        %v4117 = vsub.f32 %v2693, %v4109
        %v4118 = vsub.f32 %v2693, %v4110
        %v4119 = vsub.f32 %v2694, %v4109
        %v4120 = vsub.f32 %v2694, %v4110
        %v4121 = vsub.f32 %v2695, %v4109
        %v4122 = vsub.f32 %v2695, %v4110
        %v4123 = vsub.f32 %v2696, %v4109
        %v4124 = vsub.f32 %v2696, %v4110
        %v4125 = vsub.f32 %v2697, %v4109
        %v4126 = vsub.f32 %v2697, %v4110
        %v4127 = vsub.f32 %v2698, %v4109
        %v4128 = vsub.f32 %v2698, %v4110
        %v4129 = vsub.f32 %v2699, %v4109
        %v4130 = vsub.f32 %v2699, %v4110
        %v4131 = vsub.f32 %v2700, %v4109
        %v4132 = vsub.f32 %v2700, %v4110
        %v4133 = vsub.f32 %v2701, %v4109
        %v4134 = vsub.f32 %v2701, %v4110
        %v4135 = vsub.f32 %v2702, %v4109
        %v4136 = vsub.f32 %v2702, %v4110
        %v4137 = vsub.f32 %v2703, %v4109
        %v4138 = vsub.f32 %v2703, %v4110
        %v4139 = vsub.f32 %v2704, %v4109
        %v4140 = vsub.f32 %v2704, %v4110
        %v4141 = vsub.f32 %v2705, %v4109
        %v4142 = vsub.f32 %v2705, %v4110
        %v4143 = vperm.slane %v2460, 2
        %v4144 = vperm.slane %v2461, 2
        %v4145 = vmul.f32 %v4111, %v4143
        %v4146 = vmul.f32 %v4112, %v4144
        %v4147 = vmul.f32 %v4113, %v4143
        %v4148 = vmul.f32 %v4114, %v4144
        %v4149 = vmul.f32 %v4115, %v4143
        %v4150 = vmul.f32 %v4116, %v4144
        %v4151 = vmul.f32 %v4117, %v4143
        %v4152 = vmul.f32 %v4118, %v4144
        %v4153 = vmul.f32 %v4119, %v4143
        %v4154 = vmul.f32 %v4120, %v4144
        %v4155 = vmul.f32 %v4121, %v4143
        %v4156 = vmul.f32 %v4122, %v4144
        %v4157 = vmul.f32 %v4123, %v4143
        %v4158 = vmul.f32 %v4124, %v4144
        %v4159 = vmul.f32 %v4125, %v4143
        %v4160 = vmul.f32 %v4126, %v4144
        %v4161 = vmul.f32 %v4127, %v4143
        %v4162 = vmul.f32 %v4128, %v4144
        %v4163 = vmul.f32 %v4129, %v4143
        %v4164 = vmul.f32 %v4130, %v4144
        %v4165 = vmul.f32 %v4131, %v4143
        %v4166 = vmul.f32 %v4132, %v4144
        %v4167 = vmul.f32 %v4133, %v4143
        %v4168 = vmul.f32 %v4134, %v4144
        %v4169 = vmul.f32 %v4135, %v4143
        %v4170 = vmul.f32 %v4136, %v4144
        %v4171 = vmul.f32 %v4137, %v4143
        %v4172 = vmul.f32 %v4138, %v4144
        %v4173 = vmul.f32 %v4139, %v4143
        %v4174 = vmul.f32 %v4140, %v4144
        %v4175 = vmul.f32 %v4141, %v4143
        %v4176 = vmul.f32 %v4142, %v4144
        %v4177 = vmul.f32 %v4145, %v4061
        %v4178 = vmul.f32 %v4146, %v4062
        %v4179 = vmul.f32 %v4147, %v4064
        %v4180 = vmul.f32 %v4148, %v4065
        %v4181 = vmul.f32 %v4149, %v4067
        %v4182 = vmul.f32 %v4150, %v4068
        %v4183 = vmul.f32 %v4151, %v4070
        %v4184 = vmul.f32 %v4152, %v4071
        %v4185 = vmul.f32 %v4153, %v4073
        %v4186 = vmul.f32 %v4154, %v4074
        %v4187 = vmul.f32 %v4155, %v4076
        %v4188 = vmul.f32 %v4156, %v4077
        %v4189 = vmul.f32 %v4157, %v4079
        %v4190 = vmul.f32 %v4158, %v4080
        %v4191 = vmul.f32 %v4159, %v4082
        %v4192 = vmul.f32 %v4160, %v4083
        %v4193 = vmul.f32 %v4161, %v4085
        %v4194 = vmul.f32 %v4162, %v4086
        %v4195 = vmul.f32 %v4163, %v4088
        %v4196 = vmul.f32 %v4164, %v4089
        %v4197 = vmul.f32 %v4165, %v4091
        %v4198 = vmul.f32 %v4166, %v4092
        %v4199 = vmul.f32 %v4167, %v4094
        %v4200 = vmul.f32 %v4168, %v4095
        %v4201 = vmul.f32 %v4169, %v4097
        %v4202 = vmul.f32 %v4170, %v4098
        %v4203 = vmul.f32 %v4171, %v4100
        %v4204 = vmul.f32 %v4172, %v4101
        %v4205 = vmul.f32 %v4173, %v4103
        %v4206 = vmul.f32 %v4174, %v4104
        %v4207 = vmul.f32 %v4175, %v4106
        %v4208 = vmul.f32 %v4176, %v4107
        %v4209 = vperm.slane %v2460, 1
        %v4210 = vperm.slane %v2461, 1
        %v4211 = vsub.f32 %v4209, %v2690
        %v4212 = vsub.f32 %v4210, %v2690
        %v4213 = vsub.f32 %v4209, %v2691
        %v4214 = vsub.f32 %v4210, %v2691
        %v4215 = vsub.f32 %v4209, %v2692
        %v4216 = vsub.f32 %v4210, %v2692
        %v4217 = vsub.f32 %v4209, %v2693
        %v4218 = vsub.f32 %v4210, %v2693
        %v4219 = vsub.f32 %v4209, %v2694
        %v4220 = vsub.f32 %v4210, %v2694
        %v4221 = vsub.f32 %v4209, %v2695
        %v4222 = vsub.f32 %v4210, %v2695
        %v4223 = vsub.f32 %v4209, %v2696
        %v4224 = vsub.f32 %v4210, %v2696
        %v4225 = vsub.f32 %v4209, %v2697
        %v4226 = vsub.f32 %v4210, %v2697
        %v4227 = vsub.f32 %v4209, %v2698
        %v4228 = vsub.f32 %v4210, %v2698
        %v4229 = vsub.f32 %v4209, %v2699
        %v4230 = vsub.f32 %v4210, %v2699
        %v4231 = vsub.f32 %v4209, %v2700
        %v4232 = vsub.f32 %v4210, %v2700
        %v4233 = vsub.f32 %v4209, %v2701
        %v4234 = vsub.f32 %v4210, %v2701
        %v4235 = vsub.f32 %v4209, %v2702
        %v4236 = vsub.f32 %v4210, %v2702
        %v4237 = vsub.f32 %v4209, %v2703
        %v4238 = vsub.f32 %v4210, %v2703
        %v4239 = vsub.f32 %v4209, %v2704
        %v4240 = vsub.f32 %v4210, %v2704
        %v4241 = vsub.f32 %v4209, %v2705
        %v4242 = vsub.f32 %v4210, %v2705
        %v4243 = vperm.slane %v2460, 3
        %v4244 = vperm.slane %v2461, 3
        %v4245 = vmul.f32 %v4211, %v4243
        %v4246 = vmul.f32 %v4212, %v4244
        %v4247 = vmul.f32 %v4213, %v4243
        %v4248 = vmul.f32 %v4214, %v4244
        %v4249 = vmul.f32 %v4215, %v4243
        %v4250 = vmul.f32 %v4216, %v4244
        %v4251 = vmul.f32 %v4217, %v4243
        %v4252 = vmul.f32 %v4218, %v4244
        %v4253 = vmul.f32 %v4219, %v4243
        %v4254 = vmul.f32 %v4220, %v4244
        %v4255 = vmul.f32 %v4221, %v4243
        %v4256 = vmul.f32 %v4222, %v4244
        %v4257 = vmul.f32 %v4223, %v4243
        %v4258 = vmul.f32 %v4224, %v4244
        %v4259 = vmul.f32 %v4225, %v4243
        %v4260 = vmul.f32 %v4226, %v4244
        %v4261 = vmul.f32 %v4227, %v4243
        %v4262 = vmul.f32 %v4228, %v4244
        %v4263 = vmul.f32 %v4229, %v4243
        %v4264 = vmul.f32 %v4230, %v4244
        %v4265 = vmul.f32 %v4231, %v4243
        %v4266 = vmul.f32 %v4232, %v4244
        %v4267 = vmul.f32 %v4233, %v4243
        %v4268 = vmul.f32 %v4234, %v4244
        %v4269 = vmul.f32 %v4235, %v4243
        %v4270 = vmul.f32 %v4236, %v4244
        %v4271 = vmul.f32 %v4237, %v4243
        %v4272 = vmul.f32 %v4238, %v4244
        %v4273 = vmul.f32 %v4239, %v4243
        %v4274 = vmul.f32 %v4240, %v4244
        %v4275 = vmul.f32 %v4241, %v4243
        %v4276 = vmul.f32 %v4242, %v4244
        %4325 = vrot.lane.b32.xlu0 %v4061, 96
        %v4326 = vpop.permute.xlu0 %4325
        %4327 = vrot.lane.b32.xlu0 %v4062, 96
        %v4328 = vpop.permute.xlu0 %4327
        %4329 = vrot.lane.b32.xlu0 %v4063, 96
        %v4330 = vpop.permute.xlu0 %4329
        %4331 = vrot.lane.b32.xlu0 %v4064, 96
        %v4332 = vpop.permute.xlu0 %4331
        %4333 = vrot.lane.b32.xlu0 %v4065, 96
        %v4334 = vpop.permute.xlu0 %4333
        %4335 = vrot.lane.b32.xlu0 %v4066, 96
        %v4336 = vpop.permute.xlu0 %4335
        %4337 = vrot.lane.b32.xlu0 %v4067, 96
        %v4338 = vpop.permute.xlu0 %4337
        %4339 = vrot.lane.b32.xlu0 %v4068, 96
        %v4340 = vpop.permute.xlu0 %4339
        %4341 = vrot.lane.b32.xlu0 %v4069, 96
        %v4342 = vpop.permute.xlu0 %4341
        %4343 = vrot.lane.b32.xlu0 %v4070, 96
        %v4344 = vpop.permute.xlu0 %4343
        %4345 = vrot.lane.b32.xlu0 %v4071, 96
        %v4346 = vpop.permute.xlu0 %4345
        %4347 = vrot.lane.b32.xlu0 %v4072, 96
        %v4348 = vpop.permute.xlu0 %4347
        %4349 = vrot.lane.b32.xlu0 %v4073, 96
        %v4350 = vpop.permute.xlu0 %4349
        %4351 = vrot.lane.b32.xlu0 %v4074, 96
        %v4352 = vpop.permute.xlu0 %4351
        %4353 = vrot.lane.b32.xlu0 %v4075, 96
        %v4354 = vpop.permute.xlu0 %4353
        %4355 = vrot.lane.b32.xlu0 %v4076, 96
        %v4356 = vpop.permute.xlu0 %4355
        %4357 = vrot.lane.b32.xlu0 %v4077, 96
        %v4358 = vpop.permute.xlu0 %4357
        %4359 = vrot.lane.b32.xlu0 %v4078, 96
        %v4360 = vpop.permute.xlu0 %4359
        %4361 = vrot.lane.b32.xlu0 %v4079, 96
        %v4362 = vpop.permute.xlu0 %4361
        %4363 = vrot.lane.b32.xlu0 %v4080, 96
        %v4364 = vpop.permute.xlu0 %4363
        %4365 = vrot.lane.b32.xlu0 %v4081, 96
        %v4366 = vpop.permute.xlu0 %4365
        %4367 = vrot.lane.b32.xlu0 %v4082, 96
        %v4368 = vpop.permute.xlu0 %4367
        %4369 = vrot.lane.b32.xlu0 %v4083, 96
        %v4370 = vpop.permute.xlu0 %4369
        %4371 = vrot.lane.b32.xlu0 %v4084, 96
        %v4372 = vpop.permute.xlu0 %4371
        %4373 = vrot.lane.b32.xlu0 %v4085, 96
        %v4374 = vpop.permute.xlu0 %4373
        %4375 = vrot.lane.b32.xlu0 %v4086, 96
        %v4376 = vpop.permute.xlu0 %4375
        %4377 = vrot.lane.b32.xlu0 %v4087, 96
        %v4378 = vpop.permute.xlu0 %4377
        %4379 = vrot.lane.b32.xlu0 %v4088, 96
        %v4380 = vpop.permute.xlu0 %4379
        %4381 = vrot.lane.b32.xlu0 %v4089, 96
        %v4382 = vpop.permute.xlu0 %4381
        %4383 = vrot.lane.b32.xlu0 %v4090, 96
        %v4384 = vpop.permute.xlu0 %4383
        %4385 = vrot.lane.b32.xlu0 %v4091, 96
        %v4386 = vpop.permute.xlu0 %4385
        %4387 = vrot.lane.b32.xlu0 %v4092, 96
        %v4388 = vpop.permute.xlu0 %4387
        %4389 = vrot.lane.b32.xlu0 %v4093, 96
        %v4390 = vpop.permute.xlu0 %4389
        %4391 = vrot.lane.b32.xlu0 %v4094, 96
        %v4392 = vpop.permute.xlu0 %4391
        %4393 = vrot.lane.b32.xlu0 %v4095, 96
        %v4394 = vpop.permute.xlu0 %4393
        %4395 = vrot.lane.b32.xlu0 %v4096, 96
        %v4396 = vpop.permute.xlu0 %4395
        %4397 = vrot.lane.b32.xlu0 %v4097, 96
        %v4398 = vpop.permute.xlu0 %4397
        %4399 = vrot.lane.b32.xlu0 %v4098, 96
        %v4400 = vpop.permute.xlu0 %4399
        %4401 = vrot.lane.b32.xlu0 %v4099, 96
        %v4402 = vpop.permute.xlu0 %4401
        %4403 = vrot.lane.b32.xlu0 %v4100, 96
        %v4404 = vpop.permute.xlu0 %4403
        %4405 = vrot.lane.b32.xlu0 %v4101, 96
        %v4406 = vpop.permute.xlu0 %4405
        %4407 = vrot.lane.b32.xlu0 %v4102, 96
        %v4408 = vpop.permute.xlu0 %4407
        %4409 = vrot.lane.b32.xlu0 %v4103, 96
        %v4410 = vpop.permute.xlu0 %4409
        %4411 = vrot.lane.b32.xlu0 %v4104, 96
        %v4412 = vpop.permute.xlu0 %4411
        %4413 = vrot.lane.b32.xlu0 %v4105, 96
        %v4414 = vpop.permute.xlu0 %4413
        %4415 = vrot.lane.b32.xlu0 %v4106, 96
        %v4416 = vpop.permute.xlu0 %4415
        %4417 = vrot.lane.b32.xlu0 %v4107, 96
        %v4418 = vpop.permute.xlu0 %4417
        %4419 = vrot.lane.b32.xlu0 %v4108, 96
        %v4420 = vpop.permute.xlu0 %4419
        %v4421 = vsel %vm755, %v4326, %v4328
        %v4422 = vsel %vm755, %v4328, %v4330
        %v4423 = vsel %vm755, %v4332, %v4334
        %v4424 = vsel %vm755, %v4334, %v4336
        %v4425 = vsel %vm755, %v4338, %v4340
        %v4426 = vsel %vm755, %v4340, %v4342
        %v4427 = vsel %vm755, %v4344, %v4346
        %v4428 = vsel %vm755, %v4346, %v4348
        %v4429 = vsel %vm755, %v4350, %v4352
        %v4430 = vsel %vm755, %v4352, %v4354
        %v4431 = vsel %vm755, %v4356, %v4358
        %v4432 = vsel %vm755, %v4358, %v4360
        %v4433 = vsel %vm755, %v4362, %v4364
        %v4434 = vsel %vm755, %v4364, %v4366
        %v4435 = vsel %vm755, %v4368, %v4370
        %v4436 = vsel %vm755, %v4370, %v4372
        %v4437 = vsel %vm755, %v4374, %v4376
        %v4438 = vsel %vm755, %v4376, %v4378
        %v4439 = vsel %vm755, %v4380, %v4382
        %v4440 = vsel %vm755, %v4382, %v4384
        %v4441 = vsel %vm755, %v4386, %v4388
        %v4442 = vsel %vm755, %v4388, %v4390
        %v4443 = vsel %vm755, %v4392, %v4394
        %v4444 = vsel %vm755, %v4394, %v4396
        %v4445 = vsel %vm755, %v4398, %v4400
        %v4446 = vsel %vm755, %v4400, %v4402
        %v4447 = vsel %vm755, %v4404, %v4406
        %v4448 = vsel %vm755, %v4406, %v4408
        %v4449 = vsel %vm755, %v4410, %v4412
        %v4450 = vsel %vm755, %v4412, %v4414
        %v4451 = vsel %vm755, %v4416, %v4418
        %v4452 = vsel %vm755, %v4418, %v4420
        %v4485 = vmul.f32 %v4245, %v4421
        %v4486 = vmul.f32 %v4246, %v4422
        %v4487 = vmul.f32 %v4247, %v4423
        %v4488 = vmul.f32 %v4248, %v4424
        %v4489 = vmul.f32 %v4249, %v4425
        %v4490 = vmul.f32 %v4250, %v4426
        %v4491 = vmul.f32 %v4251, %v4427
        %v4492 = vmul.f32 %v4252, %v4428
        %v4493 = vmul.f32 %v4253, %v4429
        %v4494 = vmul.f32 %v4254, %v4430
        %v4495 = vmul.f32 %v4255, %v4431
        %v4496 = vmul.f32 %v4256, %v4432
        %v4497 = vmul.f32 %v4257, %v4433
        %v4498 = vmul.f32 %v4258, %v4434
        %v4499 = vmul.f32 %v4259, %v4435
        %v4500 = vmul.f32 %v4260, %v4436
        %v4501 = vmul.f32 %v4261, %v4437
        %v4502 = vmul.f32 %v4262, %v4438
        %v4503 = vmul.f32 %v4263, %v4439
        %v4504 = vmul.f32 %v4264, %v4440
        %v4505 = vmul.f32 %v4265, %v4441
        %v4506 = vmul.f32 %v4266, %v4442
        %v4507 = vmul.f32 %v4267, %v4443
        %v4508 = vmul.f32 %v4268, %v4444
        %v4509 = vmul.f32 %v4269, %v4445
        %v4510 = vmul.f32 %v4270, %v4446
        %v4511 = vmul.f32 %v4271, %v4447
        %v4512 = vmul.f32 %v4272, %v4448
        %v4513 = vmul.f32 %v4273, %v4449
        %v4514 = vmul.f32 %v4274, %v4450
        %v4515 = vmul.f32 %v4275, %v4451
        %v4516 = vmul.f32 %v4276, %v4452
        %v4517 = vadd.f32 %v4177, %v4485
        %v4518 = vadd.f32 %v4178, %v4486
        %v4519 = vadd.f32 %v4179, %v4487
        %v4520 = vadd.f32 %v4180, %v4488
        %v4521 = vadd.f32 %v4181, %v4489
        %v4522 = vadd.f32 %v4182, %v4490
        %v4523 = vadd.f32 %v4183, %v4491
        %v4524 = vadd.f32 %v4184, %v4492
        %v4525 = vadd.f32 %v4185, %v4493
        %v4526 = vadd.f32 %v4186, %v4494
        %v4527 = vadd.f32 %v4187, %v4495
        %v4528 = vadd.f32 %v4188, %v4496
        %v4529 = vadd.f32 %v4189, %v4497
        %v4530 = vadd.f32 %v4190, %v4498
        %v4531 = vadd.f32 %v4191, %v4499
        %v4532 = vadd.f32 %v4192, %v4500
        %v4533 = vadd.f32 %v4193, %v4501
        %v4534 = vadd.f32 %v4194, %v4502
        %v4535 = vadd.f32 %v4195, %v4503
        %v4536 = vadd.f32 %v4196, %v4504
        %v4537 = vadd.f32 %v4197, %v4505
        %v4538 = vadd.f32 %v4198, %v4506
        %v4539 = vadd.f32 %v4199, %v4507
        %v4540 = vadd.f32 %v4200, %v4508
        %v4541 = vadd.f32 %v4201, %v4509
        %v4542 = vadd.f32 %v4202, %v4510
        %v4543 = vadd.f32 %v4203, %v4511
        %v4544 = vadd.f32 %v4204, %v4512
        %v4545 = vadd.f32 %v4205, %v4513
        %v4546 = vadd.f32 %v4206, %v4514
        %v4547 = vadd.f32 %v4207, %v4515
        %v4548 = vadd.f32 %v4208, %v4516
        %v4549 = vxor.u32 %v2409, 2147483648
        %v4550 = vxor.u32 %v2412, 2147483648
        %v4551 = vxor.u32 %v2415, 2147483648
        %v4552 = vxor.u32 %v2418, 2147483648
        %v4553 = vxor.u32 %v2421, 2147483648
        %v4554 = vxor.u32 %v2424, 2147483648
        %v4555 = vxor.u32 %v2427, 2147483648
        %v4556 = vxor.u32 %v2430, 2147483648
        %v4557 = vxor.u32 %v2433, 2147483648
        %v4558 = vxor.u32 %v2436, 2147483648
        %v4559 = vxor.u32 %v2439, 2147483648
        %v4560 = vxor.u32 %v2442, 2147483648
        %v4561 = vxor.u32 %v2445, 2147483648
        %v4562 = vxor.u32 %v2448, 2147483648
        %v4563 = vxor.u32 %v2451, 2147483648
        %v4564 = vxor.u32 %v2454, 2147483648
        %v4565 = vmul.f32 %v4549, 1.442695
        %v4566 = vpow.pop %v4565
        %v4567 = vmul.f32 %v4550, 1.442695
        %v4568 = vpow.pop %v4567
        %v4569 = vmul.f32 %v4551, 1.442695
        %v4570 = vpow.pop %v4569
        %v4571 = vmul.f32 %v4552, 1.442695
        %v4572 = vpow.pop %v4571
        %v4573 = vmul.f32 %v4553, 1.442695
        %v4574 = vpow.pop %v4573
        %v4575 = vmul.f32 %v4554, 1.442695
        %v4576 = vpow.pop %v4575
        %v4577 = vmul.f32 %v4555, 1.442695
        %v4578 = vpow.pop %v4577
        %v4579 = vmul.f32 %v4556, 1.442695
        %v4580 = vpow.pop %v4579
        %v4581 = vmul.f32 %v4557, 1.442695
        %v4582 = vpow.pop %v4581
        %v4583 = vmul.f32 %v4558, 1.442695
        %v4584 = vpow.pop %v4583
        %v4585 = vmul.f32 %v4559, 1.442695
        %v4586 = vpow.pop %v4585
        %v4587 = vmul.f32 %v4560, 1.442695
        %v4588 = vpow.pop %v4587
        %v4589 = vmul.f32 %v4561, 1.442695
        %v4590 = vpow.pop %v4589
        %v4591 = vmul.f32 %v4562, 1.442695
        %v4592 = vpow.pop %v4591
        %v4593 = vmul.f32 %v4563, 1.442695
        %v4594 = vpow.pop %v4593
        %v4595 = vmul.f32 %v4564, 1.442695
        %v4596 = vpow.pop %v4595
        %v4597 = vadd.f32 %v4566, 1.0
        %v4598 = vadd.f32 %v4568, 1.0
        %v4599 = vadd.f32 %v4570, 1.0
        %v4600 = vadd.f32 %v4572, 1.0
        %v4601 = vadd.f32 %v4574, 1.0
        %v4602 = vadd.f32 %v4576, 1.0
        %v4603 = vadd.f32 %v4578, 1.0
        %v4604 = vadd.f32 %v4580, 1.0
        %v4605 = vadd.f32 %v4582, 1.0
        %v4606 = vadd.f32 %v4584, 1.0
        %v4607 = vadd.f32 %v4586, 1.0
        %v4608 = vadd.f32 %v4588, 1.0
        %v4609 = vadd.f32 %v4590, 1.0
        %v4610 = vadd.f32 %v4592, 1.0
        %v4611 = vadd.f32 %v4594, 1.0
        %v4612 = vadd.f32 %v4596, 1.0
        %v4613 = vrcp.pop %v4597
        %v4614 = vmul.f32 %v4597, %v4613
        %v4615 = vsub.f32 1.0, %v4614
        %v4616 = vmul.f32 %v4613, %v4615
        %v4617 = vadd.f32 %v4613, %v4616
        %vm4618 = vweird.f32 %v4597
        %vm4619 = vweird.f32 %v4613
        %vm4620 = vmor %vm4618, %vm4619
        %v4621 = vsel %vm4620, %v4613, %v4617
        %v4622 = vand.u32 2147483647, %v4597
        %vm4623 = vcmp.eq.f32.partialorder %v4622, 8.507059e+37
        %v4624 = vand.u32 %v4597, 2147483648
        %v4625 = vor.u32 1.1754944e-38, %v4624
        %v4626 = vsel %vm4623, %v4625, %v4621
        %v4627 = vmul.f32 1.0, %v4626
        %v4628 = vrcp.pop %v4598
        %v4629 = vmul.f32 %v4598, %v4628
        %v4630 = vsub.f32 1.0, %v4629
        %v4631 = vmul.f32 %v4628, %v4630
        %v4632 = vadd.f32 %v4628, %v4631
        %vm4633 = vweird.f32 %v4598
        %vm4634 = vweird.f32 %v4628
        %vm4635 = vmor %vm4633, %vm4634
        %v4636 = vsel %vm4635, %v4628, %v4632
        %v4637 = vand.u32 2147483647, %v4598
        %vm4638 = vcmp.eq.f32.partialorder %v4637, 8.507059e+37
        %v4639 = vand.u32 %v4598, 2147483648
        %v4640 = vor.u32 1.1754944e-38, %v4639
        %v4641 = vsel %vm4638, %v4640, %v4636
        %v4642 = vmul.f32 1.0, %v4641
        %v4643 = vrcp.pop %v4599
        %v4644 = vmul.f32 %v4599, %v4643
        %v4645 = vsub.f32 1.0, %v4644
        %v4646 = vmul.f32 %v4643, %v4645
        %v4647 = vadd.f32 %v4643, %v4646
        %vm4648 = vweird.f32 %v4599
        %vm4649 = vweird.f32 %v4643
        %vm4650 = vmor %vm4648, %vm4649
        %v4651 = vsel %vm4650, %v4643, %v4647
        %v4652 = vand.u32 2147483647, %v4599
        %vm4653 = vcmp.eq.f32.partialorder %v4652, 8.507059e+37
        %v4654 = vand.u32 %v4599, 2147483648
        %v4655 = vor.u32 1.1754944e-38, %v4654
        %v4656 = vsel %vm4653, %v4655, %v4651
        %v4657 = vmul.f32 1.0, %v4656
        %v4658 = vrcp.pop %v4600
        %v4659 = vmul.f32 %v4600, %v4658
        %v4660 = vsub.f32 1.0, %v4659
        %v4661 = vmul.f32 %v4658, %v4660
        %v4662 = vadd.f32 %v4658, %v4661
        %vm4663 = vweird.f32 %v4600
        %vm4664 = vweird.f32 %v4658
        %vm4665 = vmor %vm4663, %vm4664
        %v4666 = vsel %vm4665, %v4658, %v4662
        %v4667 = vand.u32 2147483647, %v4600
        %vm4668 = vcmp.eq.f32.partialorder %v4667, 8.507059e+37
        %v4669 = vand.u32 %v4600, 2147483648
        %v4670 = vor.u32 1.1754944e-38, %v4669
        %v4671 = vsel %vm4668, %v4670, %v4666
        %v4672 = vmul.f32 1.0, %v4671
        %v4673 = vrcp.pop %v4601
        %v4674 = vmul.f32 %v4601, %v4673
        %v4675 = vsub.f32 1.0, %v4674
        %v4676 = vmul.f32 %v4673, %v4675
        %v4677 = vadd.f32 %v4673, %v4676
        %vm4678 = vweird.f32 %v4601
        %vm4679 = vweird.f32 %v4673
        %vm4680 = vmor %vm4678, %vm4679
        %v4681 = vsel %vm4680, %v4673, %v4677
        %v4682 = vand.u32 2147483647, %v4601
        %vm4683 = vcmp.eq.f32.partialorder %v4682, 8.507059e+37
        %v4684 = vand.u32 %v4601, 2147483648
        %v4685 = vor.u32 1.1754944e-38, %v4684
        %v4686 = vsel %vm4683, %v4685, %v4681
        %v4687 = vmul.f32 1.0, %v4686
        %v4688 = vrcp.pop %v4602
        %v4689 = vmul.f32 %v4602, %v4688
        %v4690 = vsub.f32 1.0, %v4689
        %v4691 = vmul.f32 %v4688, %v4690
        %v4692 = vadd.f32 %v4688, %v4691
        %vm4693 = vweird.f32 %v4602
        %vm4694 = vweird.f32 %v4688
        %vm4695 = vmor %vm4693, %vm4694
        %v4696 = vsel %vm4695, %v4688, %v4692
        %v4697 = vand.u32 2147483647, %v4602
        %vm4698 = vcmp.eq.f32.partialorder %v4697, 8.507059e+37
        %v4699 = vand.u32 %v4602, 2147483648
        %v4700 = vor.u32 1.1754944e-38, %v4699
        %v4701 = vsel %vm4698, %v4700, %v4696
        %v4702 = vmul.f32 1.0, %v4701
        %v4703 = vrcp.pop %v4603
        %v4704 = vmul.f32 %v4603, %v4703
        %v4705 = vsub.f32 1.0, %v4704
        %v4706 = vmul.f32 %v4703, %v4705
        %v4707 = vadd.f32 %v4703, %v4706
        %vm4708 = vweird.f32 %v4603
        %vm4709 = vweird.f32 %v4703
        %vm4710 = vmor %vm4708, %vm4709
        %v4711 = vsel %vm4710, %v4703, %v4707
        %v4712 = vand.u32 2147483647, %v4603
        %vm4713 = vcmp.eq.f32.partialorder %v4712, 8.507059e+37
        %v4714 = vand.u32 %v4603, 2147483648
        %v4715 = vor.u32 1.1754944e-38, %v4714
        %v4716 = vsel %vm4713, %v4715, %v4711
        %v4717 = vmul.f32 1.0, %v4716
        %v4718 = vrcp.pop %v4604
        %v4719 = vmul.f32 %v4604, %v4718
        %v4720 = vsub.f32 1.0, %v4719
        %v4721 = vmul.f32 %v4718, %v4720
        %v4722 = vadd.f32 %v4718, %v4721
        %vm4723 = vweird.f32 %v4604
        %vm4724 = vweird.f32 %v4718
        %vm4725 = vmor %vm4723, %vm4724
        %v4726 = vsel %vm4725, %v4718, %v4722
        %v4727 = vand.u32 2147483647, %v4604
        %vm4728 = vcmp.eq.f32.partialorder %v4727, 8.507059e+37
        %v4729 = vand.u32 %v4604, 2147483648
        %v4730 = vor.u32 1.1754944e-38, %v4729
        %v4731 = vsel %vm4728, %v4730, %v4726
        %v4732 = vmul.f32 1.0, %v4731
        %v4733 = vrcp.pop %v4605
        %v4734 = vmul.f32 %v4605, %v4733
        %v4735 = vsub.f32 1.0, %v4734
        %v4736 = vmul.f32 %v4733, %v4735
        %v4737 = vadd.f32 %v4733, %v4736
        %vm4738 = vweird.f32 %v4605
        %vm4739 = vweird.f32 %v4733
        %vm4740 = vmor %vm4738, %vm4739
        %v4741 = vsel %vm4740, %v4733, %v4737
        %v4742 = vand.u32 2147483647, %v4605
        %vm4743 = vcmp.eq.f32.partialorder %v4742, 8.507059e+37
        %v4744 = vand.u32 %v4605, 2147483648
        %v4745 = vor.u32 1.1754944e-38, %v4744
        %v4746 = vsel %vm4743, %v4745, %v4741
        %v4747 = vmul.f32 1.0, %v4746
        %v4748 = vrcp.pop %v4606
        %v4749 = vmul.f32 %v4606, %v4748
        %v4750 = vsub.f32 1.0, %v4749
        %v4751 = vmul.f32 %v4748, %v4750
        %v4752 = vadd.f32 %v4748, %v4751
        %vm4753 = vweird.f32 %v4606
        %vm4754 = vweird.f32 %v4748
        %vm4755 = vmor %vm4753, %vm4754
        %v4756 = vsel %vm4755, %v4748, %v4752
        %v4757 = vand.u32 2147483647, %v4606
        %vm4758 = vcmp.eq.f32.partialorder %v4757, 8.507059e+37
        %v4759 = vand.u32 %v4606, 2147483648
        %v4760 = vor.u32 1.1754944e-38, %v4759
        %v4761 = vsel %vm4758, %v4760, %v4756
        %v4762 = vmul.f32 1.0, %v4761
        %v4763 = vrcp.pop %v4607
        %v4764 = vmul.f32 %v4607, %v4763
        %v4765 = vsub.f32 1.0, %v4764
        %v4766 = vmul.f32 %v4763, %v4765
        %v4767 = vadd.f32 %v4763, %v4766
        %vm4768 = vweird.f32 %v4607
        %vm4769 = vweird.f32 %v4763
        %vm4770 = vmor %vm4768, %vm4769
        %v4771 = vsel %vm4770, %v4763, %v4767
        %v4772 = vand.u32 2147483647, %v4607
        %vm4773 = vcmp.eq.f32.partialorder %v4772, 8.507059e+37
        %v4774 = vand.u32 %v4607, 2147483648
        %v4775 = vor.u32 1.1754944e-38, %v4774
        %v4776 = vsel %vm4773, %v4775, %v4771
        %v4777 = vmul.f32 1.0, %v4776
        %v4778 = vrcp.pop %v4608
        %v4779 = vmul.f32 %v4608, %v4778
        %v4780 = vsub.f32 1.0, %v4779
        %v4781 = vmul.f32 %v4778, %v4780
        %v4782 = vadd.f32 %v4778, %v4781
        %vm4783 = vweird.f32 %v4608
        %vm4784 = vweird.f32 %v4778
        %vm4785 = vmor %vm4783, %vm4784
        %v4786 = vsel %vm4785, %v4778, %v4782
        %v4787 = vand.u32 2147483647, %v4608
        %vm4788 = vcmp.eq.f32.partialorder %v4787, 8.507059e+37
        %v4789 = vand.u32 %v4608, 2147483648
        %v4790 = vor.u32 1.1754944e-38, %v4789
        %v4791 = vsel %vm4788, %v4790, %v4786
        %v4792 = vmul.f32 1.0, %v4791
        %v4793 = vrcp.pop %v4609
        %v4794 = vmul.f32 %v4609, %v4793
        %v4795 = vsub.f32 1.0, %v4794
        %v4796 = vmul.f32 %v4793, %v4795
        %v4797 = vadd.f32 %v4793, %v4796
        %vm4798 = vweird.f32 %v4609
        %vm4799 = vweird.f32 %v4793
        %vm4800 = vmor %vm4798, %vm4799
        %v4801 = vsel %vm4800, %v4793, %v4797
        %v4802 = vand.u32 2147483647, %v4609
        %vm4803 = vcmp.eq.f32.partialorder %v4802, 8.507059e+37
        %v4804 = vand.u32 %v4609, 2147483648
        %v4805 = vor.u32 1.1754944e-38, %v4804
        %v4806 = vsel %vm4803, %v4805, %v4801
        %v4807 = vmul.f32 1.0, %v4806
        %v4808 = vrcp.pop %v4610
        %v4809 = vmul.f32 %v4610, %v4808
        %v4810 = vsub.f32 1.0, %v4809
        %v4811 = vmul.f32 %v4808, %v4810
        %v4812 = vadd.f32 %v4808, %v4811
        %vm4813 = vweird.f32 %v4610
        %vm4814 = vweird.f32 %v4808
        %vm4815 = vmor %vm4813, %vm4814
        %v4816 = vsel %vm4815, %v4808, %v4812
        %v4817 = vand.u32 2147483647, %v4610
        %vm4818 = vcmp.eq.f32.partialorder %v4817, 8.507059e+37
        %v4819 = vand.u32 %v4610, 2147483648
        %v4820 = vor.u32 1.1754944e-38, %v4819
        %v4821 = vsel %vm4818, %v4820, %v4816
        %v4822 = vmul.f32 1.0, %v4821
        %v4823 = vrcp.pop %v4611
        %v4824 = vmul.f32 %v4611, %v4823
        %v4825 = vsub.f32 1.0, %v4824
        %v4826 = vmul.f32 %v4823, %v4825
        %v4827 = vadd.f32 %v4823, %v4826
        %vm4828 = vweird.f32 %v4611
        %vm4829 = vweird.f32 %v4823
        %vm4830 = vmor %vm4828, %vm4829
        %v4831 = vsel %vm4830, %v4823, %v4827
        %v4832 = vand.u32 2147483647, %v4611
        %vm4833 = vcmp.eq.f32.partialorder %v4832, 8.507059e+37
        %v4834 = vand.u32 %v4611, 2147483648
        %v4835 = vor.u32 1.1754944e-38, %v4834
        %v4836 = vsel %vm4833, %v4835, %v4831
        %v4837 = vmul.f32 1.0, %v4836
        %v4838 = vrcp.pop %v4612
        %v4839 = vmul.f32 %v4612, %v4838
        %v4840 = vsub.f32 1.0, %v4839
        %v4841 = vmul.f32 %v4838, %v4840
        %v4842 = vadd.f32 %v4838, %v4841
        %vm4843 = vweird.f32 %v4612
        %vm4844 = vweird.f32 %v4838
        %vm4845 = vmor %vm4843, %vm4844
        %v4846 = vsel %vm4845, %v4838, %v4842
        %v4847 = vand.u32 2147483647, %v4612
        %vm4848 = vcmp.eq.f32.partialorder %v4847, 8.507059e+37
        %v4849 = vand.u32 %v4612, 2147483648
        %v4850 = vor.u32 1.1754944e-38, %v4849
        %v4851 = vsel %vm4848, %v4850, %v4846
        %v4852 = vmul.f32 1.0, %v4851
        %v4853 = vmul.f32 %v2409, %v4627
        %v4854 = vmul.f32 %v2412, %v4642
        %v4855 = vmul.f32 %v2415, %v4657
        %v4856 = vmul.f32 %v2418, %v4672
        %v4857 = vmul.f32 %v2421, %v4687
        %v4858 = vmul.f32 %v2424, %v4702
        %v4859 = vmul.f32 %v2427, %v4717
        %v4860 = vmul.f32 %v2430, %v4732
        %v4861 = vmul.f32 %v2433, %v4747
        %v4862 = vmul.f32 %v2436, %v4762
        %v4863 = vmul.f32 %v2439, %v4777
        %v4864 = vmul.f32 %v2442, %v4792
        %v4865 = vmul.f32 %v2445, %v4807
        %v4866 = vmul.f32 %v2448, %v4822
        %v4867 = vmul.f32 %v2451, %v4837
        %v4868 = vmul.f32 %v2454, %v4852
        %v4870 = vsel %vm687, %v4853, 0
        %v4873 = vsel %vm687, %v4854, 0
        %v4876 = vsel %vm687, %v4855, 0
        %v4879 = vsel %vm687, %v4856, 0
        %v4882 = vsel %vm687, %v4857, 0
        %v4885 = vsel %vm687, %v4858, 0
        %v4888 = vsel %vm687, %v4859, 0
        %v4891 = vsel %vm687, %v4860, 0
        %v4894 = vsel %vm687, %v4861, 0
        %v4897 = vsel %vm687, %v4862, 0
        %v4900 = vsel %vm687, %v4863, 0
        %v4903 = vsel %vm687, %v4864, 0
        %v4906 = vsel %vm687, %v4865, 0
        %v4909 = vsel %vm687, %v4866, 0
        %v4912 = vsel %vm687, %v4867, 0
        %v4915 = vsel %vm687, %v4868, 0
        %4917 = vmatpush.msra.mxu0 %v2477
        %4918 = vmatpush.msra.mxu0 %v2476
        %4919 = vmatpush.msra.mxu0 %v2475
        %4920 = vmatpush.msra.mxu0 %v2474
        %4921 = vmatpush.msra.mxu0 %v2473
        %4922 = vmatpush.msra.mxu0 %v2472
        %4923 = vmatpush.msra.mxu0 %v2471
        %4924 = vmatpush.msra.mxu0 %v2470
        %4925 = vmatpush.msra.mxu0 %v2469
        %4926 = vmatpush.msra.mxu0 %v2468
        %4927 = vmatpush.msra.mxu0 %v2467
        %4928 = vmatpush.msra.mxu0 %v2466
        %4929 = vmatpush.msra.mxu0 %v2465
        %4930 = vmatpush.msra.mxu0 %v2464
        %4931 = vmatpush.msra.mxu0 %v2463
        %4932 = vmatpush.msra.mxu0 %v2462
        %4933 = vmatmul.f32.gmra.mxu0 %v4517
        %v4934 = vpop.f32.mrf.mxu0
        %v4935 = vadd.f32 0.0, %v4934
        %4936 = vmatmul.f32.gmra.mxu0 %v4519
        %v4937 = vpop.f32.mrf.mxu0
        %v4938 = vadd.f32 0.0, %v4937
        %4939 = vmatmul.f32.gmra.mxu0 %v4521
        %v4940 = vpop.f32.mrf.mxu0
        %v4941 = vadd.f32 0.0, %v4940
        %4942 = vmatmul.f32.gmra.mxu0 %v4523
        %v4943 = vpop.f32.mrf.mxu0
        %v4944 = vadd.f32 0.0, %v4943
        %4945 = vmatmul.f32.gmra.mxu0 %v4525
        %v4946 = vpop.f32.mrf.mxu0
        %v4947 = vadd.f32 0.0, %v4946
        %4948 = vmatmul.f32.gmra.mxu0 %v4527
        %v4949 = vpop.f32.mrf.mxu0
        %v4950 = vadd.f32 0.0, %v4949
        %4951 = vmatmul.f32.gmra.mxu0 %v4529
        %v4952 = vpop.f32.mrf.mxu0
        %v4953 = vadd.f32 0.0, %v4952
        %4954 = vmatmul.f32.gmra.mxu0 %v4531
        %v4955 = vpop.f32.mrf.mxu0
        %v4956 = vadd.f32 0.0, %v4955
        %4957 = vmatmul.f32.gmra.mxu0 %v4533
        %v4958 = vpop.f32.mrf.mxu0
        %v4959 = vadd.f32 0.0, %v4958
        %4960 = vmatmul.f32.gmra.mxu0 %v4535
        %v4961 = vpop.f32.mrf.mxu0
        %v4962 = vadd.f32 0.0, %v4961
        %4963 = vmatmul.f32.gmra.mxu0 %v4537
        %v4964 = vpop.f32.mrf.mxu0
        %v4965 = vadd.f32 0.0, %v4964
        %4966 = vmatmul.f32.gmra.mxu0 %v4539
        %v4967 = vpop.f32.mrf.mxu0
        %v4968 = vadd.f32 0.0, %v4967
        %4969 = vmatmul.f32.gmra.mxu0 %v4541
        %v4970 = vpop.f32.mrf.mxu0
        %v4971 = vadd.f32 0.0, %v4970
        %4972 = vmatmul.f32.gmra.mxu0 %v4543
        %v4973 = vpop.f32.mrf.mxu0
        %v4974 = vadd.f32 0.0, %v4973
        %4975 = vmatmul.f32.gmra.mxu0 %v4545
        %v4976 = vpop.f32.mrf.mxu0
        %v4977 = vadd.f32 0.0, %v4976
        %4978 = vmatmul.f32.gmra.mxu0 %v4547
        %v4979 = vpop.f32.mrf.mxu0
        %v4980 = vadd.f32 0.0, %v4979
        %4981 = vdwg.mxu0
        %4982 = vmatpush.msra.mxu0 %v2493
        %4983 = vmatpush.msra.mxu0 %v2492
        %4984 = vmatpush.msra.mxu0 %v2491
        %4985 = vmatpush.msra.mxu0 %v2490
        %4986 = vmatpush.msra.mxu0 %v2489
        %4987 = vmatpush.msra.mxu0 %v2488
        %4988 = vmatpush.msra.mxu0 %v2487
        %4989 = vmatpush.msra.mxu0 %v2486
        %4990 = vmatpush.msra.mxu0 %v2485
        %4991 = vmatpush.msra.mxu0 %v2484
        %4992 = vmatpush.msra.mxu0 %v2483
        %4993 = vmatpush.msra.mxu0 %v2482
        %4994 = vmatpush.msra.mxu0 %v2481
        %4995 = vmatpush.msra.mxu0 %v2480
        %4996 = vmatpush.msra.mxu0 %v2479
        %4997 = vmatpush.msra.mxu0 %v2478
        %4998 = vmatmul.f32.gmra.mxu0 %v4518
        %v4999 = vpop.f32.mrf.mxu0
        %v5000 = vadd.f32 %v4935, %v4999
        %5001 = vmatmul.f32.gmra.mxu0 %v4520
        %v5002 = vpop.f32.mrf.mxu0
        %v5003 = vadd.f32 %v4938, %v5002
        %5004 = vmatmul.f32.gmra.mxu0 %v4522
        %v5005 = vpop.f32.mrf.mxu0
        %v5006 = vadd.f32 %v4941, %v5005
        %5007 = vmatmul.f32.gmra.mxu0 %v4524
        %v5008 = vpop.f32.mrf.mxu0
        %v5009 = vadd.f32 %v4944, %v5008
        %5010 = vmatmul.f32.gmra.mxu0 %v4526
        %v5011 = vpop.f32.mrf.mxu0
        %v5012 = vadd.f32 %v4947, %v5011
        %5013 = vmatmul.f32.gmra.mxu0 %v4528
        %v5014 = vpop.f32.mrf.mxu0
        %v5015 = vadd.f32 %v4950, %v5014
        %5016 = vmatmul.f32.gmra.mxu0 %v4530
        %v5017 = vpop.f32.mrf.mxu0
        %v5018 = vadd.f32 %v4953, %v5017
        %5019 = vmatmul.f32.gmra.mxu0 %v4532
        %v5020 = vpop.f32.mrf.mxu0
        %v5021 = vadd.f32 %v4956, %v5020
        %5022 = vmatmul.f32.gmra.mxu0 %v4534
        %v5023 = vpop.f32.mrf.mxu0
        %v5024 = vadd.f32 %v4959, %v5023
        %5025 = vmatmul.f32.gmra.mxu0 %v4536
        %v5026 = vpop.f32.mrf.mxu0
        %v5027 = vadd.f32 %v4962, %v5026
        %5028 = vmatmul.f32.gmra.mxu0 %v4538
        %v5029 = vpop.f32.mrf.mxu0
        %v5030 = vadd.f32 %v4965, %v5029
        %5031 = vmatmul.f32.gmra.mxu0 %v4540
        %v5032 = vpop.f32.mrf.mxu0
        %v5033 = vadd.f32 %v4968, %v5032
        %5034 = vmatmul.f32.gmra.mxu0 %v4542
        %v5035 = vpop.f32.mrf.mxu0
        %v5036 = vadd.f32 %v4971, %v5035
        %5037 = vmatmul.f32.gmra.mxu0 %v4544
        %v5038 = vpop.f32.mrf.mxu0
        %v5039 = vadd.f32 %v4974, %v5038
        %5040 = vmatmul.f32.gmra.mxu0 %v4546
        %v5041 = vpop.f32.mrf.mxu0
        %v5042 = vadd.f32 %v4977, %v5041
        %5043 = vmatmul.f32.gmra.mxu0 %v4548
        %v5044 = vpop.f32.mrf.mxu0
        %v5045 = vadd.f32 %v4980, %v5044
        %5046 = vdwg.mxu0
        %5047 = vmatpush.msra.mxu0 0.0
        %5048 = vmatpush.msra.mxu0 0.0
        %5049 = vmatpush.msra.mxu0 0.0
        %5050 = vmatpush.msra.mxu0 0.0
        %5051 = vmatpush.msra.mxu0 0.0
        %5052 = vmatpush.msra.mxu0 0.0
        %5053 = vmatpush.msra.mxu0 0.0
        %5054 = vmatpush.msra.mxu0 0.0
        %5055 = vmatpush.msra.mxu0 0.0
        %5056 = vmatpush.msra.mxu0 0.0
        %5057 = vmatpush.msra.mxu0 0.0
        %5058 = vmatpush.msra.mxu0 0.0
        %5059 = vmatpush.msra.mxu0 %v2497
        %5060 = vmatpush.msra.mxu0 %v2496
        %5061 = vmatpush.msra.mxu0 %v2495
        %5062 = vmatpush.msra.mxu0 %v2494
        %5063 = vmatmul.f32.gmra.mxu0 %v4870
        %v5064 = vpop.f32.mrf.mxu0
        %v5065 = vadd.f32 %v5000, %v5064
        %5066 = vmatmul.f32.gmra.mxu0 %v4873
        %v5067 = vpop.f32.mrf.mxu0
        %v5068 = vadd.f32 %v5003, %v5067
        %5069 = vmatmul.f32.gmra.mxu0 %v4876
        %v5070 = vpop.f32.mrf.mxu0
        %v5071 = vadd.f32 %v5006, %v5070
        %5072 = vmatmul.f32.gmra.mxu0 %v4879
        %v5073 = vpop.f32.mrf.mxu0
        %v5074 = vadd.f32 %v5009, %v5073
        %5075 = vmatmul.f32.gmra.mxu0 %v4882
        %v5076 = vpop.f32.mrf.mxu0
        %v5077 = vadd.f32 %v5012, %v5076
        %5078 = vmatmul.f32.gmra.mxu0 %v4885
        %v5079 = vpop.f32.mrf.mxu0
        %v5080 = vadd.f32 %v5015, %v5079
        %5081 = vmatmul.f32.gmra.mxu0 %v4888
        %v5082 = vpop.f32.mrf.mxu0
        %v5083 = vadd.f32 %v5018, %v5082
        %5084 = vmatmul.f32.gmra.mxu0 %v4891
        %v5085 = vpop.f32.mrf.mxu0
        %v5086 = vadd.f32 %v5021, %v5085
        %5087 = vmatmul.f32.gmra.mxu0 %v4894
        %v5088 = vpop.f32.mrf.mxu0
        %v5089 = vadd.f32 %v5024, %v5088
        %5090 = vmatmul.f32.gmra.mxu0 %v4897
        %v5091 = vpop.f32.mrf.mxu0
        %v5092 = vadd.f32 %v5027, %v5091
        %5093 = vmatmul.f32.gmra.mxu0 %v4900
        %v5094 = vpop.f32.mrf.mxu0
        %v5095 = vadd.f32 %v5030, %v5094
        %5096 = vmatmul.f32.gmra.mxu0 %v4903
        %v5097 = vpop.f32.mrf.mxu0
        %v5098 = vadd.f32 %v5033, %v5097
        %5099 = vmatmul.f32.gmra.mxu0 %v4906
        %v5100 = vpop.f32.mrf.mxu0
        %v5101 = vadd.f32 %v5036, %v5100
        %5102 = vmatmul.f32.gmra.mxu0 %v4909
        %v5103 = vpop.f32.mrf.mxu0
        %v5104 = vadd.f32 %v5039, %v5103
        %5105 = vmatmul.f32.gmra.mxu0 %v4912
        %v5106 = vpop.f32.mrf.mxu0
        %v5107 = vadd.f32 %v5042, %v5106
        %5108 = vmatmul.f32.gmra.mxu0 %v4915
        %v5109 = vpop.f32.mrf.mxu0
        %v5110 = vadd.f32 %v5045, %v5109
        %5111 = vdwg.mxu0
        %5112 = vst [vmem:[%s272] sm:$0xff] %v5065
        %5113 = vst [vmem:[%s272 + $0x8] sm:$0xff] %v5068
        %5114 = vst [vmem:[%s272 + $0x10] sm:$0xff] %v5071
        %5115 = vst [vmem:[%s272 + $0x18] sm:$0xff] %v5074
        %5116 = vst [vmem:[%s272 + $0x20] sm:$0xff] %v5077
        %5117 = vst [vmem:[%s272 + $0x28] sm:$0xff] %v5080
        %5118 = vst [vmem:[%s272 + $0x30] sm:$0xff] %v5083
        %5119 = vst [vmem:[%s272 + $0x38] sm:$0xff] %v5086
        %5120 = vst [vmem:[%s272 + $0x40] sm:$0xff] %v5089
        %5121 = vst [vmem:[%s272 + $0x48] sm:$0xff] %v5092
        %5122 = vst [vmem:[%s272 + $0x50] sm:$0xff] %v5095
        %5123 = vst [vmem:[%s272 + $0x58] sm:$0xff] %v5098
        %5124 = vst [vmem:[%s272 + $0x60] sm:$0xff] %v5101
        %5125 = vst [vmem:[%s272 + $0x68] sm:$0xff] %v5104
        %5126 = vst [vmem:[%s272 + $0x70] sm:$0xff] %v5107
        %5127 = vst [vmem:[%s272 + $0x78] sm:$0xff] %v5110
        %s5128 = sand.u32 %s181, 1
        %s5129 = scalar_lea.sflag [#allocation3], %s5128
        %s5130 = sand.u32 %s181, 1
        %s5131 = smul.addr %s5130, 128
        %s5132 = scalar_lea.vmem [#allocation2], %s5131
        // Predicated region
        $region49: #{tpu_custom_call.1} parent=47 // pred_check
          %p5133 = pneg %p191
        $region50: #{tpu_custom_call.1} parent=47 // pred_check_branch
          %5135 = sbr.rel (%p5133) target = $region52
        $region51: #{tpu_custom_call.1} parent=47 // pred_region
          %s5136 = smul.u32 16, %s21
          %5138 = vsyncadd %s5129, 0
          %s5139 = smul.addr %s5136, 8
          %s5140 = scalar_lea.hbm %s7, %s5139
          %s5141 = sshll.u32 %s5132, 4
          %s5142 = int_to_ptr.vmem [resolvable:$true] %s5141
          %s5143 = sshll.u32 %s5140, 4
          %s5144 = int_to_ptr.hbm [resolvable:$true] %s5143
          %5149 = dma.vmem_to_hbm [thread:$0]  %s5142, 2048, %s5144, %s5129, 128, 128, 8
        $region52: #{tpu_custom_call.1} parent=47 // pred_fallthru
          _
      $region48: #{tpu_custom_call.1} parent=5 // pred_fallthru
        _
      %p5150 = scmp.le.s32.totalorder 2, %s16
      // Predicated region
      $region53: #{tpu_custom_call.1} parent=5 // pred_check
        %p5151 = pneg %p5150
      $region54: #{tpu_custom_call.1} parent=5 // pred_check_branch
        %5153 = sbr.rel (%p5151) target = $region56
      $region55: #{tpu_custom_call.1} parent=5 // pred_region
        %s5154 = ssub.s32 %s16, 2
        // Predicated region
        $region57: #{tpu_custom_call.1} parent=55 // pred_check
          %p5155 = pneg %p197
        $region58: #{tpu_custom_call.1} parent=55 // pred_check_branch
          %5157 = sbr.rel (%p5155) target = $region60
        $region59: #{tpu_custom_call.1} parent=55 // pred_region
          %s5158 = sand.u32 %s182, 1
          %s5159 = scalar_lea.sflag [#allocation3], %s5158
          %s5160 = sand.u32 %s182, 1
          %s5161 = smul.addr %s5160, 128
          %s5162 = scalar_lea.vmem [#allocation2], %s5161
          %5164 = dma.done %s5159, 2048
        $region60: #{tpu_custom_call.1} parent=55 // pred_fallthru
          _
      $region56: #{tpu_custom_call.1} parent=5 // pred_fallthru
        _
    $region6: #{tpu_custom_call.1} parent=1 // loop_footer
      %s20 = sadd.s32 1, %s16
    $region7: #{tpu_custom_call.1} parent=1 // loop_footer_branch
      %15 = sbr.rel target = $region3
    $region8: #{tpu_custom_call.1} parent=1 // loop_exit
      _
    %5165 = vsyncpa [#allocation3], 1
    %s5166 = scalar_lea.sflag [#allocation3], 1
    %5167 = vsyncpa %s5166, 1

</llo_original>
